<compile_context>
chip_gen: v5e
topology: v5e:2x2
jax: 0.10.0
libtpu: 0.0.40
codegen_flags: <defaults>
</compile_context>

<pallas_src>
import functools

import jax
import jax.numpy as jnp
from jax.experimental import pallas as pl
from jax.experimental.pallas import tpu as pltpu


def _cdiv(a, b):
    return -(-a // b)


# ----------------------------------------------------------------------------
# Fused forward-pass kernel (one grid step == one batch tile of B elements)
# ----------------------------------------------------------------------------
def dance_classifier_kernel(x_ref, w1_ref, bw_ref, fw_ref, b_ref, o_ref, *,
                            n_blocks, block_ker, batch_tile, seqlen, c_h, out_code):
    B, L = batch_tile, seqlen
    pad = (block_ker - 1) // 2
    biases = b_ref[...]                                   # (n_layers, C_max) f32

    # ---- initial conv: input pre-im2col'ed in the wrapper -> single MXU dot ----
    x = x_ref[0]                                          # (B*L, K*C_in) bf16
    h = jnp.dot(x, w1_ref[...], preferred_element_type=jnp.float32)
    h = jnp.maximum(h + biases[0:1, :c_h], 0.0)           # bias + relu in f32
    h = h.astype(jnp.bfloat16)                            # carried activation: bf16

    zpad = jnp.zeros((B, pad, c_h), jnp.bfloat16)

    def block_conv(a2, conv_idx):
        """'same' conv = K accumulated sublane-shifted depth-C_h MXU matmuls."""
        a3 = a2.reshape(B, L, c_h)
        ap = jnp.concatenate([zpad, a3, zpad], axis=1)    # in-kernel 'same' padding
        acc = jnp.zeros((B * L, c_h), jnp.float32)
        for k in range(block_ker):
            lhs = ap[:, k:k + L, :].reshape(B * L, c_h)   # sublane shift, no lane concat
            acc = acc + jnp.dot(lhs, bw_ref[conv_idx, k],
                                preferred_element_type=jnp.float32)
        return acc

    # TemporalBlocks:  h = h + relu(conv2(relu(conv1(h))))
    ci = 0
    for _ in range(n_blocks):
        hp = jnp.maximum(block_conv(h, ci) + biases[1 + ci:2 + ci, :c_h], 0.0)
        hp = hp.astype(jnp.bfloat16)
        ci += 1
        hp = jnp.maximum(block_conv(hp, ci) + biases[1 + ci:2 + ci, :c_h], 0.0)
        ci += 1
        h = (h.astype(jnp.float32) + hp).astype(jnp.bfloat16)   # residual in f32, carry bf16

    # ---- fconv: kernel spans whole sequence -> one (B, L*C_h) @ (L*C_h, OUT) dot ----
    h3 = h.reshape(B, L, c_h)
    lhs = jnp.concatenate([h3[:, l:l + 1, :] for l in range(L)], axis=2)  # (B, 1, L*C_h)
    lhs = lhs.reshape(B, L * c_h)
    out = jnp.dot(lhs, fw_ref[...], preferred_element_type=jnp.float32)
    out = out + biases[1 + 2 * n_blocks:2 + 2 * n_blocks, :out_code]
    o_ref[0] = out.astype(o_ref.dtype)                    # single (B, OUT) store


# ----------------------------------------------------------------------------
# Wrapper: single pallas_call for the whole model
# ----------------------------------------------------------------------------
def dance_classifier_forward(x_nlc, params):
    """x_nlc: (N, L, C_in) float32 (PyTorch NCL input transposed at the boundary)."""
    N, L, C_in = x_nlc.shape
    init_ker, _, C_h = params["conv1_w"].shape
    n_blocks = len(params["blocks"])
    block_ker = params["blocks"][0]["w1"].shape[0] if n_blocks else 1
    seq_w, _, OUT = params["fconv_w"].shape
    assert seq_w == L, "fconv kernel must span the whole sequence"
    # (K-1)//2 is exact 'same' padding only for odd kernels (correctness review item)
    assert init_ker % 2 == 1 and block_ker % 2 == 1, "kernel sizes must be odd"

    # ---- batch tiling: fold B elements into the MXU M dimension per grid step ----
    target_rows = 256                          # a few hundred sublane rows per step
    B = max(1, min(N, target_rows // max(L, 1)))
    if N > 1 and _cdiv(N, B) < 2:
        B = _cdiv(N, 2)                        # keep >=2 grid steps so both v7x TCs work
    n_tiles = _cdiv(N, B)
    N_pad = n_tiles * B

    # ---- pre-im2col the initial conv in the wrapper (tiny HBM tensor) ----
    pad0 = (init_ker - 1) // 2
    xp = jnp.pad(x_nlc.astype(jnp.float32), ((0, N_pad - N), (pad0, pad0), (0, 0)))
    x_i2c = jnp.concatenate([xp[:, k:k + L, :] for k in range(init_ker)], axis=-1)
    x_i2c = x_i2c.reshape(n_tiles, B * L, init_ker * C_in).astype(jnp.bfloat16)

    # ---- weights (k-major row order, matching the im2col column order) ----
    w1 = params["conv1_w"].reshape(init_ker * C_in, C_h).astype(jnp.bfloat16)
    if n_blocks:
        bw = jnp.stack([jnp.stack([blk["w1"], blk["w2"]]) for blk in params["blocks"]])
        bw = bw.reshape(2 * n_blocks, block_ker, C_h, C_h).astype(jnp.bfloat16)
    else:
        bw = jnp.zeros((1, 1, C_h, C_h), jnp.bfloat16)     # unused when n_blocks == 0
    fw = params["fconv_w"].reshape(L * C_h, OUT).astype(jnp.bfloat16)

    # ---- pack all biases into one (n_layers, C_max) operand ----
    C_max = max(C_h, OUT)

    def bias_row(b):
        return jnp.pad(b.astype(jnp.float32), (0, C_max - b.shape[0]))

    rows = [bias_row(params["conv1_b"])]
    for blk in params["blocks"]:
        rows += [bias_row(blk["b1"]), bias_row(blk["b2"])]
    rows.append(bias_row(params["fconv_b"]))
    biases = jnp.stack(rows)                               # (2 + 2*n_blocks, C_max)

    kernel = functools.partial(
        dance_classifier_kernel, n_blocks=n_blocks, block_ker=block_ker,
        batch_tile=B, seqlen=L, c_h=C_h, out_code=OUT)

    # Weights/biases use grid-invariant index_maps: the pipeline DMAs them into VMEM
    # once and re-uses that copy for every batch tile.
    # TODO(synk): pipeline_mode=pl.Buffered(1) on the invariant specs would also drop
    # their second pipeline buffer; skipped here to stay on the proven code path.
    out3 = pl.pallas_call(
        kernel,
        out_shape=jax.ShapeDtypeStruct((n_tiles, B, OUT), jnp.float32),
        grid=(n_tiles,),
        in_specs=[
            pl.BlockSpec((1, B * L, init_ker * C_in), lambda n: (n, 0, 0)),
            pl.BlockSpec(w1.shape, lambda n: (0, 0)),
            pl.BlockSpec(bw.shape, lambda n: (0, 0, 0, 0)),
            pl.BlockSpec(fw.shape, lambda n: (0, 0)),
            pl.BlockSpec(biases.shape, lambda n: (0, 0)),
        ],
        out_specs=pl.BlockSpec((1, B, OUT), lambda n: (n, 0, 0)),
        compiler_params=pltpu.CompilerParams(
            dimension_semantics=("parallel",)),            # batch tiles across both TCs on v7x
    )(x_i2c, w1, bw, fw, biases)
    return out3.reshape(n_tiles * B, OUT)[:N]              # (N, output_code)


# ----------------------------------------------------------------------------
# Pure-JAX reference (NCL layout, like PyTorch), same bf16-in / f32-acc /
# bf16-carried-activation policy as the kernel
# ----------------------------------------------------------------------------
def _ref_conv1d_ncl(x_ncl, w_kio, b, pad):
    w_oik = jnp.transpose(w_kio, (2, 1, 0)).astype(jnp.bfloat16)   # (C_out, C_in, K)
    y = jax.lax.conv_general_dilated(
        x_ncl.astype(jnp.bfloat16), w_oik, window_strides=(1,),
        padding=[(pad, pad)], dimension_numbers=("NCH", "OIH", "NCH"),
        preferred_element_type=jnp.float32)
    return y + b[None, :, None].astype(jnp.float32)


def _ref_forward(x_ncl, params):
    p0 = (params["conv1_w"].shape[0] - 1) // 2
    h = jnp.maximum(
        _ref_conv1d_ncl(x_ncl, params["conv1_w"], params["conv1_b"], p0), 0.0)
    h = h.astype(jnp.bfloat16)
    for blk in params["blocks"]:
        pad = (blk["w1"].shape[0] - 1) // 2
        hp = jnp.maximum(_ref_conv1d_ncl(h, blk["w1"], blk["b1"], pad), 0.0)
        hp = hp.astype(jnp.bfloat16)
        hp = jnp.maximum(_ref_conv1d_ncl(hp, blk["w2"], blk["b2"], pad), 0.0)
        h = (h.astype(jnp.float32) + hp).astype(jnp.bfloat16)
    out = _ref_conv1d_ncl(h, params["fconv_w"], params["fconv_b"], 0)
    return out[:, :, 0]


# ----------------------------------------------------------------------------
if __name__ == "__main__":
    # Small shapes consistent with the module; N=8 exercises batch folding into
    # 2 parallel grid steps of B=4.
    N, C_in, C_h, OUT_CODE, SEQLEN = 8, 4, 32, 8, 16
    INIT_KER, BLOCK_KER, N_BLOCKS = 9, 7, 2

    key = jax.random.PRNGKey(0)
    ks = iter(jax.random.split(key, 32))

    def init_w(shape, k):
        return jax.random.normal(k, shape, jnp.float32) * 0.1

    params = {
        "conv1_w": init_w((INIT_KER, C_in, C_h), next(ks)),
        "conv1_b": init_w((C_h,), next(ks)),
        "blocks": [
            {
                "w1": init_w((BLOCK_KER, C_h, C_h), next(ks)),
                "b1": init_w((C_h,), next(ks)),
                "w2": init_w((BLOCK_KER, C_h, C_h), next(ks)),
                "b2": init_w((C_h,), next(ks)),
            }
            for _ in range(N_BLOCKS)
        ],
        "fconv_w": init_w((SEQLEN, C_h, OUT_CODE), next(ks)),
        "fconv_b": init_w((OUT_CODE,), next(ks)),
    }

    # PyTorch-style NCL input, transposed to the kernel's NLC layout at the boundary
    x_ncl = jax.random.normal(next(ks), (N, C_in, SEQLEN), jnp.float32)
    x_nlc = jnp.transpose(x_ncl, (0, 2, 1))

    out = jax.block_until_ready(dance_classifier_forward(x_nlc, params))
    assert out.shape == (N, OUT_CODE), out.shape

    ref = jax.block_until_ready(_ref_forward(x_ncl, params))
    # Both paths use bf16 MXU inputs, f32 accumulation and bf16-carried activations;
    # remaining difference is only accumulation/rounding order.
    assert jnp.allclose(out, ref, atol=5e-2, rtol=5e-2), (
        float(jnp.max(jnp.abs(out - ref))))

    print("KERNEL_OK")
</pallas_src>

<mosaic_0001>
module attributes {stable_mosaic.version = 11 : i64} {
  func.func @dance_classifier_kernel(%arg0: i32, %arg1: memref<1x64x36xbf16, #tpu.memory_space<vmem>>, %arg2: memref<36x32xbf16, #tpu.memory_space<vmem>>, %arg3: memref<4x7x32x32xbf16, #tpu.memory_space<vmem>>, %arg4: memref<512x8xbf16, #tpu.memory_space<vmem>>, %arg5: memref<6x32xf32, #tpu.memory_space<vmem>>, %arg6: memref<1x4x8xf32, #tpu.memory_space<vmem>>) attributes {dimension_semantics = [#tpu.dimension_semantics<parallel>], iteration_bounds = array<i64: 2>, scalar_prefetch = 0 : i64, scratch_operands = 0 : i64, tpu.core_type = #tpu.core_type<tc>, window_params = [{transform_indices = @transform_0, window_bounds = array<i64: 1, 64, 36>}, {pipeline_mode = #tpu.pipeline_mode<synchronous>, transform_indices = @transform_1, window_bounds = array<i64: 36, 32>}, {pipeline_mode = #tpu.pipeline_mode<synchronous>, transform_indices = @transform_2, window_bounds = array<i64: 4, 7, 32, 32>}, {pipeline_mode = #tpu.pipeline_mode<synchronous>, transform_indices = @transform_3, window_bounds = array<i64: 512, 8>}, {pipeline_mode = #tpu.pipeline_mode<synchronous>, transform_indices = @transform_4, window_bounds = array<i64: 6, 32>}, {transform_indices = @transform_5, window_bounds = array<i64: 1, 4, 8>}]} {
    %c0 = arith.constant 0 : index
    %c0_0 = arith.constant 0 : index
    %0 = vector.load %arg5[%c0, %c0_0] : memref<6x32xf32, #tpu.memory_space<vmem>>, vector<6x32xf32>
    %c0_1 = arith.constant 0 : index
    %c0_2 = arith.constant 0 : index
    %c0_3 = arith.constant 0 : index
    %1 = vector.load %arg1[%c0_1, %c0_2, %c0_3] : memref<1x64x36xbf16, #tpu.memory_space<vmem>>, vector<1x64x36xbf16>
    %2 = vector.shape_cast %1 : vector<1x64x36xbf16> to vector<64x36xbf16>
    %c0_4 = arith.constant 0 : index
    %c0_5 = arith.constant 0 : index
    %3 = vector.load %arg2[%c0_4, %c0_5] : memref<36x32xbf16, #tpu.memory_space<vmem>>, vector<36x32xbf16>
    %cst = arith.constant dense<0.000000e+00> : vector<64x32xf32>
    %4 = tpu.matmul %2, %3, %cst {dimension_numbers = #tpu.dot_dimension_numbers<[1], [0], [0], [1], [0, 0, 1, 1], [], []>} : vector<64x36xbf16>, vector<36x32xbf16>, vector<64x32xf32> -> vector<64x32xf32>
    %5 = vector.extract_strided_slice %0 {offsets = [0, 0], sizes = [1, 32], strides = [1, 1]} : vector<6x32xf32> to vector<1x32xf32>
    %6 = vector.broadcast %5 : vector<1x32xf32> to vector<64x32xf32>
    %7 = arith.addf %4, %6 : vector<64x32xf32>
    %cst_6 = arith.constant 0.000000e+00 : f32
    %8 = vector.broadcast %cst_6 : f32 to vector<64x32xf32>
    %9 = arith.maximumf %7, %8 : vector<64x32xf32>
    %10 = arith.truncf %9 : vector<64x32xf32> to vector<64x32xbf16>
    %cst_7 = arith.constant 0.000000e+00 : bf16
    %11 = vector.broadcast %cst_7 : bf16 to vector<4x3x32xbf16>
    %12 = vector.shape_cast %10 : vector<64x32xbf16> to vector<4x16x32xbf16>
    %13 = tpu.concatenate %11, %12, %11 in 1 : vector<4x3x32xbf16>, vector<4x16x32xbf16>, vector<4x3x32xbf16> -> vector<4x22x32xbf16>
    %cst_8 = arith.constant 0.000000e+00 : f32
    %14 = vector.broadcast %cst_8 : f32 to vector<64x32xf32>
    %15 = vector.extract_strided_slice %13 {offsets = [0, 0, 0], sizes = [4, 16, 32], strides = [1, 1, 1]} : vector<4x22x32xbf16> to vector<4x16x32xbf16>
    %16 = vector.shape_cast %15 : vector<4x16x32xbf16> to vector<64x32xbf16>
    %c0_9 = arith.constant 0 : index
    %c0_10 = arith.constant 0 : index
    %c0_11 = arith.constant 0 : index
    %c0_12 = arith.constant 0 : index
    %17 = vector.load %arg3[%c0_9, %c0_10, %c0_11, %c0_12] : memref<4x7x32x32xbf16, #tpu.memory_space<vmem>>, vector<1x1x32x32xbf16>
    %18 = vector.shape_cast %17 : vector<1x1x32x32xbf16> to vector<32x32xbf16>
    %cst_13 = arith.constant dense<0.000000e+00> : vector<64x32xf32>
    %19 = tpu.matmul %16, %18, %cst_13 {dimension_numbers = #tpu.dot_dimension_numbers<[1], [0], [0], [1], [0, 0, 1, 1], [], []>} : vector<64x32xbf16>, vector<32x32xbf16>, vector<64x32xf32> -> vector<64x32xf32>
    %20 = arith.addf %14, %19 : vector<64x32xf32>
    %21 = vector.extract_strided_slice %13 {offsets = [0, 1, 0], sizes = [4, 16, 32], strides = [1, 1, 1]} : vector<4x22x32xbf16> to vector<4x16x32xbf16>
    %22 = vector.shape_cast %21 : vector<4x16x32xbf16> to vector<64x32xbf16>
    %c0_14 = arith.constant 0 : index
    %c1 = arith.constant 1 : index
    %c0_15 = arith.constant 0 : index
    %c0_16 = arith.constant 0 : index
    %23 = vector.load %arg3[%c0_14, %c1, %c0_15, %c0_16] : memref<4x7x32x32xbf16, #tpu.memory_space<vmem>>, vector<1x1x32x32xbf16>
    %24 = vector.shape_cast %23 : vector<1x1x32x32xbf16> to vector<32x32xbf16>
    %cst_17 = arith.constant dense<0.000000e+00> : vector<64x32xf32>
    %25 = tpu.matmul %22, %24, %cst_17 {dimension_numbers = #tpu.dot_dimension_numbers<[1], [0], [0], [1], [0, 0, 1, 1], [], []>} : vector<64x32xbf16>, vector<32x32xbf16>, vector<64x32xf32> -> vector<64x32xf32>
    %26 = arith.addf %20, %25 : vector<64x32xf32>
    %27 = vector.extract_strided_slice %13 {offsets = [0, 2, 0], sizes = [4, 16, 32], strides = [1, 1, 1]} : vector<4x22x32xbf16> to vector<4x16x32xbf16>
    %28 = vector.shape_cast %27 : vector<4x16x32xbf16> to vector<64x32xbf16>
    %c0_18 = arith.constant 0 : index
    %c2 = arith.constant 2 : index
    %c0_19 = arith.constant 0 : index
    %c0_20 = arith.constant 0 : index
    %29 = vector.load %arg3[%c0_18, %c2, %c0_19, %c0_20] : memref<4x7x32x32xbf16, #tpu.memory_space<vmem>>, vector<1x1x32x32xbf16>
    %30 = vector.shape_cast %29 : vector<1x1x32x32xbf16> to vector<32x32xbf16>
    %cst_21 = arith.constant dense<0.000000e+00> : vector<64x32xf32>
    %31 = tpu.matmul %28, %30, %cst_21 {dimension_numbers = #tpu.dot_dimension_numbers<[1], [0], [0], [1], [0, 0, 1, 1], [], []>} : vector<64x32xbf16>, vector<32x32xbf16>, vector<64x32xf32> -> vector<64x32xf32>
    %32 = arith.addf %26, %31 : vector<64x32xf32>
    %33 = vector.extract_strided_slice %13 {offsets = [0, 3, 0], sizes = [4, 16, 32], strides = [1, 1, 1]} : vector<4x22x32xbf16> to vector<4x16x32xbf16>
    %34 = vector.shape_cast %33 : vector<4x16x32xbf16> to vector<64x32xbf16>
    %c0_22 = arith.constant 0 : index
    %c3 = arith.constant 3 : index
    %c0_23 = arith.constant 0 : index
    %c0_24 = arith.constant 0 : index
    %35 = vector.load %arg3[%c0_22, %c3, %c0_23, %c0_24] : memref<4x7x32x32xbf16, #tpu.memory_space<vmem>>, vector<1x1x32x32xbf16>
    %36 = vector.shape_cast %35 : vector<1x1x32x32xbf16> to vector<32x32xbf16>
    %cst_25 = arith.constant dense<0.000000e+00> : vector<64x32xf32>
    %37 = tpu.matmul %34, %36, %cst_25 {dimension_numbers = #tpu.dot_dimension_numbers<[1], [0], [0], [1], [0, 0, 1, 1], [], []>} : vector<64x32xbf16>, vector<32x32xbf16>, vector<64x32xf32> -> vector<64x32xf32>
    %38 = arith.addf %32, %37 : vector<64x32xf32>
    %39 = vector.extract_strided_slice %13 {offsets = [0, 4, 0], sizes = [4, 16, 32], strides = [1, 1, 1]} : vector<4x22x32xbf16> to vector<4x16x32xbf16>
    %40 = vector.shape_cast %39 : vector<4x16x32xbf16> to vector<64x32xbf16>
    %c0_26 = arith.constant 0 : index
    %c4 = arith.constant 4 : index
    %c0_27 = arith.constant 0 : index
    %c0_28 = arith.constant 0 : index
    %41 = vector.load %arg3[%c0_26, %c4, %c0_27, %c0_28] : memref<4x7x32x32xbf16, #tpu.memory_space<vmem>>, vector<1x1x32x32xbf16>
    %42 = vector.shape_cast %41 : vector<1x1x32x32xbf16> to vector<32x32xbf16>
    %cst_29 = arith.constant dense<0.000000e+00> : vector<64x32xf32>
    %43 = tpu.matmul %40, %42, %cst_29 {dimension_numbers = #tpu.dot_dimension_numbers<[1], [0], [0], [1], [0, 0, 1, 1], [], []>} : vector<64x32xbf16>, vector<32x32xbf16>, vector<64x32xf32> -> vector<64x32xf32>
    %44 = arith.addf %38, %43 : vector<64x32xf32>
    %45 = vector.extract_strided_slice %13 {offsets = [0, 5, 0], sizes = [4, 16, 32], strides = [1, 1, 1]} : vector<4x22x32xbf16> to vector<4x16x32xbf16>
    %46 = vector.shape_cast %45 : vector<4x16x32xbf16> to vector<64x32xbf16>
    %c0_30 = arith.constant 0 : index
    %c5 = arith.constant 5 : index
    %c0_31 = arith.constant 0 : index
    %c0_32 = arith.constant 0 : index
    %47 = vector.load %arg3[%c0_30, %c5, %c0_31, %c0_32] : memref<4x7x32x32xbf16, #tpu.memory_space<vmem>>, vector<1x1x32x32xbf16>
    %48 = vector.shape_cast %47 : vector<1x1x32x32xbf16> to vector<32x32xbf16>
    %cst_33 = arith.constant dense<0.000000e+00> : vector<64x32xf32>
    %49 = tpu.matmul %46, %48, %cst_33 {dimension_numbers = #tpu.dot_dimension_numbers<[1], [0], [0], [1], [0, 0, 1, 1], [], []>} : vector<64x32xbf16>, vector<32x32xbf16>, vector<64x32xf32> -> vector<64x32xf32>
    %50 = arith.addf %44, %49 : vector<64x32xf32>
    %51 = vector.extract_strided_slice %13 {offsets = [0, 6, 0], sizes = [4, 16, 32], strides = [1, 1, 1]} : vector<4x22x32xbf16> to vector<4x16x32xbf16>
    %52 = vector.shape_cast %51 : vector<4x16x32xbf16> to vector<64x32xbf16>
    %c0_34 = arith.constant 0 : index
    %c6 = arith.constant 6 : index
    %c0_35 = arith.constant 0 : index
    %c0_36 = arith.constant 0 : index
    %53 = vector.load %arg3[%c0_34, %c6, %c0_35, %c0_36] : memref<4x7x32x32xbf16, #tpu.memory_space<vmem>>, vector<1x1x32x32xbf16>
    %54 = vector.shape_cast %53 : vector<1x1x32x32xbf16> to vector<32x32xbf16>
    %cst_37 = arith.constant dense<0.000000e+00> : vector<64x32xf32>
    %55 = tpu.matmul %52, %54, %cst_37 {dimension_numbers = #tpu.dot_dimension_numbers<[1], [0], [0], [1], [0, 0, 1, 1], [], []>} : vector<64x32xbf16>, vector<32x32xbf16>, vector<64x32xf32> -> vector<64x32xf32>
    %56 = arith.addf %50, %55 : vector<64x32xf32>
    %57 = vector.extract_strided_slice %0 {offsets = [1, 0], sizes = [1, 32], strides = [1, 1]} : vector<6x32xf32> to vector<1x32xf32>
    %58 = vector.broadcast %57 : vector<1x32xf32> to vector<64x32xf32>
    %59 = arith.addf %56, %58 : vector<64x32xf32>
    %cst_38 = arith.constant 0.000000e+00 : f32
    %60 = vector.broadcast %cst_38 : f32 to vector<64x32xf32>
    %61 = arith.maximumf %59, %60 : vector<64x32xf32>
    %62 = arith.truncf %61 : vector<64x32xf32> to vector<64x32xbf16>
    %63 = vector.shape_cast %62 : vector<64x32xbf16> to vector<4x16x32xbf16>
    %64 = tpu.concatenate %11, %63, %11 in 1 : vector<4x3x32xbf16>, vector<4x16x32xbf16>, vector<4x3x32xbf16> -> vector<4x22x32xbf16>
    %cst_39 = arith.constant 0.000000e+00 : f32
    %65 = vector.broadcast %cst_39 : f32 to vector<64x32xf32>
    %66 = vector.extract_strided_slice %64 {offsets = [0, 0, 0], sizes = [4, 16, 32], strides = [1, 1, 1]} : vector<4x22x32xbf16> to vector<4x16x32xbf16>
    %67 = vector.shape_cast %66 : vector<4x16x32xbf16> to vector<64x32xbf16>
    %c1_40 = arith.constant 1 : index
    %c0_41 = arith.constant 0 : index
    %c0_42 = arith.constant 0 : index
    %c0_43 = arith.constant 0 : index
    %68 = vector.load %arg3[%c1_40, %c0_41, %c0_42, %c0_43] : memref<4x7x32x32xbf16, #tpu.memory_space<vmem>>, vector<1x1x32x32xbf16>
    %69 = vector.shape_cast %68 : vector<1x1x32x32xbf16> to vector<32x32xbf16>
    %cst_44 = arith.constant dense<0.000000e+00> : vector<64x32xf32>
    %70 = tpu.matmul %67, %69, %cst_44 {dimension_numbers = #tpu.dot_dimension_numbers<[1], [0], [0], [1], [0, 0, 1, 1], [], []>} : vector<64x32xbf16>, vector<32x32xbf16>, vector<64x32xf32> -> vector<64x32xf32>
    %71 = arith.addf %65, %70 : vector<64x32xf32>
    %72 = vector.extract_strided_slice %64 {offsets = [0, 1, 0], sizes = [4, 16, 32], strides = [1, 1, 1]} : vector<4x22x32xbf16> to vector<4x16x32xbf16>
    %73 = vector.shape_cast %72 : vector<4x16x32xbf16> to vector<64x32xbf16>
    %c1_45 = arith.constant 1 : index
    %c1_46 = arith.constant 1 : index
    %c0_47 = arith.constant 0 : index
    %c0_48 = arith.constant 0 : index
    %74 = vector.load %arg3[%c1_45, %c1_46, %c0_47, %c0_48] : memref<4x7x32x32xbf16, #tpu.memory_space<vmem>>, vector<1x1x32x32xbf16>
    %75 = vector.shape_cast %74 : vector<1x1x32x32xbf16> to vector<32x32xbf16>
    %cst_49 = arith.constant dense<0.000000e+00> : vector<64x32xf32>
    %76 = tpu.matmul %73, %75, %cst_49 {dimension_numbers = #tpu.dot_dimension_numbers<[1], [0], [0], [1], [0, 0, 1, 1], [], []>} : vector<64x32xbf16>, vector<32x32xbf16>, vector<64x32xf32> -> vector<64x32xf32>
    %77 = arith.addf %71, %76 : vector<64x32xf32>
    %78 = vector.extract_strided_slice %64 {offsets = [0, 2, 0], sizes = [4, 16, 32], strides = [1, 1, 1]} : vector<4x22x32xbf16> to vector<4x16x32xbf16>
    %79 = vector.shape_cast %78 : vector<4x16x32xbf16> to vector<64x32xbf16>
    %c1_50 = arith.constant 1 : index
    %c2_51 = arith.constant 2 : index
    %c0_52 = arith.constant 0 : index
    %c0_53 = arith.constant 0 : index
    %80 = vector.load %arg3[%c1_50, %c2_51, %c0_52, %c0_53] : memref<4x7x32x32xbf16, #tpu.memory_space<vmem>>, vector<1x1x32x32xbf16>
    %81 = vector.shape_cast %80 : vector<1x1x32x32xbf16> to vector<32x32xbf16>
    %cst_54 = arith.constant dense<0.000000e+00> : vector<64x32xf32>
    %82 = tpu.matmul %79, %81, %cst_54 {dimension_numbers = #tpu.dot_dimension_numbers<[1], [0], [0], [1], [0, 0, 1, 1], [], []>} : vector<64x32xbf16>, vector<32x32xbf16>, vector<64x32xf32> -> vector<64x32xf32>
    %83 = arith.addf %77, %82 : vector<64x32xf32>
    %84 = vector.extract_strided_slice %64 {offsets = [0, 3, 0], sizes = [4, 16, 32], strides = [1, 1, 1]} : vector<4x22x32xbf16> to vector<4x16x32xbf16>
    %85 = vector.shape_cast %84 : vector<4x16x32xbf16> to vector<64x32xbf16>
    %c1_55 = arith.constant 1 : index
    %c3_56 = arith.constant 3 : index
    %c0_57 = arith.constant 0 : index
    %c0_58 = arith.constant 0 : index
    %86 = vector.load %arg3[%c1_55, %c3_56, %c0_57, %c0_58] : memref<4x7x32x32xbf16, #tpu.memory_space<vmem>>, vector<1x1x32x32xbf16>
    %87 = vector.shape_cast %86 : vector<1x1x32x32xbf16> to vector<32x32xbf16>
    %cst_59 = arith.constant dense<0.000000e+00> : vector<64x32xf32>
    %88 = tpu.matmul %85, %87, %cst_59 {dimension_numbers = #tpu.dot_dimension_numbers<[1], [0], [0], [1], [0, 0, 1, 1], [], []>} : vector<64x32xbf16>, vector<32x32xbf16>, vector<64x32xf32> -> vector<64x32xf32>
    %89 = arith.addf %83, %88 : vector<64x32xf32>
    %90 = vector.extract_strided_slice %64 {offsets = [0, 4, 0], sizes = [4, 16, 32], strides = [1, 1, 1]} : vector<4x22x32xbf16> to vector<4x16x32xbf16>
    %91 = vector.shape_cast %90 : vector<4x16x32xbf16> to vector<64x32xbf16>
    %c1_60 = arith.constant 1 : index
    %c4_61 = arith.constant 4 : index
    %c0_62 = arith.constant 0 : index
    %c0_63 = arith.constant 0 : index
    %92 = vector.load %arg3[%c1_60, %c4_61, %c0_62, %c0_63] : memref<4x7x32x32xbf16, #tpu.memory_space<vmem>>, vector<1x1x32x32xbf16>
    %93 = vector.shape_cast %92 : vector<1x1x32x32xbf16> to vector<32x32xbf16>
    %cst_64 = arith.constant dense<0.000000e+00> : vector<64x32xf32>
    %94 = tpu.matmul %91, %93, %cst_64 {dimension_numbers = #tpu.dot_dimension_numbers<[1], [0], [0], [1], [0, 0, 1, 1], [], []>} : vector<64x32xbf16>, vector<32x32xbf16>, vector<64x32xf32> -> vector<64x32xf32>
    %95 = arith.addf %89, %94 : vector<64x32xf32>
    %96 = vector.extract_strided_slice %64 {offsets = [0, 5, 0], sizes = [4, 16, 32], strides = [1, 1, 1]} : vector<4x22x32xbf16> to vector<4x16x32xbf16>
    %97 = vector.shape_cast %96 : vector<4x16x32xbf16> to vector<64x32xbf16>
    %c1_65 = arith.constant 1 : index
    %c5_66 = arith.constant 5 : index
    %c0_67 = arith.constant 0 : index
    %c0_68 = arith.constant 0 : index
    %98 = vector.load %arg3[%c1_65, %c5_66, %c0_67, %c0_68] : memref<4x7x32x32xbf16, #tpu.memory_space<vmem>>, vector<1x1x32x32xbf16>
    %99 = vector.shape_cast %98 : vector<1x1x32x32xbf16> to vector<32x32xbf16>
    %cst_69 = arith.constant dense<0.000000e+00> : vector<64x32xf32>
    %100 = tpu.matmul %97, %99, %cst_69 {dimension_numbers = #tpu.dot_dimension_numbers<[1], [0], [0], [1], [0, 0, 1, 1], [], []>} : vector<64x32xbf16>, vector<32x32xbf16>, vector<64x32xf32> -> vector<64x32xf32>
    %101 = arith.addf %95, %100 : vector<64x32xf32>
    %102 = vector.extract_strided_slice %64 {offsets = [0, 6, 0], sizes = [4, 16, 32], strides = [1, 1, 1]} : vector<4x22x32xbf16> to vector<4x16x32xbf16>
    %103 = vector.shape_cast %102 : vector<4x16x32xbf16> to vector<64x32xbf16>
    %c1_70 = arith.constant 1 : index
    %c6_71 = arith.constant 6 : index
    %c0_72 = arith.constant 0 : index
    %c0_73 = arith.constant 0 : index
    %104 = vector.load %arg3[%c1_70, %c6_71, %c0_72, %c0_73] : memref<4x7x32x32xbf16, #tpu.memory_space<vmem>>, vector<1x1x32x32xbf16>
    %105 = vector.shape_cast %104 : vector<1x1x32x32xbf16> to vector<32x32xbf16>
    %cst_74 = arith.constant dense<0.000000e+00> : vector<64x32xf32>
    %106 = tpu.matmul %103, %105, %cst_74 {dimension_numbers = #tpu.dot_dimension_numbers<[1], [0], [0], [1], [0, 0, 1, 1], [], []>} : vector<64x32xbf16>, vector<32x32xbf16>, vector<64x32xf32> -> vector<64x32xf32>
    %107 = arith.addf %101, %106 : vector<64x32xf32>
    %108 = vector.extract_strided_slice %0 {offsets = [2, 0], sizes = [1, 32], strides = [1, 1]} : vector<6x32xf32> to vector<1x32xf32>
    %109 = vector.broadcast %108 : vector<1x32xf32> to vector<64x32xf32>
    %110 = arith.addf %107, %109 : vector<64x32xf32>
    %cst_75 = arith.constant 0.000000e+00 : f32
    %111 = vector.broadcast %cst_75 : f32 to vector<64x32xf32>
    %112 = arith.maximumf %110, %111 : vector<64x32xf32>
    %113 = arith.extf %10 : vector<64x32xbf16> to vector<64x32xf32>
    %114 = arith.addf %113, %112 : vector<64x32xf32>
    %115 = arith.truncf %114 : vector<64x32xf32> to vector<64x32xbf16>
    %116 = vector.shape_cast %115 : vector<64x32xbf16> to vector<4x16x32xbf16>
    %117 = tpu.concatenate %11, %116, %11 in 1 : vector<4x3x32xbf16>, vector<4x16x32xbf16>, vector<4x3x32xbf16> -> vector<4x22x32xbf16>
    %cst_76 = arith.constant 0.000000e+00 : f32
    %118 = vector.broadcast %cst_76 : f32 to vector<64x32xf32>
    %119 = vector.extract_strided_slice %117 {offsets = [0, 0, 0], sizes = [4, 16, 32], strides = [1, 1, 1]} : vector<4x22x32xbf16> to vector<4x16x32xbf16>
    %120 = vector.shape_cast %119 : vector<4x16x32xbf16> to vector<64x32xbf16>
    %c2_77 = arith.constant 2 : index
    %c0_78 = arith.constant 0 : index
    %c0_79 = arith.constant 0 : index
    %c0_80 = arith.constant 0 : index
    %121 = vector.load %arg3[%c2_77, %c0_78, %c0_79, %c0_80] : memref<4x7x32x32xbf16, #tpu.memory_space<vmem>>, vector<1x1x32x32xbf16>
    %122 = vector.shape_cast %121 : vector<1x1x32x32xbf16> to vector<32x32xbf16>
    %cst_81 = arith.constant dense<0.000000e+00> : vector<64x32xf32>
    %123 = tpu.matmul %120, %122, %cst_81 {dimension_numbers = #tpu.dot_dimension_numbers<[1], [0], [0], [1], [0, 0, 1, 1], [], []>} : vector<64x32xbf16>, vector<32x32xbf16>, vector<64x32xf32> -> vector<64x32xf32>
    %124 = arith.addf %118, %123 : vector<64x32xf32>
    %125 = vector.extract_strided_slice %117 {offsets = [0, 1, 0], sizes = [4, 16, 32], strides = [1, 1, 1]} : vector<4x22x32xbf16> to vector<4x16x32xbf16>
    %126 = vector.shape_cast %125 : vector<4x16x32xbf16> to vector<64x32xbf16>
    %c2_82 = arith.constant 2 : index
    %c1_83 = arith.constant 1 : index
    %c0_84 = arith.constant 0 : index
    %c0_85 = arith.constant 0 : index
    %127 = vector.load %arg3[%c2_82, %c1_83, %c0_84, %c0_85] : memref<4x7x32x32xbf16, #tpu.memory_space<vmem>>, vector<1x1x32x32xbf16>
    %128 = vector.shape_cast %127 : vector<1x1x32x32xbf16> to vector<32x32xbf16>
    %cst_86 = arith.constant dense<0.000000e+00> : vector<64x32xf32>
    %129 = tpu.matmul %126, %128, %cst_86 {dimension_numbers = #tpu.dot_dimension_numbers<[1], [0], [0], [1], [0, 0, 1, 1], [], []>} : vector<64x32xbf16>, vector<32x32xbf16>, vector<64x32xf32> -> vector<64x32xf32>
    %130 = arith.addf %124, %129 : vector<64x32xf32>
    %131 = vector.extract_strided_slice %117 {offsets = [0, 2, 0], sizes = [4, 16, 32], strides = [1, 1, 1]} : vector<4x22x32xbf16> to vector<4x16x32xbf16>
    %132 = vector.shape_cast %131 : vector<4x16x32xbf16> to vector<64x32xbf16>
    %c2_87 = arith.constant 2 : index
    %c2_88 = arith.constant 2 : index
    %c0_89 = arith.constant 0 : index
    %c0_90 = arith.constant 0 : index
    %133 = vector.load %arg3[%c2_87, %c2_88, %c0_89, %c0_90] : memref<4x7x32x32xbf16, #tpu.memory_space<vmem>>, vector<1x1x32x32xbf16>
    %134 = vector.shape_cast %133 : vector<1x1x32x32xbf16> to vector<32x32xbf16>
    %cst_91 = arith.constant dense<0.000000e+00> : vector<64x32xf32>
    %135 = tpu.matmul %132, %134, %cst_91 {dimension_numbers = #tpu.dot_dimension_numbers<[1], [0], [0], [1], [0, 0, 1, 1], [], []>} : vector<64x32xbf16>, vector<32x32xbf16>, vector<64x32xf32> -> vector<64x32xf32>
    %136 = arith.addf %130, %135 : vector<64x32xf32>
    %137 = vector.extract_strided_slice %117 {offsets = [0, 3, 0], sizes = [4, 16, 32], strides = [1, 1, 1]} : vector<4x22x32xbf16> to vector<4x16x32xbf16>
    %138 = vector.shape_cast %137 : vector<4x16x32xbf16> to vector<64x32xbf16>
    %c2_92 = arith.constant 2 : index
    %c3_93 = arith.constant 3 : index
    %c0_94 = arith.constant 0 : index
    %c0_95 = arith.constant 0 : index
    %139 = vector.load %arg3[%c2_92, %c3_93, %c0_94, %c0_95] : memref<4x7x32x32xbf16, #tpu.memory_space<vmem>>, vector<1x1x32x32xbf16>
    %140 = vector.shape_cast %139 : vector<1x1x32x32xbf16> to vector<32x32xbf16>
    %cst_96 = arith.constant dense<0.000000e+00> : vector<64x32xf32>
    %141 = tpu.matmul %138, %140, %cst_96 {dimension_numbers = #tpu.dot_dimension_numbers<[1], [0], [0], [1], [0, 0, 1, 1], [], []>} : vector<64x32xbf16>, vector<32x32xbf16>, vector<64x32xf32> -> vector<64x32xf32>
    %142 = arith.addf %136, %141 : vector<64x32xf32>
    %143 = vector.extract_strided_slice %117 {offsets = [0, 4, 0], sizes = [4, 16, 32], strides = [1, 1, 1]} : vector<4x22x32xbf16> to vector<4x16x32xbf16>
    %144 = vector.shape_cast %143 : vector<4x16x32xbf16> to vector<64x32xbf16>
    %c2_97 = arith.constant 2 : index
    %c4_98 = arith.constant 4 : index
    %c0_99 = arith.constant 0 : index
    %c0_100 = arith.constant 0 : index
    %145 = vector.load %arg3[%c2_97, %c4_98, %c0_99, %c0_100] : memref<4x7x32x32xbf16, #tpu.memory_space<vmem>>, vector<1x1x32x32xbf16>
    %146 = vector.shape_cast %145 : vector<1x1x32x32xbf16> to vector<32x32xbf16>
    %cst_101 = arith.constant dense<0.000000e+00> : vector<64x32xf32>
    %147 = tpu.matmul %144, %146, %cst_101 {dimension_numbers = #tpu.dot_dimension_numbers<[1], [0], [0], [1], [0, 0, 1, 1], [], []>} : vector<64x32xbf16>, vector<32x32xbf16>, vector<64x32xf32> -> vector<64x32xf32>
    %148 = arith.addf %142, %147 : vector<64x32xf32>
    %149 = vector.extract_strided_slice %117 {offsets = [0, 5, 0], sizes = [4, 16, 32], strides = [1, 1, 1]} : vector<4x22x32xbf16> to vector<4x16x32xbf16>
    %150 = vector.shape_cast %149 : vector<4x16x32xbf16> to vector<64x32xbf16>
    %c2_102 = arith.constant 2 : index
    %c5_103 = arith.constant 5 : index
    %c0_104 = arith.constant 0 : index
    %c0_105 = arith.constant 0 : index
    %151 = vector.load %arg3[%c2_102, %c5_103, %c0_104, %c0_105] : memref<4x7x32x32xbf16, #tpu.memory_space<vmem>>, vector<1x1x32x32xbf16>
    %152 = vector.shape_cast %151 : vector<1x1x32x32xbf16> to vector<32x32xbf16>
    %cst_106 = arith.constant dense<0.000000e+00> : vector<64x32xf32>
    %153 = tpu.matmul %150, %152, %cst_106 {dimension_numbers = #tpu.dot_dimension_numbers<[1], [0], [0], [1], [0, 0, 1, 1], [], []>} : vector<64x32xbf16>, vector<32x32xbf16>, vector<64x32xf32> -> vector<64x32xf32>
    %154 = arith.addf %148, %153 : vector<64x32xf32>
    %155 = vector.extract_strided_slice %117 {offsets = [0, 6, 0], sizes = [4, 16, 32], strides = [1, 1, 1]} : vector<4x22x32xbf16> to vector<4x16x32xbf16>
    %156 = vector.shape_cast %155 : vector<4x16x32xbf16> to vector<64x32xbf16>
    %c2_107 = arith.constant 2 : index
    %c6_108 = arith.constant 6 : index
    %c0_109 = arith.constant 0 : index
    %c0_110 = arith.constant 0 : index
    %157 = vector.load %arg3[%c2_107, %c6_108, %c0_109, %c0_110] : memref<4x7x32x32xbf16, #tpu.memory_space<vmem>>, vector<1x1x32x32xbf16>
    %158 = vector.shape_cast %157 : vector<1x1x32x32xbf16> to vector<32x32xbf16>
    %cst_111 = arith.constant dense<0.000000e+00> : vector<64x32xf32>
    %159 = tpu.matmul %156, %158, %cst_111 {dimension_numbers = #tpu.dot_dimension_numbers<[1], [0], [0], [1], [0, 0, 1, 1], [], []>} : vector<64x32xbf16>, vector<32x32xbf16>, vector<64x32xf32> -> vector<64x32xf32>
    %160 = arith.addf %154, %159 : vector<64x32xf32>
    %161 = vector.extract_strided_slice %0 {offsets = [3, 0], sizes = [1, 32], strides = [1, 1]} : vector<6x32xf32> to vector<1x32xf32>
    %162 = vector.broadcast %161 : vector<1x32xf32> to vector<64x32xf32>
    %163 = arith.addf %160, %162 : vector<64x32xf32>
    %cst_112 = arith.constant 0.000000e+00 : f32
    %164 = vector.broadcast %cst_112 : f32 to vector<64x32xf32>
    %165 = arith.maximumf %163, %164 : vector<64x32xf32>
    %166 = arith.truncf %165 : vector<64x32xf32> to vector<64x32xbf16>
    %167 = vector.shape_cast %166 : vector<64x32xbf16> to vector<4x16x32xbf16>
    %168 = tpu.concatenate %11, %167, %11 in 1 : vector<4x3x32xbf16>, vector<4x16x32xbf16>, vector<4x3x32xbf16> -> vector<4x22x32xbf16>
    %cst_113 = arith.constant 0.000000e+00 : f32
    %169 = vector.broadcast %cst_113 : f32 to vector<64x32xf32>
    %170 = vector.extract_strided_slice %168 {offsets = [0, 0, 0], sizes = [4, 16, 32], strides = [1, 1, 1]} : vector<4x22x32xbf16> to vector<4x16x32xbf16>
    %171 = vector.shape_cast %170 : vector<4x16x32xbf16> to vector<64x32xbf16>
    %c3_114 = arith.constant 3 : index
    %c0_115 = arith.constant 0 : index
    %c0_116 = arith.constant 0 : index
    %c0_117 = arith.constant 0 : index
    %172 = vector.load %arg3[%c3_114, %c0_115, %c0_116, %c0_117] : memref<4x7x32x32xbf16, #tpu.memory_space<vmem>>, vector<1x1x32x32xbf16>
    %173 = vector.shape_cast %172 : vector<1x1x32x32xbf16> to vector<32x32xbf16>
    %cst_118 = arith.constant dense<0.000000e+00> : vector<64x32xf32>
    %174 = tpu.matmul %171, %173, %cst_118 {dimension_numbers = #tpu.dot_dimension_numbers<[1], [0], [0], [1], [0, 0, 1, 1], [], []>} : vector<64x32xbf16>, vector<32x32xbf16>, vector<64x32xf32> -> vector<64x32xf32>
    %175 = arith.addf %169, %174 : vector<64x32xf32>
    %176 = vector.extract_strided_slice %168 {offsets = [0, 1, 0], sizes = [4, 16, 32], strides = [1, 1, 1]} : vector<4x22x32xbf16> to vector<4x16x32xbf16>
    %177 = vector.shape_cast %176 : vector<4x16x32xbf16> to vector<64x32xbf16>
    %c3_119 = arith.constant 3 : index
    %c1_120 = arith.constant 1 : index
    %c0_121 = arith.constant 0 : index
    %c0_122 = arith.constant 0 : index
    %178 = vector.load %arg3[%c3_119, %c1_120, %c0_121, %c0_122] : memref<4x7x32x32xbf16, #tpu.memory_space<vmem>>, vector<1x1x32x32xbf16>
    %179 = vector.shape_cast %178 : vector<1x1x32x32xbf16> to vector<32x32xbf16>
    %cst_123 = arith.constant dense<0.000000e+00> : vector<64x32xf32>
    %180 = tpu.matmul %177, %179, %cst_123 {dimension_numbers = #tpu.dot_dimension_numbers<[1], [0], [0], [1], [0, 0, 1, 1], [], []>} : vector<64x32xbf16>, vector<32x32xbf16>, vector<64x32xf32> -> vector<64x32xf32>
    %181 = arith.addf %175, %180 : vector<64x32xf32>
    %182 = vector.extract_strided_slice %168 {offsets = [0, 2, 0], sizes = [4, 16, 32], strides = [1, 1, 1]} : vector<4x22x32xbf16> to vector<4x16x32xbf16>
    %183 = vector.shape_cast %182 : vector<4x16x32xbf16> to vector<64x32xbf16>
    %c3_124 = arith.constant 3 : index
    %c2_125 = arith.constant 2 : index
    %c0_126 = arith.constant 0 : index
    %c0_127 = arith.constant 0 : index
    %184 = vector.load %arg3[%c3_124, %c2_125, %c0_126, %c0_127] : memref<4x7x32x32xbf16, #tpu.memory_space<vmem>>, vector<1x1x32x32xbf16>
    %185 = vector.shape_cast %184 : vector<1x1x32x32xbf16> to vector<32x32xbf16>
    %cst_128 = arith.constant dense<0.000000e+00> : vector<64x32xf32>
    %186 = tpu.matmul %183, %185, %cst_128 {dimension_numbers = #tpu.dot_dimension_numbers<[1], [0], [0], [1], [0, 0, 1, 1], [], []>} : vector<64x32xbf16>, vector<32x32xbf16>, vector<64x32xf32> -> vector<64x32xf32>
    %187 = arith.addf %181, %186 : vector<64x32xf32>
    %188 = vector.extract_strided_slice %168 {offsets = [0, 3, 0], sizes = [4, 16, 32], strides = [1, 1, 1]} : vector<4x22x32xbf16> to vector<4x16x32xbf16>
    %189 = vector.shape_cast %188 : vector<4x16x32xbf16> to vector<64x32xbf16>
    %c3_129 = arith.constant 3 : index
    %c3_130 = arith.constant 3 : index
    %c0_131 = arith.constant 0 : index
    %c0_132 = arith.constant 0 : index
    %190 = vector.load %arg3[%c3_129, %c3_130, %c0_131, %c0_132] : memref<4x7x32x32xbf16, #tpu.memory_space<vmem>>, vector<1x1x32x32xbf16>
    %191 = vector.shape_cast %190 : vector<1x1x32x32xbf16> to vector<32x32xbf16>
    %cst_133 = arith.constant dense<0.000000e+00> : vector<64x32xf32>
    %192 = tpu.matmul %189, %191, %cst_133 {dimension_numbers = #tpu.dot_dimension_numbers<[1], [0], [0], [1], [0, 0, 1, 1], [], []>} : vector<64x32xbf16>, vector<32x32xbf16>, vector<64x32xf32> -> vector<64x32xf32>
    %193 = arith.addf %187, %192 : vector<64x32xf32>
    %194 = vector.extract_strided_slice %168 {offsets = [0, 4, 0], sizes = [4, 16, 32], strides = [1, 1, 1]} : vector<4x22x32xbf16> to vector<4x16x32xbf16>
    %195 = vector.shape_cast %194 : vector<4x16x32xbf16> to vector<64x32xbf16>
    %c3_134 = arith.constant 3 : index
    %c4_135 = arith.constant 4 : index
    %c0_136 = arith.constant 0 : index
    %c0_137 = arith.constant 0 : index
    %196 = vector.load %arg3[%c3_134, %c4_135, %c0_136, %c0_137] : memref<4x7x32x32xbf16, #tpu.memory_space<vmem>>, vector<1x1x32x32xbf16>
    %197 = vector.shape_cast %196 : vector<1x1x32x32xbf16> to vector<32x32xbf16>
    %cst_138 = arith.constant dense<0.000000e+00> : vector<64x32xf32>
    %198 = tpu.matmul %195, %197, %cst_138 {dimension_numbers = #tpu.dot_dimension_numbers<[1], [0], [0], [1], [0, 0, 1, 1], [], []>} : vector<64x32xbf16>, vector<32x32xbf16>, vector<64x32xf32> -> vector<64x32xf32>
    %199 = arith.addf %193, %198 : vector<64x32xf32>
    %200 = vector.extract_strided_slice %168 {offsets = [0, 5, 0], sizes = [4, 16, 32], strides = [1, 1, 1]} : vector<4x22x32xbf16> to vector<4x16x32xbf16>
    %201 = vector.shape_cast %200 : vector<4x16x32xbf16> to vector<64x32xbf16>
    %c3_139 = arith.constant 3 : index
    %c5_140 = arith.constant 5 : index
    %c0_141 = arith.constant 0 : index
    %c0_142 = arith.constant 0 : index
    %202 = vector.load %arg3[%c3_139, %c5_140, %c0_141, %c0_142] : memref<4x7x32x32xbf16, #tpu.memory_space<vmem>>, vector<1x1x32x32xbf16>
    %203 = vector.shape_cast %202 : vector<1x1x32x32xbf16> to vector<32x32xbf16>
    %cst_143 = arith.constant dense<0.000000e+00> : vector<64x32xf32>
    %204 = tpu.matmul %201, %203, %cst_143 {dimension_numbers = #tpu.dot_dimension_numbers<[1], [0], [0], [1], [0, 0, 1, 1], [], []>} : vector<64x32xbf16>, vector<32x32xbf16>, vector<64x32xf32> -> vector<64x32xf32>
    %205 = arith.addf %199, %204 : vector<64x32xf32>
    %206 = vector.extract_strided_slice %168 {offsets = [0, 6, 0], sizes = [4, 16, 32], strides = [1, 1, 1]} : vector<4x22x32xbf16> to vector<4x16x32xbf16>
    %207 = vector.shape_cast %206 : vector<4x16x32xbf16> to vector<64x32xbf16>
    %c3_144 = arith.constant 3 : index
    %c6_145 = arith.constant 6 : index
    %c0_146 = arith.constant 0 : index
    %c0_147 = arith.constant 0 : index
    %208 = vector.load %arg3[%c3_144, %c6_145, %c0_146, %c0_147] : memref<4x7x32x32xbf16, #tpu.memory_space<vmem>>, vector<1x1x32x32xbf16>
    %209 = vector.shape_cast %208 : vector<1x1x32x32xbf16> to vector<32x32xbf16>
    %cst_148 = arith.constant dense<0.000000e+00> : vector<64x32xf32>
    %210 = tpu.matmul %207, %209, %cst_148 {dimension_numbers = #tpu.dot_dimension_numbers<[1], [0], [0], [1], [0, 0, 1, 1], [], []>} : vector<64x32xbf16>, vector<32x32xbf16>, vector<64x32xf32> -> vector<64x32xf32>
    %211 = arith.addf %205, %210 : vector<64x32xf32>
    %212 = vector.extract_strided_slice %0 {offsets = [4, 0], sizes = [1, 32], strides = [1, 1]} : vector<6x32xf32> to vector<1x32xf32>
    %213 = vector.broadcast %212 : vector<1x32xf32> to vector<64x32xf32>
    %214 = arith.addf %211, %213 : vector<64x32xf32>
    %cst_149 = arith.constant 0.000000e+00 : f32
    %215 = vector.broadcast %cst_149 : f32 to vector<64x32xf32>
    %216 = arith.maximumf %214, %215 : vector<64x32xf32>
    %217 = arith.extf %115 : vector<64x32xbf16> to vector<64x32xf32>
    %218 = arith.addf %217, %216 : vector<64x32xf32>
    %219 = arith.truncf %218 : vector<64x32xf32> to vector<64x32xbf16>
    %220 = vector.shape_cast %219 : vector<64x32xbf16> to vector<4x16x32xbf16>
    %221 = vector.extract_strided_slice %220 {offsets = [0, 0, 0], sizes = [4, 1, 32], strides = [1, 1, 1]} : vector<4x16x32xbf16> to vector<4x1x32xbf16>
    %222 = vector.extract_strided_slice %220 {offsets = [0, 1, 0], sizes = [4, 1, 32], strides = [1, 1, 1]} : vector<4x16x32xbf16> to vector<4x1x32xbf16>
    %223 = vector.extract_strided_slice %220 {offsets = [0, 2, 0], sizes = [4, 1, 32], strides = [1, 1, 1]} : vector<4x16x32xbf16> to vector<4x1x32xbf16>
    %224 = vector.extract_strided_slice %220 {offsets = [0, 3, 0], sizes = [4, 1, 32], strides = [1, 1, 1]} : vector<4x16x32xbf16> to vector<4x1x32xbf16>
    %225 = vector.extract_strided_slice %220 {offsets = [0, 4, 0], sizes = [4, 1, 32], strides = [1, 1, 1]} : vector<4x16x32xbf16> to vector<4x1x32xbf16>
    %226 = vector.extract_strided_slice %220 {offsets = [0, 5, 0], sizes = [4, 1, 32], strides = [1, 1, 1]} : vector<4x16x32xbf16> to vector<4x1x32xbf16>
    %227 = vector.extract_strided_slice %220 {offsets = [0, 6, 0], sizes = [4, 1, 32], strides = [1, 1, 1]} : vector<4x16x32xbf16> to vector<4x1x32xbf16>
    %228 = vector.extract_strided_slice %220 {offsets = [0, 7, 0], sizes = [4, 1, 32], strides = [1, 1, 1]} : vector<4x16x32xbf16> to vector<4x1x32xbf16>
    %229 = vector.extract_strided_slice %220 {offsets = [0, 8, 0], sizes = [4, 1, 32], strides = [1, 1, 1]} : vector<4x16x32xbf16> to vector<4x1x32xbf16>
    %230 = vector.extract_strided_slice %220 {offsets = [0, 9, 0], sizes = [4, 1, 32], strides = [1, 1, 1]} : vector<4x16x32xbf16> to vector<4x1x32xbf16>
    %231 = vector.extract_strided_slice %220 {offsets = [0, 10, 0], sizes = [4, 1, 32], strides = [1, 1, 1]} : vector<4x16x32xbf16> to vector<4x1x32xbf16>
    %232 = vector.extract_strided_slice %220 {offsets = [0, 11, 0], sizes = [4, 1, 32], strides = [1, 1, 1]} : vector<4x16x32xbf16> to vector<4x1x32xbf16>
    %233 = vector.extract_strided_slice %220 {offsets = [0, 12, 0], sizes = [4, 1, 32], strides = [1, 1, 1]} : vector<4x16x32xbf16> to vector<4x1x32xbf16>
    %234 = vector.extract_strided_slice %220 {offsets = [0, 13, 0], sizes = [4, 1, 32], strides = [1, 1, 1]} : vector<4x16x32xbf16> to vector<4x1x32xbf16>
    %235 = vector.extract_strided_slice %220 {offsets = [0, 14, 0], sizes = [4, 1, 32], strides = [1, 1, 1]} : vector<4x16x32xbf16> to vector<4x1x32xbf16>
    %236 = vector.extract_strided_slice %220 {offsets = [0, 15, 0], sizes = [4, 1, 32], strides = [1, 1, 1]} : vector<4x16x32xbf16> to vector<4x1x32xbf16>
    %237 = tpu.concatenate %221, %222, %223, %224, %225, %226, %227, %228, %229, %230, %231, %232, %233, %234, %235, %236 in 2 : vector<4x1x32xbf16>, vector<4x1x32xbf16>, vector<4x1x32xbf16>, vector<4x1x32xbf16>, vector<4x1x32xbf16>, vector<4x1x32xbf16>, vector<4x1x32xbf16>, vector<4x1x32xbf16>, vector<4x1x32xbf16>, vector<4x1x32xbf16>, vector<4x1x32xbf16>, vector<4x1x32xbf16>, vector<4x1x32xbf16>, vector<4x1x32xbf16>, vector<4x1x32xbf16>, vector<4x1x32xbf16> -> vector<4x1x512xbf16>
    %238 = vector.shape_cast %237 : vector<4x1x512xbf16> to vector<4x512xbf16>
    %c0_150 = arith.constant 0 : index
    %c0_151 = arith.constant 0 : index
    %239 = vector.load %arg4[%c0_150, %c0_151] : memref<512x8xbf16, #tpu.memory_space<vmem>>, vector<512x8xbf16>
    %cst_152 = arith.constant dense<0.000000e+00> : vector<4x8xf32>
    %240 = tpu.matmul %238, %239, %cst_152 {dimension_numbers = #tpu.dot_dimension_numbers<[1], [0], [0], [1], [0, 0, 1, 1], [], []>} : vector<4x512xbf16>, vector<512x8xbf16>, vector<4x8xf32> -> vector<4x8xf32>
    %241 = vector.extract_strided_slice %0 {offsets = [5, 0], sizes = [1, 8], strides = [1, 1]} : vector<6x32xf32> to vector<1x8xf32>
    %242 = vector.broadcast %241 : vector<1x8xf32> to vector<4x8xf32>
    %243 = arith.addf %240, %242 : vector<4x8xf32>
    %c0_153 = arith.constant 0 : index
    %c0_154 = arith.constant 0 : index
    %c0_155 = arith.constant 0 : index
    %244 = vector.load %arg6[%c0_153, %c0_154, %c0_155] : memref<1x4x8xf32, #tpu.memory_space<vmem>>, vector<1x4x8xf32>
    %245 = vector.shape_cast %244 : vector<1x4x8xf32> to vector<4x8xf32>
    %246 = vector.shape_cast %243 : vector<4x8xf32> to vector<1x4x8xf32>
    tpu.vector_store %arg6[%c0_153, %c0_154, %c0_155], %246 {strides = array<i32>} : memref<1x4x8xf32, #tpu.memory_space<vmem>>, vector<1x4x8xf32>,
    return
  }
  func.func @transform_0(%arg0: i32) -> (i32, i32, i32) {
    %c0_i32 = arith.constant 0 : i32
    %c0_i32_0 = arith.constant 0 : i32
    %c0_i32_1 = arith.constant 0 : i32
    return %arg0, %c0_i32, %c0_i32_0 : i32, i32, i32
  }
  func.func @transform_1(%arg0: i32) -> (i32, i32) {
    %c0_i32 = arith.constant 0 : i32
    %c0_i32_0 = arith.constant 0 : i32
    %c0_i32_1 = arith.constant 0 : i32
    return %c0_i32, %c0_i32_0 : i32, i32
  }
  func.func @transform_2(%arg0: i32) -> (i32, i32, i32, i32) {
    %c0_i32 = arith.constant 0 : i32
    %c0_i32_0 = arith.constant 0 : i32
    %c0_i32_1 = arith.constant 0 : i32
    %c0_i32_2 = arith.constant 0 : i32
    %c0_i32_3 = arith.constant 0 : i32
    return %c0_i32, %c0_i32_0, %c0_i32_1, %c0_i32_2 : i32, i32, i32, i32
  }
  func.func @transform_3(%arg0: i32) -> (i32, i32) {
    %c0_i32 = arith.constant 0 : i32
    %c0_i32_0 = arith.constant 0 : i32
    %c0_i32_1 = arith.constant 0 : i32
    return %c0_i32, %c0_i32_0 : i32, i32
  }
  func.func @transform_4(%arg0: i32) -> (i32, i32) {
    %c0_i32 = arith.constant 0 : i32
    %c0_i32_0 = arith.constant 0 : i32
    %c0_i32_1 = arith.constant 0 : i32
    return %c0_i32, %c0_i32_0 : i32, i32
  }
  func.func @transform_5(%arg0: i32) -> (i32, i32, i32) {
    %c0_i32 = arith.constant 0 : i32
    %c0_i32_0 = arith.constant 0 : i32
    %c0_i32_1 = arith.constant 0 : i32
    return %arg0, %c0_i32, %c0_i32_0 : i32, i32, i32
  }
}

</mosaic_0001>

<llo_original>
// kernel: tpu_custom_call.1
$region0: #{tpu_custom_call.1}
  #allocation0 [shape = 'u32[]', space=smem, size = 0x4, offset = 0x4, fixed_abs, tag = 'smem constant byte address 0x4 - core index']
  #allocation1 [shape = 'u32[72,128]{1,0:T(1,128)}', space=vmem, size = 0x9000, scoped, tag = 'internal scratch']
  %s0 = inlined_call_operand.vmem [shape: bf16[2,64,36], index: 0, kind: input, shape index: {}]
  %s1 = inlined_call_operand.vmem [shape: bf16[36,32], index: 1, kind: input, shape index: {}]
  %s2 = inlined_call_operand.hbm [shape: bf16[4,7,32,32], index: 2, kind: input, shape index: {}]
  %s3 = inlined_call_operand.vmem [shape: bf16[512,8], index: 3, kind: input, shape index: {}]
  %s4 = inlined_call_operand.vmem [shape: f32[6,32], index: 4, kind: input, shape index: {}]
  %s5 = inlined_call_operand.hbm [shape: f32[2,4,8], index: 5, kind: output, shape index: {}]
  %s6 = sld [smem:[#allocation0]]
  $region57: #{tpu_custom_call.1} parent=0
    _
  %s8 = ssub.s32 1, %s6
  %s9 = scalar_select 0, %s8, %s6
  $region1: #{tpu_custom_call.1} parent=0
    #allocation2 [shape = 'u8[229376]{0}', space=vmem, size = 0x38000, scoped, tag = 'input window, operand 2, single buffered']
    #allocation3 [shape = 's32[2]{0}', space=sflag, size = 0x8, scoped, tag = 'scoped memory for tpu_custom_call.1']
    #allocation4 [shape = 's32[2]{0}', space=sflag, size = 0x8, scoped, tag = 'scoped memory for tpu_custom_call.1']
    #allocation5 [shape = 'u8[4096]{0}', space=vmem, size = 0x1000, scoped, tag = 'output window, operand 0']
    %10 = vsyncpa [#allocation3], 0
    %11 = vsyncpa [#allocation4], 0
    %s12 = scalar_lea.sflag [#allocation4], 1
    %13 = vsyncpa %s12, 0
    loop: start=0, step=1, limit=4
    $region2: #{tpu_custom_call.1} parent=1 // loop_pre_header
      _
    $region3: #{tpu_custom_call.1} parent=1 // loop_header
      %s15 = sphi 0, %s19
      %p16 = scmp.ge.s32.totalorder %s15, 4
      %s25 = sphi 0, %s27
      %s28 = sphi 0, %s25
      %s29 = sphi 0, %s28
      %s45 = sphi 0, %s29
      %s49 = sphi 0, %s49
      %s51 = sphi 0, %s49
      %s52 = sphi 0, %s51
      %s66 = sphi 0, %s52
      %s70 = sphi 0, %s70
      %s72 = sphi 0, %s70
      %s73 = sphi 0, %s72
      %s87 = sphi 0, %s73
      %s91 = sphi 0, %s91
      %s93 = sphi 0, %s91
      %s94 = sphi 0, %s93
      %s108 = sphi 0, %s94
      %s112 = sphi 0, %s112
      %s114 = sphi 0, %s112
      %s115 = sphi 0, %s114
      %s129 = sphi 0, %s115
      %s135 = sphi 0, %s137
      %s138 = sphi 0, %s135
      %s139 = sphi 0, %s138
      %s155 = sphi 0, %s139
    $region4: #{tpu_custom_call.1} parent=1 // loop_header_branch
      %18 = sbr.rel (%p16) target = $region8
    $region5: #{tpu_custom_call.1} parent=1 // loop_body
      %s20 = ssub.s32 %s15, 1
      %s21 = ssub.s32 %s15, 2
      %s22 = sadd.s32 %s15, 1
      %s23 = ssub.s32 %s15, %s22
      %p24 = scmp.eq.s32.totalorder %s23, 0
      %s26 = sadd.s32 %s25, 1
      %s27 = scalar_select %p24, %s25, %s26
      %p30 = pneg %p24
      %p31 = scmp.eq.s32.totalorder %s15, 1
      %p32 = por %p30, %p31
      %p33 = scmp.ne.s32.totalorder %s25, %s28
      %p34 = scmp.eq.s32.totalorder %s15, 0
      %p35 = por %p33, %p34
      %p36 = scmp.ne.s32.totalorder %s25, %s28
      %p37 = scmp.eq.s32.totalorder %s20, 1
      %p38 = por %p36, %p37
      %p39 = scmp.ne.s32.totalorder %s28, %s29
      %p40 = scmp.eq.s32.totalorder %s20, 0
      %p41 = por %p39, %p40
      %p42 = scmp.ne.s32.totalorder %s28, %s29
      %p43 = scmp.eq.s32.totalorder %s21, 1
      %p44 = por %p42, %p43
      %p46 = scmp.ne.s32.totalorder %s29, %s45
      %p47 = scmp.eq.s32.totalorder %s21, 0
      %p48 = por %p46, %p47
      %s50 = sadd.s32 %s49, 1
      %p53 = scmp.eq.s32.totalorder %s15, 1
      %p54 = scmp.ne.s32.totalorder %s49, %s51
      %p55 = scmp.eq.s32.totalorder %s15, 0
      %p56 = por %p54, %p55
      %p57 = scmp.ne.s32.totalorder %s49, %s51
      %p58 = scmp.eq.s32.totalorder %s20, 1
      %p59 = por %p57, %p58
      %p60 = scmp.ne.s32.totalorder %s51, %s52
      %p61 = scmp.eq.s32.totalorder %s20, 0
      %p62 = por %p60, %p61
      %p63 = scmp.ne.s32.totalorder %s51, %s52
      %p64 = scmp.eq.s32.totalorder %s21, 1
      %p65 = por %p63, %p64
      %p67 = scmp.ne.s32.totalorder %s52, %s66
      %p68 = scmp.eq.s32.totalorder %s21, 0
      %p69 = por %p67, %p68
      %s71 = sadd.s32 %s70, 1
      %p74 = scmp.eq.s32.totalorder %s15, 1
      %p75 = scmp.ne.s32.totalorder %s70, %s72
      %p76 = scmp.eq.s32.totalorder %s15, 0
      %p77 = por %p75, %p76
      %p78 = scmp.ne.s32.totalorder %s70, %s72
      %p79 = scmp.eq.s32.totalorder %s20, 1
      %p80 = por %p78, %p79
      %p81 = scmp.ne.s32.totalorder %s72, %s73
      %p82 = scmp.eq.s32.totalorder %s20, 0
      %p83 = por %p81, %p82
      %p84 = scmp.ne.s32.totalorder %s72, %s73
      %p85 = scmp.eq.s32.totalorder %s21, 1
      %p86 = por %p84, %p85
      %p88 = scmp.ne.s32.totalorder %s73, %s87
      %p89 = scmp.eq.s32.totalorder %s21, 0
      %p90 = por %p88, %p89
      %s92 = sadd.s32 %s91, 1
      %p95 = scmp.eq.s32.totalorder %s15, 1
      %p96 = scmp.ne.s32.totalorder %s91, %s93
      %p97 = scmp.eq.s32.totalorder %s15, 0
      %p98 = por %p96, %p97
      %p99 = scmp.ne.s32.totalorder %s91, %s93
      %p100 = scmp.eq.s32.totalorder %s20, 1
      %p101 = por %p99, %p100
      %p102 = scmp.ne.s32.totalorder %s93, %s94
      %p103 = scmp.eq.s32.totalorder %s20, 0
      %p104 = por %p102, %p103
      %p105 = scmp.ne.s32.totalorder %s93, %s94
      %p106 = scmp.eq.s32.totalorder %s21, 1
      %p107 = por %p105, %p106
      %p109 = scmp.ne.s32.totalorder %s94, %s108
      %p110 = scmp.eq.s32.totalorder %s21, 0
      %p111 = por %p109, %p110
      %s113 = sadd.s32 %s112, 1
      %p116 = scmp.eq.s32.totalorder %s15, 1
      %p117 = scmp.ne.s32.totalorder %s112, %s114
      %p118 = scmp.eq.s32.totalorder %s15, 0
      %p119 = por %p117, %p118
      %p120 = scmp.ne.s32.totalorder %s112, %s114
      %p121 = scmp.eq.s32.totalorder %s20, 1
      %p122 = por %p120, %p121
      %p123 = scmp.ne.s32.totalorder %s114, %s115
      %p124 = scmp.eq.s32.totalorder %s20, 0
      %p125 = por %p123, %p124
      %p126 = scmp.ne.s32.totalorder %s114, %s115
      %p127 = scmp.eq.s32.totalorder %s21, 1
      %p128 = por %p126, %p127
      %p130 = scmp.ne.s32.totalorder %s115, %s129
      %p131 = scmp.eq.s32.totalorder %s21, 0
      %p132 = por %p130, %p131
      %s133 = ssub.s32 %s15, %s22
      %p134 = scmp.eq.s32.totalorder %s133, 0
      %s136 = sadd.s32 %s135, 1
      %s137 = scalar_select %p134, %s135, %s136
      %p140 = pneg %p134
      %p141 = scmp.eq.s32.totalorder %s15, 1
      %p142 = por %p140, %p141
      %p143 = scmp.ne.s32.totalorder %s135, %s138
      %p144 = scmp.eq.s32.totalorder %s15, 0
      %p145 = por %p143, %p144
      %p146 = scmp.ne.s32.totalorder %s135, %s138
      %p147 = scmp.eq.s32.totalorder %s20, 1
      %p148 = por %p146, %p147
      %p149 = scmp.ne.s32.totalorder %s138, %s139
      %p150 = scmp.eq.s32.totalorder %s20, 0
      %p151 = por %p149, %p150
      %p152 = scmp.ne.s32.totalorder %s138, %s139
      %p153 = scmp.eq.s32.totalorder %s21, 1
      %p154 = por %p152, %p153
      %p156 = scmp.ne.s32.totalorder %s139, %s155
      %p157 = scmp.eq.s32.totalorder %s21, 0
      %p158 = por %p156, %p157
      %p159 = scmp.le.s32.totalorder 1, %s15
      %p160 = scmp.lt.s32.totalorder %s15, 3
      %p161 = pnand %p159, %p160
      %p162 = pneg %p161
      // Predicated region
      $region9: #{tpu_custom_call.1} parent=5 // pred_check
        _
      $region10: #{tpu_custom_call.1} parent=5 // pred_check_branch
        %164 = sbr.rel (%p161) target = $region12
      $region11: #{tpu_custom_call.1} parent=5 // pred_region
        %s165 = ssub.s32 %s15, 1
        // Predicated region
        $region13: #{tpu_custom_call.1} parent=11 // pred_check
          %p166 = pneg %p62
        $region14: #{tpu_custom_call.1} parent=11 // pred_check_branch
          %168 = sbr.rel (%p166) target = $region16
        $region15: #{tpu_custom_call.1} parent=11 // pred_region
          _
        $region16: #{tpu_custom_call.1} parent=11 // pred_fallthru
          _
        // Predicated region
        $region17: #{tpu_custom_call.1} parent=11 // pred_check
          %p169 = pneg %p83
        $region18: #{tpu_custom_call.1} parent=11 // pred_check_branch
          %171 = sbr.rel (%p169) target = $region20
        $region19: #{tpu_custom_call.1} parent=11 // pred_region
          %173 = vsyncadd [#allocation3], 0
          %s174 = sshll.u32 %s2, 4
          %s175 = int_to_ptr.hbm [resolvable:$true] %s174
          %s176 = sshll.u32 [#allocation2], 4
          %s177 = int_to_ptr.vmem [resolvable:$true] %s176
          %182 = dma.hbm_to_vmem [thread:$0]  %s175, 7168, %s177, [#allocation3], 64, 64, 4
        $region20: #{tpu_custom_call.1} parent=11 // pred_fallthru
          _
        // Predicated region
        $region21: #{tpu_custom_call.1} parent=11 // pred_check
          %p183 = pneg %p104
        $region22: #{tpu_custom_call.1} parent=11 // pred_check_branch
          %185 = sbr.rel (%p183) target = $region24
        $region23: #{tpu_custom_call.1} parent=11 // pred_region
          _
        $region24: #{tpu_custom_call.1} parent=11 // pred_fallthru
          _
        // Predicated region
        $region25: #{tpu_custom_call.1} parent=11 // pred_check
          %p186 = pneg %p125
        $region26: #{tpu_custom_call.1} parent=11 // pred_check_branch
          %188 = sbr.rel (%p186) target = $region28
        $region27: #{tpu_custom_call.1} parent=11 // pred_region
          _
        $region28: #{tpu_custom_call.1} parent=11 // pred_fallthru
          _
      $region12: #{tpu_custom_call.1} parent=5 // pred_fallthru
        _
      %p189 = scmp.lt.s32.totalorder %s15, 2
      // Predicated region
      $region29: #{tpu_custom_call.1} parent=5 // pred_check
        %p190 = pneg %p189
      $region30: #{tpu_custom_call.1} parent=5 // pred_check_branch
        %192 = sbr.rel (%p190) target = $region32
      $region31: #{tpu_custom_call.1} parent=5 // pred_region
        // Predicated region
        $region33: #{tpu_custom_call.1} parent=31 // pred_check
          %p193 = pneg %p35
        $region34: #{tpu_custom_call.1} parent=31 // pred_check_branch
          %195 = sbr.rel (%p193) target = $region36
        $region35: #{tpu_custom_call.1} parent=31 // pred_region
          %p196 = scmp.lt.s32.totalorder %s15, 1
          %s197 = scalar_select %p196, %s15, 1
          %s198 = smul.addr %s197, 8
          %s199 = smul.addr %s198, 4
          %s200 = scalar_lea.vmem %s0, %s199
        $region36: #{tpu_custom_call.1} parent=31 // pred_fallthru
          _
      $region32: #{tpu_custom_call.1} parent=5 // pred_fallthru
        _
      %p201 = scmp.le.s32.totalorder 1, %s15
      %p202 = scmp.lt.s32.totalorder %s15, 3
      %p203 = pnand %p201, %p202
      %p204 = pneg %p203
      // Predicated region
      $region37: #{tpu_custom_call.1} parent=5 // pred_check
        _
      $region38: #{tpu_custom_call.1} parent=5 // pred_check_branch
        %206 = sbr.rel (%p203) target = $region40
      $region39: #{tpu_custom_call.1} parent=5 // pred_region
        %s207 = ssub.s32 %s15, 1
        // Predicated region
        $region41: #{tpu_custom_call.1} parent=39 // pred_check
          %p208 = pneg %p83
        $region42: #{tpu_custom_call.1} parent=39 // pred_check_branch
          %210 = sbr.rel (%p208) target = $region44
        $region43: #{tpu_custom_call.1} parent=39 // pred_region
          %212 = dma.done [#allocation3], 7168
        $region44: #{tpu_custom_call.1} parent=39 // pred_fallthru
          _
        %p213 = scmp.lt.s32.totalorder %s20, 1
        %s214 = scalar_select %p213, %s20, 1
        %s215 = smul.addr %s214, 8
        %s216 = smul.addr %s215, 4
        %s217 = scalar_lea.vmem %s0, %s216
        %p218 = pneg %p41
        %p219 = pneg %p38
        %p220 = pneg %p62
        %p221 = pneg %p59
        %p222 = pneg %p83
        %p223 = pneg %p80
        %p224 = pneg %p104
        %p225 = pneg %p101
        %p226 = pneg %p125
        %p227 = pneg %p122
        %p228 = pneg %p151
        %p229 = pneg %p148
        %s230 = sand.u32 %s138, 1
        %s231 = scalar_lea.sflag [#allocation4], %s230
        %s232 = sand.u32 %s138, 1
        %s233 = smul.addr %s232, 4
        %s234 = scalar_lea.vmem [#allocation5], %s233
        %p235 = scmp.lt.s32.totalorder %s20, 1
        %s236 = scalar_select %p235, %s20, 1
        %s237 = smul.addr %s236, 8
        %s238 = smul.addr %s237, 4
        %s239 = scalar_lea.vmem %s0, %s238
        %v241 = vld [vmem:[%s4] sm:$0x3f]
        %v242 = vld [vmem:[%s239] sm:$0xf]
        %v243 = vld [vmem:[%s239 + $0x4] sm:$0xf]
        %v244 = vld [vmem:[%s239 + $0x8] sm:$0xf]
        %v245 = vld [vmem:[%s239 + $0xc] sm:$0xf]
        %v246 = vld [vmem:[%s239 + $0x10] sm:$0xf]
        %v247 = vld [vmem:[%s239 + $0x14] sm:$0xf]
        %v248 = vld [vmem:[%s239 + $0x18] sm:$0xf]
        %v249 = vld [vmem:[%s239 + $0x1c] sm:$0xf]
        %v250 = vld [vmem:[%s1] sm:$0xf]
        %v251 = vld [vmem:[%s1 + $0x4] sm:$0xf]
        %v252 = vld [vmem:[%s1 + $0x8] sm:$0xf]
        %v253 = vld [vmem:[%s1 + $0xc] sm:$0xf]
        %v254 = vld [vmem:[%s1 + $0x10] sm:$0x3]
        %v255 = vperm.slane %v241, 0
        %v264 = vunpack.c.l.b16 %v242
        %v265 = vunpack.c.l.b16 %v243
        %v266 = vunpack.c.l.b16 %v244
        %v267 = vunpack.c.l.b16 %v245
        %v268 = vunpack.c.l.b16 %v246
        %v269 = vunpack.c.l.b16 %v247
        %v270 = vunpack.c.l.b16 %v248
        %v271 = vunpack.c.l.b16 %v249
        %v272 = vpack.c.b16 %v265, %v264
        %v273 = vpack.c.b16 %v267, %v266
        %v274 = vpack.c.b16 %v269, %v268
        %v275 = vpack.c.b16 %v271, %v270
        %v281 = vunpack.c.l.b16 %v250
        %v282 = vunpack.c.l.b16 %v251
        %v283 = vunpack.c.l.b16 %v252
        %v284 = vunpack.c.l.b16 %v253
        %v285 = vunpack.c.l.b16 %v254
        %v286 = vpack.c.b16 %v282, %v281
        %v287 = vpack.c.b16 %v284, %v283
        %v288 = vpack.c.b16 %v285, %v285
        %vm291 = vcmask 293888
        %v293 = vsel %vm291, %v272, 0
        %v296 = vsel %vm291, %v273, 0
        %v299 = vsel %vm291, %v274, 0
        %v302 = vsel %vm291, %v275, 0
        %vm304 = vcmask 1041408
        %v306 = vsel %vm304, %v288, 0
        %308 = vmatpush.bf16.msra.mxu0 0
        %309 = vmatpush.bf16.msra.mxu0 0
        %310 = vmatpush.bf16.msra.mxu0 0
        %311 = vmatpush.bf16.msra.mxu0 0
        %312 = vmatpush.bf16.msra.mxu0 0
        %313 = vmatpush.bf16.msra.mxu0 %v306
        %314 = vmatpush.bf16.msra.mxu0 %v287
        %315 = vmatpush.bf16.msra.mxu0 %v286
        %316 = vmatmul.bf16.gmra.mxu0 %v293
        %v317 = vpop.f32.mrf.mxu0
        %v318 = vadd.f32 %v255, %v317
        %v319 = vpop.f32.mrf.mxu0
        %v320 = vadd.f32 %v255, %v319
        %321 = vmatmul.bf16.gmra.mxu0 %v296
        %v322 = vpop.f32.mrf.mxu0
        %v323 = vadd.f32 %v255, %v322
        %v324 = vpop.f32.mrf.mxu0
        %v325 = vadd.f32 %v255, %v324
        %326 = vmatmul.bf16.gmra.mxu0 %v299
        %v327 = vpop.f32.mrf.mxu0
        %v328 = vadd.f32 %v255, %v327
        %v329 = vpop.f32.mrf.mxu0
        %v330 = vadd.f32 %v255, %v329
        %331 = vmatmul.bf16.gmra.mxu0 %v302
        %v332 = vpop.f32.mrf.mxu0
        %v333 = vadd.f32 %v255, %v332
        %v334 = vpop.f32.mrf.mxu0
        %v335 = vadd.f32 %v255, %v334
        %336 = vdwg.mxu0
        %v337 = vmax.f32 %v318, 0.0
        %v338 = vmax.f32 %v320, 0.0
        %v339 = vmax.f32 %v323, 0.0
        %v340 = vmax.f32 %v325, 0.0
        %v341 = vmax.f32 %v328, 0.0
        %v342 = vmax.f32 %v330, 0.0
        %v343 = vmax.f32 %v333, 0.0
        %v344 = vmax.f32 %v335, 0.0
        %v345 = vpack.c.bf16 %v337, %v337
        %v346 = vpack.c.bf16 %v338, %v338
        %v347 = vpack.c.bf16 %v339, %v339
        %v348 = vpack.c.bf16 %v340, %v340
        %v349 = vpack.c.bf16 %v341, %v341
        %v350 = vpack.c.bf16 %v342, %v342
        %v351 = vpack.c.bf16 %v343, %v343
        %v352 = vpack.c.bf16 %v344, %v344
        %v361 = vunpack.c.l.b16 %v345
        %v362 = vunpack.c.l.b16 %v346
        %v363 = vunpack.c.l.b16 %v347
        %v364 = vunpack.c.l.b16 %v348
        %v365 = vunpack.c.l.b16 %v349
        %v366 = vunpack.c.l.b16 %v350
        %v367 = vunpack.c.l.b16 %v351
        %v368 = vunpack.c.l.b16 %v352
        %v369 = vpack.c.b16 %v362, %v361
        %v370 = vpack.c.b16 %v364, %v363
        %v371 = vpack.c.b16 %v366, %v365
        %v372 = vpack.c.b16 %v368, %v367
        %v374 = vshrl.u32 %v369, 16
        %v376 = vrot.slane %v374, 6
        %v377 = vshll.u32 %v369, 16
        %v379 = vrot.slane %v377, 7
        %v380 = vor.u32 %v376, %v379
        %v382 = vshrl.u32 %v370, 16
        %v384 = vrot.slane %v382, 6
        %v385 = vshll.u32 %v370, 16
        %v387 = vrot.slane %v385, 7
        %v388 = vor.u32 %v384, %v387
        %v390 = vshrl.u32 %v371, 16
        %v392 = vrot.slane %v390, 6
        %v393 = vshll.u32 %v371, 16
        %v395 = vrot.slane %v393, 7
        %v396 = vor.u32 %v392, %v395
        %v398 = vshrl.u32 %v372, 16
        %v400 = vrot.slane %v398, 6
        %v401 = vshll.u32 %v372, 16
        %v403 = vrot.slane %v401, 7
        %v404 = vor.u32 %v400, %v403
        %vm409 = vcmask 1041408
        %vm410 = vsmask.f32 1280
        %vm411 = vmand %vm409, %vm410
        %v412 = vsel %vm411, 0, %v380
        %v413 = vsel %vm411, 0, %v388
        %v414 = vsel %vm411, 0, %v396
        %v415 = vsel %vm411, 0, %v404
        %v416 = vsel %vm411, %v380, 0
        %v417 = vsel %vm411, %v388, 0
        %v418 = vsel %vm411, %v396, 0
        %v419 = vsel %vm411, %v404, 0
        %v420 = vld [vmem:[#allocation2] sm:$0xf]
        %v421 = vld [vmem:[#allocation2 + $0x4] sm:$0xf]
        %v422 = vld [vmem:[#allocation2 + $0x8] sm:$0xf]
        %v423 = vld [vmem:[#allocation2 + $0xc] sm:$0xf]
        %vm424 = vsmask.f32 7424
        %v426 = vshrl.u32 %v412, 16
        %v428 = vshll.u32 %v412, 16
        %v430 = vrot.slane %v428, 1
        %v431 = vor.u32 %v426, %v430
        %v433 = vshll.u32 %v416, 16
        %v435 = vrot.slane %v433, 1
        %v436 = vsel %vm424, %v431, %v435
        %v438 = vshrl.u32 %v413, 16
        %v440 = vshll.u32 %v413, 16
        %v442 = vrot.slane %v440, 1
        %v443 = vor.u32 %v438, %v442
        %v445 = vshll.u32 %v417, 16
        %v447 = vrot.slane %v445, 1
        %v448 = vsel %vm424, %v443, %v447
        %v450 = vshrl.u32 %v414, 16
        %v452 = vshll.u32 %v414, 16
        %v454 = vrot.slane %v452, 1
        %v455 = vor.u32 %v450, %v454
        %v457 = vshll.u32 %v418, 16
        %v459 = vrot.slane %v457, 1
        %v460 = vsel %vm424, %v455, %v459
        %v462 = vshrl.u32 %v415, 16
        %v464 = vshll.u32 %v415, 16
        %v466 = vrot.slane %v464, 1
        %v467 = vor.u32 %v462, %v466
        %v469 = vshll.u32 %v419, 16
        %v471 = vrot.slane %v469, 1
        %v472 = vsel %vm424, %v467, %v471
        %s473 = scalar_lea.vmem [#allocation2], 16
        %v474 = vld [vmem:[%s473] sm:$0xf]
        %v475 = vld [vmem:[%s473 + $0x4] sm:$0xf]
        %v476 = vld [vmem:[%s473 + $0x8] sm:$0xf]
        %v477 = vld [vmem:[%s473 + $0xc] sm:$0xf]
        %v482 = vunpack.c.l.b16 %v474
        %v483 = vunpack.c.l.b16 %v475
        %v484 = vunpack.c.l.b16 %v476
        %v485 = vunpack.c.l.b16 %v477
        %v486 = vpack.c.b16 %v483, %v482
        %v487 = vpack.c.b16 %v485, %v484
        %vm490 = vcmask 261120
        %v492 = vsel %vm490, %v436, 0
        %v495 = vsel %vm490, %v448, 0
        %v498 = vsel %vm490, %v460, 0
        %v501 = vsel %vm490, %v472, 0
        %503 = vmatpush.bf16.msra.mxu0 0
        %504 = vmatpush.bf16.msra.mxu0 0
        %505 = vmatpush.bf16.msra.mxu0 0
        %506 = vmatpush.bf16.msra.mxu0 0
        %507 = vmatpush.bf16.msra.mxu0 0
        %508 = vmatpush.bf16.msra.mxu0 0
        %509 = vmatpush.bf16.msra.mxu0 %v487
        %510 = vmatpush.bf16.msra.mxu0 %v486
        %511 = vmatmul.bf16.gmra.mxu0 %v492
        %v512 = vpop.f32.mrf.mxu0
        %v513 = vadd.f32 0.0, %v512
        %v514 = vpop.f32.mrf.mxu0
        %v515 = vadd.f32 0.0, %v514
        %516 = vmatmul.bf16.gmra.mxu0 %v495
        %v517 = vpop.f32.mrf.mxu0
        %v518 = vadd.f32 0.0, %v517
        %v519 = vpop.f32.mrf.mxu0
        %v520 = vadd.f32 0.0, %v519
        %521 = vmatmul.bf16.gmra.mxu0 %v498
        %v522 = vpop.f32.mrf.mxu0
        %v523 = vadd.f32 0.0, %v522
        %v524 = vpop.f32.mrf.mxu0
        %v525 = vadd.f32 0.0, %v524
        %526 = vmatmul.bf16.gmra.mxu0 %v501
        %v527 = vpop.f32.mrf.mxu0
        %v528 = vadd.f32 0.0, %v527
        %v529 = vpop.f32.mrf.mxu0
        %v530 = vadd.f32 0.0, %v529
        %531 = vdwg.mxu0
        %v536 = vunpack.c.l.b16 %v420
        %v537 = vunpack.c.l.b16 %v421
        %v538 = vunpack.c.l.b16 %v422
        %v539 = vunpack.c.l.b16 %v423
        %v540 = vpack.c.b16 %v537, %v536
        %v541 = vpack.c.b16 %v539, %v538
        %v544 = vsel %vm490, %v412, 0
        %v546 = vsel %vm490, %v413, 0
        %v548 = vsel %vm490, %v414, 0
        %v550 = vsel %vm490, %v415, 0
        %552 = vmatpush.bf16.msra.mxu0 0
        %553 = vmatpush.bf16.msra.mxu0 0
        %554 = vmatpush.bf16.msra.mxu0 0
        %555 = vmatpush.bf16.msra.mxu0 0
        %556 = vmatpush.bf16.msra.mxu0 0
        %557 = vmatpush.bf16.msra.mxu0 0
        %558 = vmatpush.bf16.msra.mxu0 %v541
        %559 = vmatpush.bf16.msra.mxu0 %v540
        %560 = vmatmul.bf16.gmra.mxu0 %v544
        %v561 = vpop.f32.mrf.mxu0
        %v562 = vadd.f32 %v513, %v561
        %v563 = vpop.f32.mrf.mxu0
        %v564 = vadd.f32 %v515, %v563
        %565 = vmatmul.bf16.gmra.mxu0 %v546
        %v566 = vpop.f32.mrf.mxu0
        %v567 = vadd.f32 %v518, %v566
        %v568 = vpop.f32.mrf.mxu0
        %v569 = vadd.f32 %v520, %v568
        %570 = vmatmul.bf16.gmra.mxu0 %v548
        %v571 = vpop.f32.mrf.mxu0
        %v572 = vadd.f32 %v523, %v571
        %v573 = vpop.f32.mrf.mxu0
        %v574 = vadd.f32 %v525, %v573
        %575 = vmatmul.bf16.gmra.mxu0 %v550
        %v576 = vpop.f32.mrf.mxu0
        %v577 = vadd.f32 %v528, %v576
        %v578 = vpop.f32.mrf.mxu0
        %v579 = vadd.f32 %v530, %v578
        %580 = vdwg.mxu0
        %vm589 = vcmask 1046528
        %v590 = vrot.slane %v412, 1
        %v591 = vrot.slane %v416, 1
        %v592 = vsel %vm589, %v590, %v591
        %v593 = vrot.slane %v413, 1
        %v594 = vrot.slane %v417, 1
        %v595 = vsel %vm589, %v593, %v594
        %v596 = vrot.slane %v414, 1
        %v597 = vrot.slane %v418, 1
        %v598 = vsel %vm589, %v596, %v597
        %v599 = vrot.slane %v415, 1
        %v600 = vrot.slane %v419, 1
        %v601 = vsel %vm589, %v599, %v600
        %s602 = scalar_lea.vmem [#allocation2], 32
        %v603 = vld [vmem:[%s602] sm:$0xf]
        %v604 = vld [vmem:[%s602 + $0x4] sm:$0xf]
        %v605 = vld [vmem:[%s602 + $0x8] sm:$0xf]
        %v606 = vld [vmem:[%s602 + $0xc] sm:$0xf]
        %v611 = vunpack.c.l.b16 %v603
        %v612 = vunpack.c.l.b16 %v604
        %v613 = vunpack.c.l.b16 %v605
        %v614 = vunpack.c.l.b16 %v606
        %v615 = vpack.c.b16 %v612, %v611
        %v616 = vpack.c.b16 %v614, %v613
        %v620 = vsel %vm490, %v592, 0
        %v623 = vsel %vm490, %v595, 0
        %v626 = vsel %vm490, %v598, 0
        %v629 = vsel %vm490, %v601, 0
        %631 = vmatpush.bf16.msra.mxu0 0
        %632 = vmatpush.bf16.msra.mxu0 0
        %633 = vmatpush.bf16.msra.mxu0 0
        %634 = vmatpush.bf16.msra.mxu0 0
        %635 = vmatpush.bf16.msra.mxu0 0
        %636 = vmatpush.bf16.msra.mxu0 0
        %637 = vmatpush.bf16.msra.mxu0 %v616
        %638 = vmatpush.bf16.msra.mxu0 %v615
        %639 = vmatmul.bf16.gmra.mxu0 %v620
        %v640 = vpop.f32.mrf.mxu0
        %v641 = vadd.f32 0.0, %v640
        %v642 = vpop.f32.mrf.mxu0
        %v643 = vadd.f32 0.0, %v642
        %644 = vmatmul.bf16.gmra.mxu0 %v623
        %v645 = vpop.f32.mrf.mxu0
        %v646 = vadd.f32 0.0, %v645
        %v647 = vpop.f32.mrf.mxu0
        %v648 = vadd.f32 0.0, %v647
        %649 = vmatmul.bf16.gmra.mxu0 %v626
        %v650 = vpop.f32.mrf.mxu0
        %v651 = vadd.f32 0.0, %v650
        %v652 = vpop.f32.mrf.mxu0
        %v653 = vadd.f32 0.0, %v652
        %654 = vmatmul.bf16.gmra.mxu0 %v629
        %v655 = vpop.f32.mrf.mxu0
        %v656 = vadd.f32 0.0, %v655
        %v657 = vpop.f32.mrf.mxu0
        %v658 = vadd.f32 0.0, %v657
        %659 = vdwg.mxu0
        %v660 = vadd.f32 %v562, %v641
        %v661 = vadd.f32 %v564, %v643
        %v662 = vadd.f32 %v567, %v646
        %v663 = vadd.f32 %v569, %v648
        %v664 = vadd.f32 %v572, %v651
        %v665 = vadd.f32 %v574, %v653
        %v666 = vadd.f32 %v577, %v656
        %v667 = vadd.f32 %v579, %v658
        %vm668 = vsmask.f32 6400
        %v669 = vrot.slane %v426, 1
        %v670 = vrot.slane %v428, 2
        %v671 = vor.u32 %v669, %v670
        %v672 = vshrl.u32 %v416, 16
        %v674 = vrot.slane %v672, 1
        %v675 = vrot.slane %v433, 2
        %v676 = vor.u32 %v674, %v675
        %v677 = vsel %vm668, %v671, %v676
        %v678 = vrot.slane %v438, 1
        %v679 = vrot.slane %v440, 2
        %v680 = vor.u32 %v678, %v679
        %v681 = vshrl.u32 %v417, 16
        %v683 = vrot.slane %v681, 1
        %v684 = vrot.slane %v445, 2
        %v685 = vor.u32 %v683, %v684
        %v686 = vsel %vm668, %v680, %v685
        %v687 = vrot.slane %v450, 1
        %v688 = vrot.slane %v452, 2
        %v689 = vor.u32 %v687, %v688
        %v690 = vshrl.u32 %v418, 16
        %v692 = vrot.slane %v690, 1
        %v693 = vrot.slane %v457, 2
        %v694 = vor.u32 %v692, %v693
        %v695 = vsel %vm668, %v689, %v694
        %v696 = vrot.slane %v462, 1
        %v697 = vrot.slane %v464, 2
        %v698 = vor.u32 %v696, %v697
        %v699 = vshrl.u32 %v419, 16
        %v701 = vrot.slane %v699, 1
        %v702 = vrot.slane %v469, 2
        %v703 = vor.u32 %v701, %v702
        %v704 = vsel %vm668, %v698, %v703
        %s705 = scalar_lea.vmem [#allocation2], 48
        %v706 = vld [vmem:[%s705] sm:$0xf]
        %v707 = vld [vmem:[%s705 + $0x4] sm:$0xf]
        %v708 = vld [vmem:[%s705 + $0x8] sm:$0xf]
        %v709 = vld [vmem:[%s705 + $0xc] sm:$0xf]
        %v714 = vunpack.c.l.b16 %v706
        %v715 = vunpack.c.l.b16 %v707
        %v716 = vunpack.c.l.b16 %v708
        %v717 = vunpack.c.l.b16 %v709
        %v718 = vpack.c.b16 %v715, %v714
        %v719 = vpack.c.b16 %v717, %v716
        %v723 = vsel %vm490, %v677, 0
        %v726 = vsel %vm490, %v686, 0
        %v729 = vsel %vm490, %v695, 0
        %v732 = vsel %vm490, %v704, 0
        %734 = vmatpush.bf16.msra.mxu0 0
        %735 = vmatpush.bf16.msra.mxu0 0
        %736 = vmatpush.bf16.msra.mxu0 0
        %737 = vmatpush.bf16.msra.mxu0 0
        %738 = vmatpush.bf16.msra.mxu0 0
        %739 = vmatpush.bf16.msra.mxu0 0
        %740 = vmatpush.bf16.msra.mxu0 %v719
        %741 = vmatpush.bf16.msra.mxu0 %v718
        %742 = vmatmul.bf16.gmra.mxu0 %v723
        %v743 = vpop.f32.mrf.mxu0
        %v744 = vadd.f32 0.0, %v743
        %v745 = vpop.f32.mrf.mxu0
        %v746 = vadd.f32 0.0, %v745
        %747 = vmatmul.bf16.gmra.mxu0 %v726
        %v748 = vpop.f32.mrf.mxu0
        %v749 = vadd.f32 0.0, %v748
        %v750 = vpop.f32.mrf.mxu0
        %v751 = vadd.f32 0.0, %v750
        %752 = vmatmul.bf16.gmra.mxu0 %v729
        %v753 = vpop.f32.mrf.mxu0
        %v754 = vadd.f32 0.0, %v753
        %v755 = vpop.f32.mrf.mxu0
        %v756 = vadd.f32 0.0, %v755
        %757 = vmatmul.bf16.gmra.mxu0 %v732
        %v758 = vpop.f32.mrf.mxu0
        %v759 = vadd.f32 0.0, %v758
        %v760 = vpop.f32.mrf.mxu0
        %v761 = vadd.f32 0.0, %v760
        %762 = vdwg.mxu0
        %v763 = vadd.f32 %v660, %v744
        %v764 = vadd.f32 %v661, %v746
        %v765 = vadd.f32 %v662, %v749
        %v766 = vadd.f32 %v663, %v751
        %v767 = vadd.f32 %v664, %v754
        %v768 = vadd.f32 %v665, %v756
        %v769 = vadd.f32 %v666, %v759
        %v770 = vadd.f32 %v667, %v761
        %vm771 = vcmask 1045504
        %v772 = vrot.slane %v412, 2
        %v773 = vrot.slane %v416, 2
        %v774 = vsel %vm771, %v772, %v773
        %v775 = vrot.slane %v413, 2
        %v776 = vrot.slane %v417, 2
        %v777 = vsel %vm771, %v775, %v776
        %v778 = vrot.slane %v414, 2
        %v779 = vrot.slane %v418, 2
        %v780 = vsel %vm771, %v778, %v779
        %v781 = vrot.slane %v415, 2
        %v782 = vrot.slane %v419, 2
        %v783 = vsel %vm771, %v781, %v782
        %s784 = scalar_lea.vmem [#allocation2], 64
        %v785 = vld [vmem:[%s784] sm:$0xf]
        %v786 = vld [vmem:[%s784 + $0x4] sm:$0xf]
        %v787 = vld [vmem:[%s784 + $0x8] sm:$0xf]
        %v788 = vld [vmem:[%s784 + $0xc] sm:$0xf]
        %v793 = vunpack.c.l.b16 %v785
        %v794 = vunpack.c.l.b16 %v786
        %v795 = vunpack.c.l.b16 %v787
        %v796 = vunpack.c.l.b16 %v788
        %v797 = vpack.c.b16 %v794, %v793
        %v798 = vpack.c.b16 %v796, %v795
        %v802 = vsel %vm490, %v774, 0
        %v805 = vsel %vm490, %v777, 0
        %v808 = vsel %vm490, %v780, 0
        %v811 = vsel %vm490, %v783, 0
        %813 = vmatpush.bf16.msra.mxu0 0
        %814 = vmatpush.bf16.msra.mxu0 0
        %815 = vmatpush.bf16.msra.mxu0 0
        %816 = vmatpush.bf16.msra.mxu0 0
        %817 = vmatpush.bf16.msra.mxu0 0
        %818 = vmatpush.bf16.msra.mxu0 0
        %819 = vmatpush.bf16.msra.mxu0 %v798
        %820 = vmatpush.bf16.msra.mxu0 %v797
        %821 = vmatmul.bf16.gmra.mxu0 %v802
        %v822 = vpop.f32.mrf.mxu0
        %v823 = vadd.f32 0.0, %v822
        %v824 = vpop.f32.mrf.mxu0
        %v825 = vadd.f32 0.0, %v824
        %826 = vmatmul.bf16.gmra.mxu0 %v805
        %v827 = vpop.f32.mrf.mxu0
        %v828 = vadd.f32 0.0, %v827
        %v829 = vpop.f32.mrf.mxu0
        %v830 = vadd.f32 0.0, %v829
        %831 = vmatmul.bf16.gmra.mxu0 %v808
        %v832 = vpop.f32.mrf.mxu0
        %v833 = vadd.f32 0.0, %v832
        %v834 = vpop.f32.mrf.mxu0
        %v835 = vadd.f32 0.0, %v834
        %836 = vmatmul.bf16.gmra.mxu0 %v811
        %v837 = vpop.f32.mrf.mxu0
        %v838 = vadd.f32 0.0, %v837
        %v839 = vpop.f32.mrf.mxu0
        %v840 = vadd.f32 0.0, %v839
        %841 = vdwg.mxu0
        %v842 = vadd.f32 %v763, %v823
        %v843 = vadd.f32 %v764, %v825
        %v844 = vadd.f32 %v765, %v828
        %v845 = vadd.f32 %v766, %v830
        %v846 = vadd.f32 %v767, %v833
        %v847 = vadd.f32 %v768, %v835
        %v848 = vadd.f32 %v769, %v838
        %v849 = vadd.f32 %v770, %v840
        %vm850 = vsmask.f32 5376
        %v851 = vrot.slane %v426, 2
        %v852 = vrot.slane %v428, 3
        %v853 = vor.u32 %v851, %v852
        %v854 = vrot.slane %v672, 2
        %v855 = vrot.slane %v433, 3
        %v856 = vor.u32 %v854, %v855
        %v857 = vsel %vm850, %v853, %v856
        %v858 = vrot.slane %v438, 2
        %v859 = vrot.slane %v440, 3
        %v860 = vor.u32 %v858, %v859
        %v861 = vrot.slane %v681, 2
        %v862 = vrot.slane %v445, 3
        %v863 = vor.u32 %v861, %v862
        %v864 = vsel %vm850, %v860, %v863
        %v865 = vrot.slane %v450, 2
        %v866 = vrot.slane %v452, 3
        %v867 = vor.u32 %v865, %v866
        %v868 = vrot.slane %v690, 2
        %v869 = vrot.slane %v457, 3
        %v870 = vor.u32 %v868, %v869
        %v871 = vsel %vm850, %v867, %v870
        %v872 = vrot.slane %v462, 2
        %v873 = vrot.slane %v464, 3
        %v874 = vor.u32 %v872, %v873
        %v875 = vrot.slane %v699, 2
        %v876 = vrot.slane %v469, 3
        %v877 = vor.u32 %v875, %v876
        %v878 = vsel %vm850, %v874, %v877
        %s879 = scalar_lea.vmem [#allocation2], 80
        %v880 = vld [vmem:[%s879] sm:$0xf]
        %v881 = vld [vmem:[%s879 + $0x4] sm:$0xf]
        %v882 = vld [vmem:[%s879 + $0x8] sm:$0xf]
        %v883 = vld [vmem:[%s879 + $0xc] sm:$0xf]
        %v888 = vunpack.c.l.b16 %v880
        %v889 = vunpack.c.l.b16 %v881
        %v890 = vunpack.c.l.b16 %v882
        %v891 = vunpack.c.l.b16 %v883
        %v892 = vpack.c.b16 %v889, %v888
        %v893 = vpack.c.b16 %v891, %v890
        %v897 = vsel %vm490, %v857, 0
        %v900 = vsel %vm490, %v864, 0
        %v903 = vsel %vm490, %v871, 0
        %v906 = vsel %vm490, %v878, 0
        %908 = vmatpush.bf16.msra.mxu0 0
        %909 = vmatpush.bf16.msra.mxu0 0
        %910 = vmatpush.bf16.msra.mxu0 0
        %911 = vmatpush.bf16.msra.mxu0 0
        %912 = vmatpush.bf16.msra.mxu0 0
        %913 = vmatpush.bf16.msra.mxu0 0
        %914 = vmatpush.bf16.msra.mxu0 %v893
        %915 = vmatpush.bf16.msra.mxu0 %v892
        %916 = vmatmul.bf16.gmra.mxu0 %v897
        %v917 = vpop.f32.mrf.mxu0
        %v918 = vadd.f32 0.0, %v917
        %v919 = vpop.f32.mrf.mxu0
        %v920 = vadd.f32 0.0, %v919
        %921 = vmatmul.bf16.gmra.mxu0 %v900
        %v922 = vpop.f32.mrf.mxu0
        %v923 = vadd.f32 0.0, %v922
        %v924 = vpop.f32.mrf.mxu0
        %v925 = vadd.f32 0.0, %v924
        %926 = vmatmul.bf16.gmra.mxu0 %v903
        %v927 = vpop.f32.mrf.mxu0
        %v928 = vadd.f32 0.0, %v927
        %v929 = vpop.f32.mrf.mxu0
        %v930 = vadd.f32 0.0, %v929
        %931 = vmatmul.bf16.gmra.mxu0 %v906
        %v932 = vpop.f32.mrf.mxu0
        %v933 = vadd.f32 0.0, %v932
        %v934 = vpop.f32.mrf.mxu0
        %v935 = vadd.f32 0.0, %v934
        %936 = vdwg.mxu0
        %v937 = vadd.f32 %v842, %v918
        %v938 = vadd.f32 %v843, %v920
        %v939 = vadd.f32 %v844, %v923
        %v940 = vadd.f32 %v845, %v925
        %v941 = vadd.f32 %v846, %v928
        %v942 = vadd.f32 %v847, %v930
        %v943 = vadd.f32 %v848, %v933
        %v944 = vadd.f32 %v849, %v935
        %vm945 = vcmask 1044480
        %v946 = vrot.slane %v412, 3
        %v947 = vrot.slane %v416, 3
        %v948 = vsel %vm945, %v946, %v947
        %v949 = vrot.slane %v413, 3
        %v950 = vrot.slane %v417, 3
        %v951 = vsel %vm945, %v949, %v950
        %v952 = vrot.slane %v414, 3
        %v953 = vrot.slane %v418, 3
        %v954 = vsel %vm945, %v952, %v953
        %v955 = vrot.slane %v415, 3
        %v956 = vrot.slane %v419, 3
        %v957 = vsel %vm945, %v955, %v956
        %s958 = scalar_lea.vmem [#allocation2], 96
        %v959 = vld [vmem:[%s958] sm:$0xf]
        %v960 = vld [vmem:[%s958 + $0x4] sm:$0xf]
        %v961 = vld [vmem:[%s958 + $0x8] sm:$0xf]
        %v962 = vld [vmem:[%s958 + $0xc] sm:$0xf]
        %v967 = vunpack.c.l.b16 %v959
        %v968 = vunpack.c.l.b16 %v960
        %v969 = vunpack.c.l.b16 %v961
        %v970 = vunpack.c.l.b16 %v962
        %v971 = vpack.c.b16 %v968, %v967
        %v972 = vpack.c.b16 %v970, %v969
        %v976 = vsel %vm490, %v948, 0
        %v979 = vsel %vm490, %v951, 0
        %v982 = vsel %vm490, %v954, 0
        %v985 = vsel %vm490, %v957, 0
        %987 = vmatpush.bf16.msra.mxu0 0
        %988 = vmatpush.bf16.msra.mxu0 0
        %989 = vmatpush.bf16.msra.mxu0 0
        %990 = vmatpush.bf16.msra.mxu0 0
        %991 = vmatpush.bf16.msra.mxu0 0
        %992 = vmatpush.bf16.msra.mxu0 0
        %993 = vmatpush.bf16.msra.mxu0 %v972
        %994 = vmatpush.bf16.msra.mxu0 %v971
        %995 = vmatmul.bf16.gmra.mxu0 %v976
        %v996 = vpop.f32.mrf.mxu0
        %v997 = vadd.f32 0.0, %v996
        %v998 = vpop.f32.mrf.mxu0
        %v999 = vadd.f32 0.0, %v998
        %1000 = vmatmul.bf16.gmra.mxu0 %v979
        %v1001 = vpop.f32.mrf.mxu0
        %v1002 = vadd.f32 0.0, %v1001
        %v1003 = vpop.f32.mrf.mxu0
        %v1004 = vadd.f32 0.0, %v1003
        %1005 = vmatmul.bf16.gmra.mxu0 %v982
        %v1006 = vpop.f32.mrf.mxu0
        %v1007 = vadd.f32 0.0, %v1006
        %v1008 = vpop.f32.mrf.mxu0
        %v1009 = vadd.f32 0.0, %v1008
        %1010 = vmatmul.bf16.gmra.mxu0 %v985
        %v1011 = vpop.f32.mrf.mxu0
        %v1012 = vadd.f32 0.0, %v1011
        %v1013 = vpop.f32.mrf.mxu0
        %v1014 = vadd.f32 0.0, %v1013
        %1015 = vdwg.mxu0
        %v1016 = vadd.f32 %v937, %v997
        %v1017 = vadd.f32 %v938, %v999
        %v1018 = vadd.f32 %v939, %v1002
        %v1019 = vadd.f32 %v940, %v1004
        %v1020 = vadd.f32 %v941, %v1007
        %v1021 = vadd.f32 %v942, %v1009
        %v1022 = vadd.f32 %v943, %v1012
        %v1023 = vadd.f32 %v944, %v1014
        %v1024 = vperm.slane %v241, 1
        %v1025 = vadd.f32 %v1016, %v1024
        %v1026 = vadd.f32 %v1017, %v1024
        %v1027 = vadd.f32 %v1018, %v1024
        %v1028 = vadd.f32 %v1019, %v1024
        %v1029 = vadd.f32 %v1020, %v1024
        %v1030 = vadd.f32 %v1021, %v1024
        %v1031 = vadd.f32 %v1022, %v1024
        %v1032 = vadd.f32 %v1023, %v1024
        %v1033 = vmax.f32 %v1025, 0.0
        %v1034 = vmax.f32 %v1026, 0.0
        %v1035 = vmax.f32 %v1027, 0.0
        %v1036 = vmax.f32 %v1028, 0.0
        %v1037 = vmax.f32 %v1029, 0.0
        %v1038 = vmax.f32 %v1030, 0.0
        %v1039 = vmax.f32 %v1031, 0.0
        %v1040 = vmax.f32 %v1032, 0.0
        %v1041 = vpack.c.bf16 %v1033, %v1033
        %v1042 = vpack.c.bf16 %v1034, %v1034
        %v1043 = vpack.c.bf16 %v1035, %v1035
        %v1044 = vpack.c.bf16 %v1036, %v1036
        %v1045 = vpack.c.bf16 %v1037, %v1037
        %v1046 = vpack.c.bf16 %v1038, %v1038
        %v1047 = vpack.c.bf16 %v1039, %v1039
        %v1048 = vpack.c.bf16 %v1040, %v1040
        %v1057 = vunpack.c.l.b16 %v1041
        %v1058 = vunpack.c.l.b16 %v1042
        %v1059 = vunpack.c.l.b16 %v1043
        %v1060 = vunpack.c.l.b16 %v1044
        %v1061 = vunpack.c.l.b16 %v1045
        %v1062 = vunpack.c.l.b16 %v1046
        %v1063 = vunpack.c.l.b16 %v1047
        %v1064 = vunpack.c.l.b16 %v1048
        %v1065 = vpack.c.b16 %v1058, %v1057
        %v1066 = vpack.c.b16 %v1060, %v1059
        %v1067 = vpack.c.b16 %v1062, %v1061
        %v1068 = vpack.c.b16 %v1064, %v1063
        %v1070 = vshrl.u32 %v1065, 16
        %v1072 = vrot.slane %v1070, 6
        %v1073 = vshll.u32 %v1065, 16
        %v1075 = vrot.slane %v1073, 7
        %v1076 = vor.u32 %v1072, %v1075
        %v1078 = vshrl.u32 %v1066, 16
        %v1080 = vrot.slane %v1078, 6
        %v1081 = vshll.u32 %v1066, 16
        %v1083 = vrot.slane %v1081, 7
        %v1084 = vor.u32 %v1080, %v1083
        %v1086 = vshrl.u32 %v1067, 16
        %v1088 = vrot.slane %v1086, 6
        %v1089 = vshll.u32 %v1067, 16
        %v1091 = vrot.slane %v1089, 7
        %v1092 = vor.u32 %v1088, %v1091
        %v1094 = vshrl.u32 %v1068, 16
        %v1096 = vrot.slane %v1094, 6
        %v1097 = vshll.u32 %v1068, 16
        %v1099 = vrot.slane %v1097, 7
        %v1100 = vor.u32 %v1096, %v1099
        %v1105 = vsel %vm411, 0, %v1076
        %v1106 = vsel %vm411, 0, %v1084
        %v1107 = vsel %vm411, 0, %v1092
        %v1108 = vsel %vm411, 0, %v1100
        %v1109 = vsel %vm411, %v1076, 0
        %v1110 = vsel %vm411, %v1084, 0
        %v1111 = vsel %vm411, %v1092, 0
        %v1112 = vsel %vm411, %v1100, 0
        %s1113 = scalar_lea.vmem [#allocation2], 112
        %v1114 = vld [vmem:[%s1113] sm:$0xf]
        %v1115 = vld [vmem:[%s1113 + $0x4] sm:$0xf]
        %v1116 = vld [vmem:[%s1113 + $0x8] sm:$0xf]
        %v1117 = vld [vmem:[%s1113 + $0xc] sm:$0xf]
        %v1119 = vshrl.u32 %v1105, 16
        %v1121 = vshll.u32 %v1105, 16
        %v1123 = vrot.slane %v1121, 1
        %v1124 = vor.u32 %v1119, %v1123
        %v1126 = vshll.u32 %v1109, 16
        %v1128 = vrot.slane %v1126, 1
        %v1129 = vsel %vm424, %v1124, %v1128
        %v1131 = vshrl.u32 %v1106, 16
        %v1133 = vshll.u32 %v1106, 16
        %v1135 = vrot.slane %v1133, 1
        %v1136 = vor.u32 %v1131, %v1135
        %v1138 = vshll.u32 %v1110, 16
        %v1140 = vrot.slane %v1138, 1
        %v1141 = vsel %vm424, %v1136, %v1140
        %v1143 = vshrl.u32 %v1107, 16
        %v1145 = vshll.u32 %v1107, 16
        %v1147 = vrot.slane %v1145, 1
        %v1148 = vor.u32 %v1143, %v1147
        %v1150 = vshll.u32 %v1111, 16
        %v1152 = vrot.slane %v1150, 1
        %v1153 = vsel %vm424, %v1148, %v1152
        %v1155 = vshrl.u32 %v1108, 16
        %v1157 = vshll.u32 %v1108, 16
        %v1159 = vrot.slane %v1157, 1
        %v1160 = vor.u32 %v1155, %v1159
        %v1162 = vshll.u32 %v1112, 16
        %v1164 = vrot.slane %v1162, 1
        %v1165 = vsel %vm424, %v1160, %v1164
        %s1166 = scalar_lea.vmem [#allocation2], 128
        %v1167 = vld [vmem:[%s1166] sm:$0xf]
        %v1168 = vld [vmem:[%s1166 + $0x4] sm:$0xf]
        %v1169 = vld [vmem:[%s1166 + $0x8] sm:$0xf]
        %v1170 = vld [vmem:[%s1166 + $0xc] sm:$0xf]
        %v1175 = vunpack.c.l.b16 %v1167
        %v1176 = vunpack.c.l.b16 %v1168
        %v1177 = vunpack.c.l.b16 %v1169
        %v1178 = vunpack.c.l.b16 %v1170
        %v1179 = vpack.c.b16 %v1176, %v1175
        %v1180 = vpack.c.b16 %v1178, %v1177
        %v1184 = vsel %vm490, %v1129, 0
        %v1187 = vsel %vm490, %v1141, 0
        %v1190 = vsel %vm490, %v1153, 0
        %v1193 = vsel %vm490, %v1165, 0
        %1195 = vmatpush.bf16.msra.mxu0 0
        %1196 = vmatpush.bf16.msra.mxu0 0
        %1197 = vmatpush.bf16.msra.mxu0 0
        %1198 = vmatpush.bf16.msra.mxu0 0
        %1199 = vmatpush.bf16.msra.mxu0 0
        %1200 = vmatpush.bf16.msra.mxu0 0
        %1201 = vmatpush.bf16.msra.mxu0 %v1180
        %1202 = vmatpush.bf16.msra.mxu0 %v1179
        %1203 = vmatmul.bf16.gmra.mxu0 %v1184
        %v1204 = vpop.f32.mrf.mxu0
        %v1205 = vadd.f32 0.0, %v1204
        %v1206 = vpop.f32.mrf.mxu0
        %v1207 = vadd.f32 0.0, %v1206
        %1208 = vmatmul.bf16.gmra.mxu0 %v1187
        %v1209 = vpop.f32.mrf.mxu0
        %v1210 = vadd.f32 0.0, %v1209
        %v1211 = vpop.f32.mrf.mxu0
        %v1212 = vadd.f32 0.0, %v1211
        %1213 = vmatmul.bf16.gmra.mxu0 %v1190
        %v1214 = vpop.f32.mrf.mxu0
        %v1215 = vadd.f32 0.0, %v1214
        %v1216 = vpop.f32.mrf.mxu0
        %v1217 = vadd.f32 0.0, %v1216
        %1218 = vmatmul.bf16.gmra.mxu0 %v1193
        %v1219 = vpop.f32.mrf.mxu0
        %v1220 = vadd.f32 0.0, %v1219
        %v1221 = vpop.f32.mrf.mxu0
        %v1222 = vadd.f32 0.0, %v1221
        %1223 = vdwg.mxu0
        %v1228 = vunpack.c.l.b16 %v1114
        %v1229 = vunpack.c.l.b16 %v1115
        %v1230 = vunpack.c.l.b16 %v1116
        %v1231 = vunpack.c.l.b16 %v1117
        %v1232 = vpack.c.b16 %v1229, %v1228
        %v1233 = vpack.c.b16 %v1231, %v1230
        %v1236 = vsel %vm490, %v1105, 0
        %v1238 = vsel %vm490, %v1106, 0
        %v1240 = vsel %vm490, %v1107, 0
        %v1242 = vsel %vm490, %v1108, 0
        %1244 = vmatpush.bf16.msra.mxu0 0
        %1245 = vmatpush.bf16.msra.mxu0 0
        %1246 = vmatpush.bf16.msra.mxu0 0
        %1247 = vmatpush.bf16.msra.mxu0 0
        %1248 = vmatpush.bf16.msra.mxu0 0
        %1249 = vmatpush.bf16.msra.mxu0 0
        %1250 = vmatpush.bf16.msra.mxu0 %v1233
        %1251 = vmatpush.bf16.msra.mxu0 %v1232
        %1252 = vmatmul.bf16.gmra.mxu0 %v1236
        %v1253 = vpop.f32.mrf.mxu0
        %v1254 = vadd.f32 %v1205, %v1253
        %v1255 = vpop.f32.mrf.mxu0
        %v1256 = vadd.f32 %v1207, %v1255
        %1257 = vmatmul.bf16.gmra.mxu0 %v1238
        %v1258 = vpop.f32.mrf.mxu0
        %v1259 = vadd.f32 %v1210, %v1258
        %v1260 = vpop.f32.mrf.mxu0
        %v1261 = vadd.f32 %v1212, %v1260
        %1262 = vmatmul.bf16.gmra.mxu0 %v1240
        %v1263 = vpop.f32.mrf.mxu0
        %v1264 = vadd.f32 %v1215, %v1263
        %v1265 = vpop.f32.mrf.mxu0
        %v1266 = vadd.f32 %v1217, %v1265
        %1267 = vmatmul.bf16.gmra.mxu0 %v1242
        %v1268 = vpop.f32.mrf.mxu0
        %v1269 = vadd.f32 %v1220, %v1268
        %v1270 = vpop.f32.mrf.mxu0
        %v1271 = vadd.f32 %v1222, %v1270
        %1272 = vdwg.mxu0
        %v1281 = vrot.slane %v1105, 1
        %v1282 = vrot.slane %v1109, 1
        %v1283 = vsel %vm589, %v1281, %v1282
        %v1284 = vrot.slane %v1106, 1
        %v1285 = vrot.slane %v1110, 1
        %v1286 = vsel %vm589, %v1284, %v1285
        %v1287 = vrot.slane %v1107, 1
        %v1288 = vrot.slane %v1111, 1
        %v1289 = vsel %vm589, %v1287, %v1288
        %v1290 = vrot.slane %v1108, 1
        %v1291 = vrot.slane %v1112, 1
        %v1292 = vsel %vm589, %v1290, %v1291
        %s1293 = scalar_lea.vmem [#allocation2], 144
        %v1294 = vld [vmem:[%s1293] sm:$0xf]
        %v1295 = vld [vmem:[%s1293 + $0x4] sm:$0xf]
        %v1296 = vld [vmem:[%s1293 + $0x8] sm:$0xf]
        %v1297 = vld [vmem:[%s1293 + $0xc] sm:$0xf]
        %v1302 = vunpack.c.l.b16 %v1294
        %v1303 = vunpack.c.l.b16 %v1295
        %v1304 = vunpack.c.l.b16 %v1296
        %v1305 = vunpack.c.l.b16 %v1297
        %v1306 = vpack.c.b16 %v1303, %v1302
        %v1307 = vpack.c.b16 %v1305, %v1304
        %v1311 = vsel %vm490, %v1283, 0
        %v1314 = vsel %vm490, %v1286, 0
        %v1317 = vsel %vm490, %v1289, 0
        %v1320 = vsel %vm490, %v1292, 0
        %1322 = vmatpush.bf16.msra.mxu0 0
        %1323 = vmatpush.bf16.msra.mxu0 0
        %1324 = vmatpush.bf16.msra.mxu0 0
        %1325 = vmatpush.bf16.msra.mxu0 0
        %1326 = vmatpush.bf16.msra.mxu0 0
        %1327 = vmatpush.bf16.msra.mxu0 0
        %1328 = vmatpush.bf16.msra.mxu0 %v1307
        %1329 = vmatpush.bf16.msra.mxu0 %v1306
        %1330 = vmatmul.bf16.gmra.mxu0 %v1311
        %v1331 = vpop.f32.mrf.mxu0
        %v1332 = vadd.f32 0.0, %v1331
        %v1333 = vpop.f32.mrf.mxu0
        %v1334 = vadd.f32 0.0, %v1333
        %1335 = vmatmul.bf16.gmra.mxu0 %v1314
        %v1336 = vpop.f32.mrf.mxu0
        %v1337 = vadd.f32 0.0, %v1336
        %v1338 = vpop.f32.mrf.mxu0
        %v1339 = vadd.f32 0.0, %v1338
        %1340 = vmatmul.bf16.gmra.mxu0 %v1317
        %v1341 = vpop.f32.mrf.mxu0
        %v1342 = vadd.f32 0.0, %v1341
        %v1343 = vpop.f32.mrf.mxu0
        %v1344 = vadd.f32 0.0, %v1343
        %1345 = vmatmul.bf16.gmra.mxu0 %v1320
        %v1346 = vpop.f32.mrf.mxu0
        %v1347 = vadd.f32 0.0, %v1346
        %v1348 = vpop.f32.mrf.mxu0
        %v1349 = vadd.f32 0.0, %v1348
        %1350 = vdwg.mxu0
        %v1351 = vadd.f32 %v1254, %v1332
        %v1352 = vadd.f32 %v1256, %v1334
        %v1353 = vadd.f32 %v1259, %v1337
        %v1354 = vadd.f32 %v1261, %v1339
        %v1355 = vadd.f32 %v1264, %v1342
        %v1356 = vadd.f32 %v1266, %v1344
        %v1357 = vadd.f32 %v1269, %v1347
        %v1358 = vadd.f32 %v1271, %v1349
        %v1359 = vrot.slane %v1119, 1
        %v1360 = vrot.slane %v1121, 2
        %v1361 = vor.u32 %v1359, %v1360
        %v1362 = vshrl.u32 %v1109, 16
        %v1364 = vrot.slane %v1362, 1
        %v1365 = vrot.slane %v1126, 2
        %v1366 = vor.u32 %v1364, %v1365
        %v1367 = vsel %vm668, %v1361, %v1366
        %v1368 = vrot.slane %v1131, 1
        %v1369 = vrot.slane %v1133, 2
        %v1370 = vor.u32 %v1368, %v1369
        %v1371 = vshrl.u32 %v1110, 16
        %v1373 = vrot.slane %v1371, 1
        %v1374 = vrot.slane %v1138, 2
        %v1375 = vor.u32 %v1373, %v1374
        %v1376 = vsel %vm668, %v1370, %v1375
        %v1377 = vrot.slane %v1143, 1
        %v1378 = vrot.slane %v1145, 2
        %v1379 = vor.u32 %v1377, %v1378
        %v1380 = vshrl.u32 %v1111, 16
        %v1382 = vrot.slane %v1380, 1
        %v1383 = vrot.slane %v1150, 2
        %v1384 = vor.u32 %v1382, %v1383
        %v1385 = vsel %vm668, %v1379, %v1384
        %v1386 = vrot.slane %v1155, 1
        %v1387 = vrot.slane %v1157, 2
        %v1388 = vor.u32 %v1386, %v1387
        %v1389 = vshrl.u32 %v1112, 16
        %v1391 = vrot.slane %v1389, 1
        %v1392 = vrot.slane %v1162, 2
        %v1393 = vor.u32 %v1391, %v1392
        %v1394 = vsel %vm668, %v1388, %v1393
        %s1395 = scalar_lea.vmem [#allocation2], 160
        %v1396 = vld [vmem:[%s1395] sm:$0xf]
        %v1397 = vld [vmem:[%s1395 + $0x4] sm:$0xf]
        %v1398 = vld [vmem:[%s1395 + $0x8] sm:$0xf]
        %v1399 = vld [vmem:[%s1395 + $0xc] sm:$0xf]
        %v1404 = vunpack.c.l.b16 %v1396
        %v1405 = vunpack.c.l.b16 %v1397
        %v1406 = vunpack.c.l.b16 %v1398
        %v1407 = vunpack.c.l.b16 %v1399
        %v1408 = vpack.c.b16 %v1405, %v1404
        %v1409 = vpack.c.b16 %v1407, %v1406
        %v1413 = vsel %vm490, %v1367, 0
        %v1416 = vsel %vm490, %v1376, 0
        %v1419 = vsel %vm490, %v1385, 0
        %v1422 = vsel %vm490, %v1394, 0
        %1424 = vmatpush.bf16.msra.mxu0 0
        %1425 = vmatpush.bf16.msra.mxu0 0
        %1426 = vmatpush.bf16.msra.mxu0 0
        %1427 = vmatpush.bf16.msra.mxu0 0
        %1428 = vmatpush.bf16.msra.mxu0 0
        %1429 = vmatpush.bf16.msra.mxu0 0
        %1430 = vmatpush.bf16.msra.mxu0 %v1409
        %1431 = vmatpush.bf16.msra.mxu0 %v1408
        %1432 = vmatmul.bf16.gmra.mxu0 %v1413
        %v1433 = vpop.f32.mrf.mxu0
        %v1434 = vadd.f32 0.0, %v1433
        %v1435 = vpop.f32.mrf.mxu0
        %v1436 = vadd.f32 0.0, %v1435
        %1437 = vmatmul.bf16.gmra.mxu0 %v1416
        %v1438 = vpop.f32.mrf.mxu0
        %v1439 = vadd.f32 0.0, %v1438
        %v1440 = vpop.f32.mrf.mxu0
        %v1441 = vadd.f32 0.0, %v1440
        %1442 = vmatmul.bf16.gmra.mxu0 %v1419
        %v1443 = vpop.f32.mrf.mxu0
        %v1444 = vadd.f32 0.0, %v1443
        %v1445 = vpop.f32.mrf.mxu0
        %v1446 = vadd.f32 0.0, %v1445
        %1447 = vmatmul.bf16.gmra.mxu0 %v1422
        %v1448 = vpop.f32.mrf.mxu0
        %v1449 = vadd.f32 0.0, %v1448
        %v1450 = vpop.f32.mrf.mxu0
        %v1451 = vadd.f32 0.0, %v1450
        %1452 = vdwg.mxu0
        %v1453 = vadd.f32 %v1351, %v1434
        %v1454 = vadd.f32 %v1352, %v1436
        %v1455 = vadd.f32 %v1353, %v1439
        %v1456 = vadd.f32 %v1354, %v1441
        %v1457 = vadd.f32 %v1355, %v1444
        %v1458 = vadd.f32 %v1356, %v1446
        %v1459 = vadd.f32 %v1357, %v1449
        %v1460 = vadd.f32 %v1358, %v1451
        %v1461 = vrot.slane %v1105, 2
        %v1462 = vrot.slane %v1109, 2
        %v1463 = vsel %vm771, %v1461, %v1462
        %v1464 = vrot.slane %v1106, 2
        %v1465 = vrot.slane %v1110, 2
        %v1466 = vsel %vm771, %v1464, %v1465
        %v1467 = vrot.slane %v1107, 2
        %v1468 = vrot.slane %v1111, 2
        %v1469 = vsel %vm771, %v1467, %v1468
        %v1470 = vrot.slane %v1108, 2
        %v1471 = vrot.slane %v1112, 2
        %v1472 = vsel %vm771, %v1470, %v1471
        %s1473 = scalar_lea.vmem [#allocation2], 176
        %v1474 = vld [vmem:[%s1473] sm:$0xf]
        %v1475 = vld [vmem:[%s1473 + $0x4] sm:$0xf]
        %v1476 = vld [vmem:[%s1473 + $0x8] sm:$0xf]
        %v1477 = vld [vmem:[%s1473 + $0xc] sm:$0xf]
        %v1482 = vunpack.c.l.b16 %v1474
        %v1483 = vunpack.c.l.b16 %v1475
        %v1484 = vunpack.c.l.b16 %v1476
        %v1485 = vunpack.c.l.b16 %v1477
        %v1486 = vpack.c.b16 %v1483, %v1482
        %v1487 = vpack.c.b16 %v1485, %v1484
        %v1491 = vsel %vm490, %v1463, 0
        %v1494 = vsel %vm490, %v1466, 0
        %v1497 = vsel %vm490, %v1469, 0
        %v1500 = vsel %vm490, %v1472, 0
        %1502 = vmatpush.bf16.msra.mxu0 0
        %1503 = vmatpush.bf16.msra.mxu0 0
        %1504 = vmatpush.bf16.msra.mxu0 0
        %1505 = vmatpush.bf16.msra.mxu0 0
        %1506 = vmatpush.bf16.msra.mxu0 0
        %1507 = vmatpush.bf16.msra.mxu0 0
        %1508 = vmatpush.bf16.msra.mxu0 %v1487
        %1509 = vmatpush.bf16.msra.mxu0 %v1486
        %1510 = vmatmul.bf16.gmra.mxu0 %v1491
        %v1511 = vpop.f32.mrf.mxu0
        %v1512 = vadd.f32 0.0, %v1511
        %v1513 = vpop.f32.mrf.mxu0
        %v1514 = vadd.f32 0.0, %v1513
        %1515 = vmatmul.bf16.gmra.mxu0 %v1494
        %v1516 = vpop.f32.mrf.mxu0
        %v1517 = vadd.f32 0.0, %v1516
        %v1518 = vpop.f32.mrf.mxu0
        %v1519 = vadd.f32 0.0, %v1518
        %1520 = vmatmul.bf16.gmra.mxu0 %v1497
        %v1521 = vpop.f32.mrf.mxu0
        %v1522 = vadd.f32 0.0, %v1521
        %v1523 = vpop.f32.mrf.mxu0
        %v1524 = vadd.f32 0.0, %v1523
        %1525 = vmatmul.bf16.gmra.mxu0 %v1500
        %v1526 = vpop.f32.mrf.mxu0
        %v1527 = vadd.f32 0.0, %v1526
        %v1528 = vpop.f32.mrf.mxu0
        %v1529 = vadd.f32 0.0, %v1528
        %1530 = vdwg.mxu0
        %v1531 = vadd.f32 %v1453, %v1512
        %v1532 = vadd.f32 %v1454, %v1514
        %v1533 = vadd.f32 %v1455, %v1517
        %v1534 = vadd.f32 %v1456, %v1519
        %v1535 = vadd.f32 %v1457, %v1522
        %v1536 = vadd.f32 %v1458, %v1524
        %v1537 = vadd.f32 %v1459, %v1527
        %v1538 = vadd.f32 %v1460, %v1529
        %v1539 = vrot.slane %v1119, 2
        %v1540 = vrot.slane %v1121, 3
        %v1541 = vor.u32 %v1539, %v1540
        %v1542 = vrot.slane %v1362, 2
        %v1543 = vrot.slane %v1126, 3
        %v1544 = vor.u32 %v1542, %v1543
        %v1545 = vsel %vm850, %v1541, %v1544
        %v1546 = vrot.slane %v1131, 2
        %v1547 = vrot.slane %v1133, 3
        %v1548 = vor.u32 %v1546, %v1547
        %v1549 = vrot.slane %v1371, 2
        %v1550 = vrot.slane %v1138, 3
        %v1551 = vor.u32 %v1549, %v1550
        %v1552 = vsel %vm850, %v1548, %v1551
        %v1553 = vrot.slane %v1143, 2
        %v1554 = vrot.slane %v1145, 3
        %v1555 = vor.u32 %v1553, %v1554
        %v1556 = vrot.slane %v1380, 2
        %v1557 = vrot.slane %v1150, 3
        %v1558 = vor.u32 %v1556, %v1557
        %v1559 = vsel %vm850, %v1555, %v1558
        %v1560 = vrot.slane %v1155, 2
        %v1561 = vrot.slane %v1157, 3
        %v1562 = vor.u32 %v1560, %v1561
        %v1563 = vrot.slane %v1389, 2
        %v1564 = vrot.slane %v1162, 3
        %v1565 = vor.u32 %v1563, %v1564
        %v1566 = vsel %vm850, %v1562, %v1565
        %s1567 = scalar_lea.vmem [#allocation2], 192
        %v1568 = vld [vmem:[%s1567] sm:$0xf]
        %v1569 = vld [vmem:[%s1567 + $0x4] sm:$0xf]
        %v1570 = vld [vmem:[%s1567 + $0x8] sm:$0xf]
        %v1571 = vld [vmem:[%s1567 + $0xc] sm:$0xf]
        %v1576 = vunpack.c.l.b16 %v1568
        %v1577 = vunpack.c.l.b16 %v1569
        %v1578 = vunpack.c.l.b16 %v1570
        %v1579 = vunpack.c.l.b16 %v1571
        %v1580 = vpack.c.b16 %v1577, %v1576
        %v1581 = vpack.c.b16 %v1579, %v1578
        %v1585 = vsel %vm490, %v1545, 0
        %v1588 = vsel %vm490, %v1552, 0
        %v1591 = vsel %vm490, %v1559, 0
        %v1594 = vsel %vm490, %v1566, 0
        %1596 = vmatpush.bf16.msra.mxu0 0
        %1597 = vmatpush.bf16.msra.mxu0 0
        %1598 = vmatpush.bf16.msra.mxu0 0
        %1599 = vmatpush.bf16.msra.mxu0 0
        %1600 = vmatpush.bf16.msra.mxu0 0
        %1601 = vmatpush.bf16.msra.mxu0 0
        %1602 = vmatpush.bf16.msra.mxu0 %v1581
        %1603 = vmatpush.bf16.msra.mxu0 %v1580
        %1604 = vmatmul.bf16.gmra.mxu0 %v1585
        %v1605 = vpop.f32.mrf.mxu0
        %v1606 = vadd.f32 0.0, %v1605
        %v1607 = vpop.f32.mrf.mxu0
        %v1608 = vadd.f32 0.0, %v1607
        %1609 = vmatmul.bf16.gmra.mxu0 %v1588
        %v1610 = vpop.f32.mrf.mxu0
        %v1611 = vadd.f32 0.0, %v1610
        %v1612 = vpop.f32.mrf.mxu0
        %v1613 = vadd.f32 0.0, %v1612
        %1614 = vmatmul.bf16.gmra.mxu0 %v1591
        %v1615 = vpop.f32.mrf.mxu0
        %v1616 = vadd.f32 0.0, %v1615
        %v1617 = vpop.f32.mrf.mxu0
        %v1618 = vadd.f32 0.0, %v1617
        %1619 = vmatmul.bf16.gmra.mxu0 %v1594
        %v1620 = vpop.f32.mrf.mxu0
        %v1621 = vadd.f32 0.0, %v1620
        %v1622 = vpop.f32.mrf.mxu0
        %v1623 = vadd.f32 0.0, %v1622
        %1624 = vdwg.mxu0
        %v1625 = vadd.f32 %v1531, %v1606
        %v1626 = vadd.f32 %v1532, %v1608
        %v1627 = vadd.f32 %v1533, %v1611
        %v1628 = vadd.f32 %v1534, %v1613
        %v1629 = vadd.f32 %v1535, %v1616
        %v1630 = vadd.f32 %v1536, %v1618
        %v1631 = vadd.f32 %v1537, %v1621
        %v1632 = vadd.f32 %v1538, %v1623
        %v1633 = vrot.slane %v1105, 3
        %v1634 = vrot.slane %v1109, 3
        %v1635 = vsel %vm945, %v1633, %v1634
        %v1636 = vrot.slane %v1106, 3
        %v1637 = vrot.slane %v1110, 3
        %v1638 = vsel %vm945, %v1636, %v1637
        %v1639 = vrot.slane %v1107, 3
        %v1640 = vrot.slane %v1111, 3
        %v1641 = vsel %vm945, %v1639, %v1640
        %v1642 = vrot.slane %v1108, 3
        %v1643 = vrot.slane %v1112, 3
        %v1644 = vsel %vm945, %v1642, %v1643
        %s1645 = scalar_lea.vmem [#allocation2], 208
        %v1646 = vld [vmem:[%s1645] sm:$0xf]
        %v1647 = vld [vmem:[%s1645 + $0x4] sm:$0xf]
        %v1648 = vld [vmem:[%s1645 + $0x8] sm:$0xf]
        %v1649 = vld [vmem:[%s1645 + $0xc] sm:$0xf]
        %v1654 = vunpack.c.l.b16 %v1646
        %v1655 = vunpack.c.l.b16 %v1647
        %v1656 = vunpack.c.l.b16 %v1648
        %v1657 = vunpack.c.l.b16 %v1649
        %v1658 = vpack.c.b16 %v1655, %v1654
        %v1659 = vpack.c.b16 %v1657, %v1656
        %v1663 = vsel %vm490, %v1635, 0
        %v1666 = vsel %vm490, %v1638, 0
        %v1669 = vsel %vm490, %v1641, 0
        %v1672 = vsel %vm490, %v1644, 0
        %1674 = vmatpush.bf16.msra.mxu0 0
        %1675 = vmatpush.bf16.msra.mxu0 0
        %1676 = vmatpush.bf16.msra.mxu0 0
        %1677 = vmatpush.bf16.msra.mxu0 0
        %1678 = vmatpush.bf16.msra.mxu0 0
        %1679 = vmatpush.bf16.msra.mxu0 0
        %1680 = vmatpush.bf16.msra.mxu0 %v1659
        %1681 = vmatpush.bf16.msra.mxu0 %v1658
        %1682 = vmatmul.bf16.gmra.mxu0 %v1663
        %v1683 = vpop.f32.mrf.mxu0
        %v1684 = vadd.f32 0.0, %v1683
        %v1685 = vpop.f32.mrf.mxu0
        %v1686 = vadd.f32 0.0, %v1685
        %1687 = vmatmul.bf16.gmra.mxu0 %v1666
        %v1688 = vpop.f32.mrf.mxu0
        %v1689 = vadd.f32 0.0, %v1688
        %v1690 = vpop.f32.mrf.mxu0
        %v1691 = vadd.f32 0.0, %v1690
        %1692 = vmatmul.bf16.gmra.mxu0 %v1669
        %v1693 = vpop.f32.mrf.mxu0
        %v1694 = vadd.f32 0.0, %v1693
        %v1695 = vpop.f32.mrf.mxu0
        %v1696 = vadd.f32 0.0, %v1695
        %1697 = vmatmul.bf16.gmra.mxu0 %v1672
        %v1698 = vpop.f32.mrf.mxu0
        %v1699 = vadd.f32 0.0, %v1698
        %v1700 = vpop.f32.mrf.mxu0
        %v1701 = vadd.f32 0.0, %v1700
        %1702 = vdwg.mxu0
        %v1703 = vadd.f32 %v1625, %v1684
        %v1704 = vadd.f32 %v1626, %v1686
        %v1705 = vadd.f32 %v1627, %v1689
        %v1706 = vadd.f32 %v1628, %v1691
        %v1707 = vadd.f32 %v1629, %v1694
        %v1708 = vadd.f32 %v1630, %v1696
        %v1709 = vadd.f32 %v1631, %v1699
        %v1710 = vadd.f32 %v1632, %v1701
        %v1711 = vperm.slane %v241, 2
        %v1712 = vadd.f32 %v1703, %v1711
        %v1713 = vadd.f32 %v1704, %v1711
        %v1714 = vadd.f32 %v1705, %v1711
        %v1715 = vadd.f32 %v1706, %v1711
        %v1716 = vadd.f32 %v1707, %v1711
        %v1717 = vadd.f32 %v1708, %v1711
        %v1718 = vadd.f32 %v1709, %v1711
        %v1719 = vadd.f32 %v1710, %v1711
        %v1720 = vmax.f32 %v1712, 0.0
        %v1721 = vmax.f32 %v1713, 0.0
        %v1722 = vmax.f32 %v1714, 0.0
        %v1723 = vmax.f32 %v1715, 0.0
        %v1724 = vmax.f32 %v1716, 0.0
        %v1725 = vmax.f32 %v1717, 0.0
        %v1726 = vmax.f32 %v1718, 0.0
        %v1727 = vmax.f32 %v1719, 0.0
        %v1728 = vunpack.c.l.bf16 %v345
        %v1729 = vunpack.c.l.bf16 %v346
        %v1730 = vunpack.c.l.bf16 %v347
        %v1731 = vunpack.c.l.bf16 %v348
        %v1732 = vunpack.c.l.bf16 %v349
        %v1733 = vunpack.c.l.bf16 %v350
        %v1734 = vunpack.c.l.bf16 %v351
        %v1735 = vunpack.c.l.bf16 %v352
        %v1736 = vadd.f32 %v1728, %v1720
        %v1737 = vadd.f32 %v1729, %v1721
        %v1738 = vadd.f32 %v1730, %v1722
        %v1739 = vadd.f32 %v1731, %v1723
        %v1740 = vadd.f32 %v1732, %v1724
        %v1741 = vadd.f32 %v1733, %v1725
        %v1742 = vadd.f32 %v1734, %v1726
        %v1743 = vadd.f32 %v1735, %v1727
        %v1744 = vpack.c.bf16 %v1736, %v1736
        %v1745 = vpack.c.bf16 %v1737, %v1737
        %v1746 = vpack.c.bf16 %v1738, %v1738
        %v1747 = vpack.c.bf16 %v1739, %v1739
        %v1748 = vpack.c.bf16 %v1740, %v1740
        %v1749 = vpack.c.bf16 %v1741, %v1741
        %v1750 = vpack.c.bf16 %v1742, %v1742
        %v1751 = vpack.c.bf16 %v1743, %v1743
        %v1760 = vunpack.c.l.b16 %v1744
        %v1761 = vunpack.c.l.b16 %v1745
        %v1762 = vunpack.c.l.b16 %v1746
        %v1763 = vunpack.c.l.b16 %v1747
        %v1764 = vunpack.c.l.b16 %v1748
        %v1765 = vunpack.c.l.b16 %v1749
        %v1766 = vunpack.c.l.b16 %v1750
        %v1767 = vunpack.c.l.b16 %v1751
        %v1768 = vpack.c.b16 %v1761, %v1760
        %v1769 = vpack.c.b16 %v1763, %v1762
        %v1770 = vpack.c.b16 %v1765, %v1764
        %v1771 = vpack.c.b16 %v1767, %v1766
        %v1773 = vshrl.u32 %v1768, 16
        %v1775 = vrot.slane %v1773, 6
        %v1776 = vshll.u32 %v1768, 16
        %v1778 = vrot.slane %v1776, 7
        %v1779 = vor.u32 %v1775, %v1778
        %v1781 = vshrl.u32 %v1769, 16
        %v1783 = vrot.slane %v1781, 6
        %v1784 = vshll.u32 %v1769, 16
        %v1786 = vrot.slane %v1784, 7
        %v1787 = vor.u32 %v1783, %v1786
        %v1789 = vshrl.u32 %v1770, 16
        %v1791 = vrot.slane %v1789, 6
        %v1792 = vshll.u32 %v1770, 16
        %v1794 = vrot.slane %v1792, 7
        %v1795 = vor.u32 %v1791, %v1794
        %v1797 = vshrl.u32 %v1771, 16
        %v1799 = vrot.slane %v1797, 6
        %v1800 = vshll.u32 %v1771, 16
        %v1802 = vrot.slane %v1800, 7
        %v1803 = vor.u32 %v1799, %v1802
        %v1808 = vsel %vm411, 0, %v1779
        %v1809 = vsel %vm411, 0, %v1787
        %v1810 = vsel %vm411, 0, %v1795
        %v1811 = vsel %vm411, 0, %v1803
        %v1812 = vsel %vm411, %v1779, 0
        %v1813 = vsel %vm411, %v1787, 0
        %v1814 = vsel %vm411, %v1795, 0
        %v1815 = vsel %vm411, %v1803, 0
        %s1816 = scalar_lea.vmem [#allocation2], 224
        %v1817 = vld [vmem:[%s1816] sm:$0xf]
        %v1818 = vld [vmem:[%s1816 + $0x4] sm:$0xf]
        %v1819 = vld [vmem:[%s1816 + $0x8] sm:$0xf]
        %v1820 = vld [vmem:[%s1816 + $0xc] sm:$0xf]
        %v1822 = vshrl.u32 %v1808, 16
        %v1824 = vshll.u32 %v1808, 16
        %v1826 = vrot.slane %v1824, 1
        %v1827 = vor.u32 %v1822, %v1826
        %v1829 = vshll.u32 %v1812, 16
        %v1831 = vrot.slane %v1829, 1
        %v1832 = vsel %vm424, %v1827, %v1831
        %v1834 = vshrl.u32 %v1809, 16
        %v1836 = vshll.u32 %v1809, 16
        %v1838 = vrot.slane %v1836, 1
        %v1839 = vor.u32 %v1834, %v1838
        %v1841 = vshll.u32 %v1813, 16
        %v1843 = vrot.slane %v1841, 1
        %v1844 = vsel %vm424, %v1839, %v1843
        %v1846 = vshrl.u32 %v1810, 16
        %v1848 = vshll.u32 %v1810, 16
        %v1850 = vrot.slane %v1848, 1
        %v1851 = vor.u32 %v1846, %v1850
        %v1853 = vshll.u32 %v1814, 16
        %v1855 = vrot.slane %v1853, 1
        %v1856 = vsel %vm424, %v1851, %v1855
        %v1858 = vshrl.u32 %v1811, 16
        %v1860 = vshll.u32 %v1811, 16
        %v1862 = vrot.slane %v1860, 1
        %v1863 = vor.u32 %v1858, %v1862
        %v1865 = vshll.u32 %v1815, 16
        %v1867 = vrot.slane %v1865, 1
        %v1868 = vsel %vm424, %v1863, %v1867
        %s1869 = scalar_lea.vmem [#allocation2], 240
        %v1870 = vld [vmem:[%s1869] sm:$0xf]
        %v1871 = vld [vmem:[%s1869 + $0x4] sm:$0xf]
        %v1872 = vld [vmem:[%s1869 + $0x8] sm:$0xf]
        %v1873 = vld [vmem:[%s1869 + $0xc] sm:$0xf]
        %v1878 = vunpack.c.l.b16 %v1870
        %v1879 = vunpack.c.l.b16 %v1871
        %v1880 = vunpack.c.l.b16 %v1872
        %v1881 = vunpack.c.l.b16 %v1873
        %v1882 = vpack.c.b16 %v1879, %v1878
        %v1883 = vpack.c.b16 %v1881, %v1880
        %v1887 = vsel %vm490, %v1832, 0
        %v1890 = vsel %vm490, %v1844, 0
        %v1893 = vsel %vm490, %v1856, 0
        %v1896 = vsel %vm490, %v1868, 0
        %1898 = vmatpush.bf16.msra.mxu0 0
        %1899 = vmatpush.bf16.msra.mxu0 0
        %1900 = vmatpush.bf16.msra.mxu0 0
        %1901 = vmatpush.bf16.msra.mxu0 0
        %1902 = vmatpush.bf16.msra.mxu0 0
        %1903 = vmatpush.bf16.msra.mxu0 0
        %1904 = vmatpush.bf16.msra.mxu0 %v1883
        %1905 = vmatpush.bf16.msra.mxu0 %v1882
        %1906 = vmatmul.bf16.gmra.mxu0 %v1887
        %v1907 = vpop.f32.mrf.mxu0
        %v1908 = vadd.f32 0.0, %v1907
        %v1909 = vpop.f32.mrf.mxu0
        %v1910 = vadd.f32 0.0, %v1909
        %1911 = vmatmul.bf16.gmra.mxu0 %v1890
        %v1912 = vpop.f32.mrf.mxu0
        %v1913 = vadd.f32 0.0, %v1912
        %v1914 = vpop.f32.mrf.mxu0
        %v1915 = vadd.f32 0.0, %v1914
        %1916 = vmatmul.bf16.gmra.mxu0 %v1893
        %v1917 = vpop.f32.mrf.mxu0
        %v1918 = vadd.f32 0.0, %v1917
        %v1919 = vpop.f32.mrf.mxu0
        %v1920 = vadd.f32 0.0, %v1919
        %1921 = vmatmul.bf16.gmra.mxu0 %v1896
        %v1922 = vpop.f32.mrf.mxu0
        %v1923 = vadd.f32 0.0, %v1922
        %v1924 = vpop.f32.mrf.mxu0
        %v1925 = vadd.f32 0.0, %v1924
        %1926 = vdwg.mxu0
        %v1931 = vunpack.c.l.b16 %v1817
        %v1932 = vunpack.c.l.b16 %v1818
        %v1933 = vunpack.c.l.b16 %v1819
        %v1934 = vunpack.c.l.b16 %v1820
        %v1935 = vpack.c.b16 %v1932, %v1931
        %v1936 = vpack.c.b16 %v1934, %v1933
        %v1939 = vsel %vm490, %v1808, 0
        %v1941 = vsel %vm490, %v1809, 0
        %v1943 = vsel %vm490, %v1810, 0
        %v1945 = vsel %vm490, %v1811, 0
        %1947 = vmatpush.bf16.msra.mxu0 0
        %1948 = vmatpush.bf16.msra.mxu0 0
        %1949 = vmatpush.bf16.msra.mxu0 0
        %1950 = vmatpush.bf16.msra.mxu0 0
        %1951 = vmatpush.bf16.msra.mxu0 0
        %1952 = vmatpush.bf16.msra.mxu0 0
        %1953 = vmatpush.bf16.msra.mxu0 %v1936
        %1954 = vmatpush.bf16.msra.mxu0 %v1935
        %1955 = vmatmul.bf16.gmra.mxu0 %v1939
        %v1956 = vpop.f32.mrf.mxu0
        %v1957 = vadd.f32 %v1908, %v1956
        %v1958 = vpop.f32.mrf.mxu0
        %v1959 = vadd.f32 %v1910, %v1958
        %1960 = vmatmul.bf16.gmra.mxu0 %v1941
        %v1961 = vpop.f32.mrf.mxu0
        %v1962 = vadd.f32 %v1913, %v1961
        %v1963 = vpop.f32.mrf.mxu0
        %v1964 = vadd.f32 %v1915, %v1963
        %1965 = vmatmul.bf16.gmra.mxu0 %v1943
        %v1966 = vpop.f32.mrf.mxu0
        %v1967 = vadd.f32 %v1918, %v1966
        %v1968 = vpop.f32.mrf.mxu0
        %v1969 = vadd.f32 %v1920, %v1968
        %1970 = vmatmul.bf16.gmra.mxu0 %v1945
        %v1971 = vpop.f32.mrf.mxu0
        %v1972 = vadd.f32 %v1923, %v1971
        %v1973 = vpop.f32.mrf.mxu0
        %v1974 = vadd.f32 %v1925, %v1973
        %1975 = vdwg.mxu0
        %v1984 = vrot.slane %v1808, 1
        %v1985 = vrot.slane %v1812, 1
        %v1986 = vsel %vm589, %v1984, %v1985
        %v1987 = vrot.slane %v1809, 1
        %v1988 = vrot.slane %v1813, 1
        %v1989 = vsel %vm589, %v1987, %v1988
        %v1990 = vrot.slane %v1810, 1
        %v1991 = vrot.slane %v1814, 1
        %v1992 = vsel %vm589, %v1990, %v1991
        %v1993 = vrot.slane %v1811, 1
        %v1994 = vrot.slane %v1815, 1
        %v1995 = vsel %vm589, %v1993, %v1994
        %s1996 = scalar_lea.vmem [#allocation2], 256
        %v1997 = vld [vmem:[%s1996] sm:$0xf]
        %v1998 = vld [vmem:[%s1996 + $0x4] sm:$0xf]
        %v1999 = vld [vmem:[%s1996 + $0x8] sm:$0xf]
        %v2000 = vld [vmem:[%s1996 + $0xc] sm:$0xf]
        %v2005 = vunpack.c.l.b16 %v1997
        %v2006 = vunpack.c.l.b16 %v1998
        %v2007 = vunpack.c.l.b16 %v1999
        %v2008 = vunpack.c.l.b16 %v2000
        %v2009 = vpack.c.b16 %v2006, %v2005
        %v2010 = vpack.c.b16 %v2008, %v2007
        %v2014 = vsel %vm490, %v1986, 0
        %v2017 = vsel %vm490, %v1989, 0
        %v2020 = vsel %vm490, %v1992, 0
        %v2023 = vsel %vm490, %v1995, 0
        %2025 = vmatpush.bf16.msra.mxu0 0
        %2026 = vmatpush.bf16.msra.mxu0 0
        %2027 = vmatpush.bf16.msra.mxu0 0
        %2028 = vmatpush.bf16.msra.mxu0 0
        %2029 = vmatpush.bf16.msra.mxu0 0
        %2030 = vmatpush.bf16.msra.mxu0 0
        %2031 = vmatpush.bf16.msra.mxu0 %v2010
        %2032 = vmatpush.bf16.msra.mxu0 %v2009
        %2033 = vmatmul.bf16.gmra.mxu0 %v2014
        %v2034 = vpop.f32.mrf.mxu0
        %v2035 = vadd.f32 0.0, %v2034
        %v2036 = vpop.f32.mrf.mxu0
        %v2037 = vadd.f32 0.0, %v2036
        %2038 = vmatmul.bf16.gmra.mxu0 %v2017
        %v2039 = vpop.f32.mrf.mxu0
        %v2040 = vadd.f32 0.0, %v2039
        %v2041 = vpop.f32.mrf.mxu0
        %v2042 = vadd.f32 0.0, %v2041
        %2043 = vmatmul.bf16.gmra.mxu0 %v2020
        %v2044 = vpop.f32.mrf.mxu0
        %v2045 = vadd.f32 0.0, %v2044
        %v2046 = vpop.f32.mrf.mxu0
        %v2047 = vadd.f32 0.0, %v2046
        %2048 = vmatmul.bf16.gmra.mxu0 %v2023
        %v2049 = vpop.f32.mrf.mxu0
        %v2050 = vadd.f32 0.0, %v2049
        %v2051 = vpop.f32.mrf.mxu0
        %v2052 = vadd.f32 0.0, %v2051
        %2053 = vdwg.mxu0
        %v2054 = vadd.f32 %v1957, %v2035
        %v2055 = vadd.f32 %v1959, %v2037
        %v2056 = vadd.f32 %v1962, %v2040
        %v2057 = vadd.f32 %v1964, %v2042
        %v2058 = vadd.f32 %v1967, %v2045
        %v2059 = vadd.f32 %v1969, %v2047
        %v2060 = vadd.f32 %v1972, %v2050
        %v2061 = vadd.f32 %v1974, %v2052
        %v2062 = vrot.slane %v1822, 1
        %v2063 = vrot.slane %v1824, 2
        %v2064 = vor.u32 %v2062, %v2063
        %v2065 = vshrl.u32 %v1812, 16
        %v2067 = vrot.slane %v2065, 1
        %v2068 = vrot.slane %v1829, 2
        %v2069 = vor.u32 %v2067, %v2068
        %v2070 = vsel %vm668, %v2064, %v2069
        %v2071 = vrot.slane %v1834, 1
        %v2072 = vrot.slane %v1836, 2
        %v2073 = vor.u32 %v2071, %v2072
        %v2074 = vshrl.u32 %v1813, 16
        %v2076 = vrot.slane %v2074, 1
        %v2077 = vrot.slane %v1841, 2
        %v2078 = vor.u32 %v2076, %v2077
        %v2079 = vsel %vm668, %v2073, %v2078
        %v2080 = vrot.slane %v1846, 1
        %v2081 = vrot.slane %v1848, 2
        %v2082 = vor.u32 %v2080, %v2081
        %v2083 = vshrl.u32 %v1814, 16
        %v2085 = vrot.slane %v2083, 1
        %v2086 = vrot.slane %v1853, 2
        %v2087 = vor.u32 %v2085, %v2086
        %v2088 = vsel %vm668, %v2082, %v2087
        %v2089 = vrot.slane %v1858, 1
        %v2090 = vrot.slane %v1860, 2
        %v2091 = vor.u32 %v2089, %v2090
        %v2092 = vshrl.u32 %v1815, 16
        %v2094 = vrot.slane %v2092, 1
        %v2095 = vrot.slane %v1865, 2
        %v2096 = vor.u32 %v2094, %v2095
        %v2097 = vsel %vm668, %v2091, %v2096
        %s2098 = scalar_lea.vmem [#allocation2], 272
        %v2099 = vld [vmem:[%s2098] sm:$0xf]
        %v2100 = vld [vmem:[%s2098 + $0x4] sm:$0xf]
        %v2101 = vld [vmem:[%s2098 + $0x8] sm:$0xf]
        %v2102 = vld [vmem:[%s2098 + $0xc] sm:$0xf]
        %v2107 = vunpack.c.l.b16 %v2099
        %v2108 = vunpack.c.l.b16 %v2100
        %v2109 = vunpack.c.l.b16 %v2101
        %v2110 = vunpack.c.l.b16 %v2102
        %v2111 = vpack.c.b16 %v2108, %v2107
        %v2112 = vpack.c.b16 %v2110, %v2109
        %v2116 = vsel %vm490, %v2070, 0
        %v2119 = vsel %vm490, %v2079, 0
        %v2122 = vsel %vm490, %v2088, 0
        %v2125 = vsel %vm490, %v2097, 0
        %2127 = vmatpush.bf16.msra.mxu0 0
        %2128 = vmatpush.bf16.msra.mxu0 0
        %2129 = vmatpush.bf16.msra.mxu0 0
        %2130 = vmatpush.bf16.msra.mxu0 0
        %2131 = vmatpush.bf16.msra.mxu0 0
        %2132 = vmatpush.bf16.msra.mxu0 0
        %2133 = vmatpush.bf16.msra.mxu0 %v2112
        %2134 = vmatpush.bf16.msra.mxu0 %v2111
        %2135 = vmatmul.bf16.gmra.mxu0 %v2116
        %v2136 = vpop.f32.mrf.mxu0
        %v2137 = vadd.f32 0.0, %v2136
        %v2138 = vpop.f32.mrf.mxu0
        %v2139 = vadd.f32 0.0, %v2138
        %2140 = vmatmul.bf16.gmra.mxu0 %v2119
        %v2141 = vpop.f32.mrf.mxu0
        %v2142 = vadd.f32 0.0, %v2141
        %v2143 = vpop.f32.mrf.mxu0
        %v2144 = vadd.f32 0.0, %v2143
        %2145 = vmatmul.bf16.gmra.mxu0 %v2122
        %v2146 = vpop.f32.mrf.mxu0
        %v2147 = vadd.f32 0.0, %v2146
        %v2148 = vpop.f32.mrf.mxu0
        %v2149 = vadd.f32 0.0, %v2148
        %2150 = vmatmul.bf16.gmra.mxu0 %v2125
        %v2151 = vpop.f32.mrf.mxu0
        %v2152 = vadd.f32 0.0, %v2151
        %v2153 = vpop.f32.mrf.mxu0
        %v2154 = vadd.f32 0.0, %v2153
        %2155 = vdwg.mxu0
        %v2156 = vadd.f32 %v2054, %v2137
        %v2157 = vadd.f32 %v2055, %v2139
        %v2158 = vadd.f32 %v2056, %v2142
        %v2159 = vadd.f32 %v2057, %v2144
        %v2160 = vadd.f32 %v2058, %v2147
        %v2161 = vadd.f32 %v2059, %v2149
        %v2162 = vadd.f32 %v2060, %v2152
        %v2163 = vadd.f32 %v2061, %v2154
        %v2164 = vrot.slane %v1808, 2
        %v2165 = vrot.slane %v1812, 2
        %v2166 = vsel %vm771, %v2164, %v2165
        %v2167 = vrot.slane %v1809, 2
        %v2168 = vrot.slane %v1813, 2
        %v2169 = vsel %vm771, %v2167, %v2168
        %v2170 = vrot.slane %v1810, 2
        %v2171 = vrot.slane %v1814, 2
        %v2172 = vsel %vm771, %v2170, %v2171
        %v2173 = vrot.slane %v1811, 2
        %v2174 = vrot.slane %v1815, 2
        %v2175 = vsel %vm771, %v2173, %v2174
        %s2176 = scalar_lea.vmem [#allocation2], 288
        %v2177 = vld [vmem:[%s2176] sm:$0xf]
        %v2178 = vld [vmem:[%s2176 + $0x4] sm:$0xf]
        %v2179 = vld [vmem:[%s2176 + $0x8] sm:$0xf]
        %v2180 = vld [vmem:[%s2176 + $0xc] sm:$0xf]
        %v2185 = vunpack.c.l.b16 %v2177
        %v2186 = vunpack.c.l.b16 %v2178
        %v2187 = vunpack.c.l.b16 %v2179
        %v2188 = vunpack.c.l.b16 %v2180
        %v2189 = vpack.c.b16 %v2186, %v2185
        %v2190 = vpack.c.b16 %v2188, %v2187
        %v2194 = vsel %vm490, %v2166, 0
        %v2197 = vsel %vm490, %v2169, 0
        %v2200 = vsel %vm490, %v2172, 0
        %v2203 = vsel %vm490, %v2175, 0
        %2205 = vmatpush.bf16.msra.mxu0 0
        %2206 = vmatpush.bf16.msra.mxu0 0
        %2207 = vmatpush.bf16.msra.mxu0 0
        %2208 = vmatpush.bf16.msra.mxu0 0
        %2209 = vmatpush.bf16.msra.mxu0 0
        %2210 = vmatpush.bf16.msra.mxu0 0
        %2211 = vmatpush.bf16.msra.mxu0 %v2190
        %2212 = vmatpush.bf16.msra.mxu0 %v2189
        %2213 = vmatmul.bf16.gmra.mxu0 %v2194
        %v2214 = vpop.f32.mrf.mxu0
        %v2215 = vadd.f32 0.0, %v2214
        %v2216 = vpop.f32.mrf.mxu0
        %v2217 = vadd.f32 0.0, %v2216
        %2218 = vmatmul.bf16.gmra.mxu0 %v2197
        %v2219 = vpop.f32.mrf.mxu0
        %v2220 = vadd.f32 0.0, %v2219
        %v2221 = vpop.f32.mrf.mxu0
        %v2222 = vadd.f32 0.0, %v2221
        %2223 = vmatmul.bf16.gmra.mxu0 %v2200
        %v2224 = vpop.f32.mrf.mxu0
        %v2225 = vadd.f32 0.0, %v2224
        %v2226 = vpop.f32.mrf.mxu0
        %v2227 = vadd.f32 0.0, %v2226
        %2228 = vmatmul.bf16.gmra.mxu0 %v2203
        %v2229 = vpop.f32.mrf.mxu0
        %v2230 = vadd.f32 0.0, %v2229
        %v2231 = vpop.f32.mrf.mxu0
        %v2232 = vadd.f32 0.0, %v2231
        %2233 = vdwg.mxu0
        %v2234 = vadd.f32 %v2156, %v2215
        %v2235 = vadd.f32 %v2157, %v2217
        %v2236 = vadd.f32 %v2158, %v2220
        %v2237 = vadd.f32 %v2159, %v2222
        %v2238 = vadd.f32 %v2160, %v2225
        %v2239 = vadd.f32 %v2161, %v2227
        %v2240 = vadd.f32 %v2162, %v2230
        %v2241 = vadd.f32 %v2163, %v2232
        %v2242 = vrot.slane %v1822, 2
        %v2243 = vrot.slane %v1824, 3
        %v2244 = vor.u32 %v2242, %v2243
        %v2245 = vrot.slane %v2065, 2
        %v2246 = vrot.slane %v1829, 3
        %v2247 = vor.u32 %v2245, %v2246
        %v2248 = vsel %vm850, %v2244, %v2247
        %v2249 = vrot.slane %v1834, 2
        %v2250 = vrot.slane %v1836, 3
        %v2251 = vor.u32 %v2249, %v2250
        %v2252 = vrot.slane %v2074, 2
        %v2253 = vrot.slane %v1841, 3
        %v2254 = vor.u32 %v2252, %v2253
        %v2255 = vsel %vm850, %v2251, %v2254
        %v2256 = vrot.slane %v1846, 2
        %v2257 = vrot.slane %v1848, 3
        %v2258 = vor.u32 %v2256, %v2257
        %v2259 = vrot.slane %v2083, 2
        %v2260 = vrot.slane %v1853, 3
        %v2261 = vor.u32 %v2259, %v2260
        %v2262 = vsel %vm850, %v2258, %v2261
        %v2263 = vrot.slane %v1858, 2
        %v2264 = vrot.slane %v1860, 3
        %v2265 = vor.u32 %v2263, %v2264
        %v2266 = vrot.slane %v2092, 2
        %v2267 = vrot.slane %v1865, 3
        %v2268 = vor.u32 %v2266, %v2267
        %v2269 = vsel %vm850, %v2265, %v2268
        %s2270 = scalar_lea.vmem [#allocation2], 304
        %v2271 = vld [vmem:[%s2270] sm:$0xf]
        %v2272 = vld [vmem:[%s2270 + $0x4] sm:$0xf]
        %v2273 = vld [vmem:[%s2270 + $0x8] sm:$0xf]
        %v2274 = vld [vmem:[%s2270 + $0xc] sm:$0xf]
        %v2279 = vunpack.c.l.b16 %v2271
        %v2280 = vunpack.c.l.b16 %v2272
        %v2281 = vunpack.c.l.b16 %v2273
        %v2282 = vunpack.c.l.b16 %v2274
        %v2283 = vpack.c.b16 %v2280, %v2279
        %v2284 = vpack.c.b16 %v2282, %v2281
        %v2288 = vsel %vm490, %v2248, 0
        %v2291 = vsel %vm490, %v2255, 0
        %v2294 = vsel %vm490, %v2262, 0
        %v2297 = vsel %vm490, %v2269, 0
        %2299 = vmatpush.bf16.msra.mxu0 0
        %2300 = vmatpush.bf16.msra.mxu0 0
        %2301 = vmatpush.bf16.msra.mxu0 0
        %2302 = vmatpush.bf16.msra.mxu0 0
        %2303 = vmatpush.bf16.msra.mxu0 0
        %2304 = vmatpush.bf16.msra.mxu0 0
        %2305 = vmatpush.bf16.msra.mxu0 %v2284
        %2306 = vmatpush.bf16.msra.mxu0 %v2283
        %2307 = vmatmul.bf16.gmra.mxu0 %v2288
        %v2308 = vpop.f32.mrf.mxu0
        %v2309 = vadd.f32 0.0, %v2308
        %v2310 = vpop.f32.mrf.mxu0
        %v2311 = vadd.f32 0.0, %v2310
        %2312 = vmatmul.bf16.gmra.mxu0 %v2291
        %v2313 = vpop.f32.mrf.mxu0
        %v2314 = vadd.f32 0.0, %v2313
        %v2315 = vpop.f32.mrf.mxu0
        %v2316 = vadd.f32 0.0, %v2315
        %2317 = vmatmul.bf16.gmra.mxu0 %v2294
        %v2318 = vpop.f32.mrf.mxu0
        %v2319 = vadd.f32 0.0, %v2318
        %v2320 = vpop.f32.mrf.mxu0
        %v2321 = vadd.f32 0.0, %v2320
        %2322 = vmatmul.bf16.gmra.mxu0 %v2297
        %v2323 = vpop.f32.mrf.mxu0
        %v2324 = vadd.f32 0.0, %v2323
        %v2325 = vpop.f32.mrf.mxu0
        %v2326 = vadd.f32 0.0, %v2325
        %2327 = vdwg.mxu0
        %v2328 = vadd.f32 %v2234, %v2309
        %v2329 = vadd.f32 %v2235, %v2311
        %v2330 = vadd.f32 %v2236, %v2314
        %v2331 = vadd.f32 %v2237, %v2316
        %v2332 = vadd.f32 %v2238, %v2319
        %v2333 = vadd.f32 %v2239, %v2321
        %v2334 = vadd.f32 %v2240, %v2324
        %v2335 = vadd.f32 %v2241, %v2326
        %v2336 = vrot.slane %v1808, 3
        %v2337 = vrot.slane %v1812, 3
        %v2338 = vsel %vm945, %v2336, %v2337
        %v2339 = vrot.slane %v1809, 3
        %v2340 = vrot.slane %v1813, 3
        %v2341 = vsel %vm945, %v2339, %v2340
        %v2342 = vrot.slane %v1810, 3
        %v2343 = vrot.slane %v1814, 3
        %v2344 = vsel %vm945, %v2342, %v2343
        %v2345 = vrot.slane %v1811, 3
        %v2346 = vrot.slane %v1815, 3
        %v2347 = vsel %vm945, %v2345, %v2346
        %s2348 = scalar_lea.vmem [#allocation2], 320
        %v2349 = vld [vmem:[%s2348] sm:$0xf]
        %v2350 = vld [vmem:[%s2348 + $0x4] sm:$0xf]
        %v2351 = vld [vmem:[%s2348 + $0x8] sm:$0xf]
        %v2352 = vld [vmem:[%s2348 + $0xc] sm:$0xf]
        %v2357 = vunpack.c.l.b16 %v2349
        %v2358 = vunpack.c.l.b16 %v2350
        %v2359 = vunpack.c.l.b16 %v2351
        %v2360 = vunpack.c.l.b16 %v2352
        %v2361 = vpack.c.b16 %v2358, %v2357
        %v2362 = vpack.c.b16 %v2360, %v2359
        %v2366 = vsel %vm490, %v2338, 0
        %v2369 = vsel %vm490, %v2341, 0
        %v2372 = vsel %vm490, %v2344, 0
        %v2375 = vsel %vm490, %v2347, 0
        %2377 = vmatpush.bf16.msra.mxu0 0
        %2378 = vmatpush.bf16.msra.mxu0 0
        %2379 = vmatpush.bf16.msra.mxu0 0
        %2380 = vmatpush.bf16.msra.mxu0 0
        %2381 = vmatpush.bf16.msra.mxu0 0
        %2382 = vmatpush.bf16.msra.mxu0 0
        %2383 = vmatpush.bf16.msra.mxu0 %v2362
        %2384 = vmatpush.bf16.msra.mxu0 %v2361
        %2385 = vmatmul.bf16.gmra.mxu0 %v2366
        %v2386 = vpop.f32.mrf.mxu0
        %v2387 = vadd.f32 0.0, %v2386
        %v2388 = vpop.f32.mrf.mxu0
        %v2389 = vadd.f32 0.0, %v2388
        %2390 = vmatmul.bf16.gmra.mxu0 %v2369
        %v2391 = vpop.f32.mrf.mxu0
        %v2392 = vadd.f32 0.0, %v2391
        %v2393 = vpop.f32.mrf.mxu0
        %v2394 = vadd.f32 0.0, %v2393
        %2395 = vmatmul.bf16.gmra.mxu0 %v2372
        %v2396 = vpop.f32.mrf.mxu0
        %v2397 = vadd.f32 0.0, %v2396
        %v2398 = vpop.f32.mrf.mxu0
        %v2399 = vadd.f32 0.0, %v2398
        %2400 = vmatmul.bf16.gmra.mxu0 %v2375
        %v2401 = vpop.f32.mrf.mxu0
        %v2402 = vadd.f32 0.0, %v2401
        %v2403 = vpop.f32.mrf.mxu0
        %v2404 = vadd.f32 0.0, %v2403
        %2405 = vdwg.mxu0
        %v2406 = vadd.f32 %v2328, %v2387
        %v2407 = vadd.f32 %v2329, %v2389
        %v2408 = vadd.f32 %v2330, %v2392
        %v2409 = vadd.f32 %v2331, %v2394
        %v2410 = vadd.f32 %v2332, %v2397
        %v2411 = vadd.f32 %v2333, %v2399
        %v2412 = vadd.f32 %v2334, %v2402
        %v2413 = vadd.f32 %v2335, %v2404
        %v2414 = vperm.slane %v241, 3
        %v2415 = vadd.f32 %v2406, %v2414
        %v2416 = vadd.f32 %v2407, %v2414
        %v2417 = vadd.f32 %v2408, %v2414
        %v2418 = vadd.f32 %v2409, %v2414
        %v2419 = vadd.f32 %v2410, %v2414
        %v2420 = vadd.f32 %v2411, %v2414
        %v2421 = vadd.f32 %v2412, %v2414
        %v2422 = vadd.f32 %v2413, %v2414
        %v2423 = vmax.f32 %v2415, 0.0
        %v2424 = vmax.f32 %v2416, 0.0
        %v2425 = vmax.f32 %v2417, 0.0
        %v2426 = vmax.f32 %v2418, 0.0
        %v2427 = vmax.f32 %v2419, 0.0
        %v2428 = vmax.f32 %v2420, 0.0
        %v2429 = vmax.f32 %v2421, 0.0
        %v2430 = vmax.f32 %v2422, 0.0
        %v2431 = vpack.c.bf16 %v2423, %v2423
        %v2432 = vpack.c.bf16 %v2424, %v2424
        %v2433 = vpack.c.bf16 %v2425, %v2425
        %v2434 = vpack.c.bf16 %v2426, %v2426
        %v2435 = vpack.c.bf16 %v2427, %v2427
        %v2436 = vpack.c.bf16 %v2428, %v2428
        %v2437 = vpack.c.bf16 %v2429, %v2429
        %v2438 = vpack.c.bf16 %v2430, %v2430
        %v2447 = vunpack.c.l.b16 %v2431
        %v2448 = vunpack.c.l.b16 %v2432
        %v2449 = vunpack.c.l.b16 %v2433
        %v2450 = vunpack.c.l.b16 %v2434
        %v2451 = vunpack.c.l.b16 %v2435
        %v2452 = vunpack.c.l.b16 %v2436
        %v2453 = vunpack.c.l.b16 %v2437
        %v2454 = vunpack.c.l.b16 %v2438
        %v2455 = vpack.c.b16 %v2448, %v2447
        %v2456 = vpack.c.b16 %v2450, %v2449
        %v2457 = vpack.c.b16 %v2452, %v2451
        %v2458 = vpack.c.b16 %v2454, %v2453
        %v2460 = vshrl.u32 %v2455, 16
        %v2462 = vrot.slane %v2460, 6
        %v2463 = vshll.u32 %v2455, 16
        %v2465 = vrot.slane %v2463, 7
        %v2466 = vor.u32 %v2462, %v2465
        %v2468 = vshrl.u32 %v2456, 16
        %v2470 = vrot.slane %v2468, 6
        %v2471 = vshll.u32 %v2456, 16
        %v2473 = vrot.slane %v2471, 7
        %v2474 = vor.u32 %v2470, %v2473
        %v2476 = vshrl.u32 %v2457, 16
        %v2478 = vrot.slane %v2476, 6
        %v2479 = vshll.u32 %v2457, 16
        %v2481 = vrot.slane %v2479, 7
        %v2482 = vor.u32 %v2478, %v2481
        %v2484 = vshrl.u32 %v2458, 16
        %v2486 = vrot.slane %v2484, 6
        %v2487 = vshll.u32 %v2458, 16
        %v2489 = vrot.slane %v2487, 7
        %v2490 = vor.u32 %v2486, %v2489
        %v2495 = vsel %vm411, 0, %v2466
        %v2496 = vsel %vm411, 0, %v2474
        %v2497 = vsel %vm411, 0, %v2482
        %v2498 = vsel %vm411, 0, %v2490
        %v2499 = vsel %vm411, %v2466, 0
        %v2500 = vsel %vm411, %v2474, 0
        %v2501 = vsel %vm411, %v2482, 0
        %v2502 = vsel %vm411, %v2490, 0
        %s2503 = scalar_lea.vmem [#allocation2], 336
        %v2504 = vld [vmem:[%s2503] sm:$0xf]
        %v2505 = vld [vmem:[%s2503 + $0x4] sm:$0xf]
        %v2506 = vld [vmem:[%s2503 + $0x8] sm:$0xf]
        %v2507 = vld [vmem:[%s2503 + $0xc] sm:$0xf]
        %v2509 = vshrl.u32 %v2495, 16
        %v2511 = vshll.u32 %v2495, 16
        %v2513 = vrot.slane %v2511, 1
        %v2514 = vor.u32 %v2509, %v2513
        %v2516 = vshll.u32 %v2499, 16
        %v2518 = vrot.slane %v2516, 1
        %v2519 = vsel %vm424, %v2514, %v2518
        %v2521 = vshrl.u32 %v2496, 16
        %v2523 = vshll.u32 %v2496, 16
        %v2525 = vrot.slane %v2523, 1
        %v2526 = vor.u32 %v2521, %v2525
        %v2528 = vshll.u32 %v2500, 16
        %v2530 = vrot.slane %v2528, 1
        %v2531 = vsel %vm424, %v2526, %v2530
        %v2533 = vshrl.u32 %v2497, 16
        %v2535 = vshll.u32 %v2497, 16
        %v2537 = vrot.slane %v2535, 1
        %v2538 = vor.u32 %v2533, %v2537
        %v2540 = vshll.u32 %v2501, 16
        %v2542 = vrot.slane %v2540, 1
        %v2543 = vsel %vm424, %v2538, %v2542
        %v2545 = vshrl.u32 %v2498, 16
        %v2547 = vshll.u32 %v2498, 16
        %v2549 = vrot.slane %v2547, 1
        %v2550 = vor.u32 %v2545, %v2549
        %v2552 = vshll.u32 %v2502, 16
        %v2554 = vrot.slane %v2552, 1
        %v2555 = vsel %vm424, %v2550, %v2554
        %s2556 = scalar_lea.vmem [#allocation2], 352
        %v2557 = vld [vmem:[%s2556] sm:$0xf]
        %v2558 = vld [vmem:[%s2556 + $0x4] sm:$0xf]
        %v2559 = vld [vmem:[%s2556 + $0x8] sm:$0xf]
        %v2560 = vld [vmem:[%s2556 + $0xc] sm:$0xf]
        %v2565 = vunpack.c.l.b16 %v2557
        %v2566 = vunpack.c.l.b16 %v2558
        %v2567 = vunpack.c.l.b16 %v2559
        %v2568 = vunpack.c.l.b16 %v2560
        %v2569 = vpack.c.b16 %v2566, %v2565
        %v2570 = vpack.c.b16 %v2568, %v2567
        %v2574 = vsel %vm490, %v2519, 0
        %v2577 = vsel %vm490, %v2531, 0
        %v2580 = vsel %vm490, %v2543, 0
        %v2583 = vsel %vm490, %v2555, 0
        %2585 = vmatpush.bf16.msra.mxu0 0
        %2586 = vmatpush.bf16.msra.mxu0 0
        %2587 = vmatpush.bf16.msra.mxu0 0
        %2588 = vmatpush.bf16.msra.mxu0 0
        %2589 = vmatpush.bf16.msra.mxu0 0
        %2590 = vmatpush.bf16.msra.mxu0 0
        %2591 = vmatpush.bf16.msra.mxu0 %v2570
        %2592 = vmatpush.bf16.msra.mxu0 %v2569
        %2593 = vmatmul.bf16.gmra.mxu0 %v2574
        %v2594 = vpop.f32.mrf.mxu0
        %v2595 = vadd.f32 0.0, %v2594
        %v2596 = vpop.f32.mrf.mxu0
        %v2597 = vadd.f32 0.0, %v2596
        %2598 = vmatmul.bf16.gmra.mxu0 %v2577
        %v2599 = vpop.f32.mrf.mxu0
        %v2600 = vadd.f32 0.0, %v2599
        %v2601 = vpop.f32.mrf.mxu0
        %v2602 = vadd.f32 0.0, %v2601
        %2603 = vmatmul.bf16.gmra.mxu0 %v2580
        %v2604 = vpop.f32.mrf.mxu0
        %v2605 = vadd.f32 0.0, %v2604
        %v2606 = vpop.f32.mrf.mxu0
        %v2607 = vadd.f32 0.0, %v2606
        %2608 = vmatmul.bf16.gmra.mxu0 %v2583
        %v2609 = vpop.f32.mrf.mxu0
        %v2610 = vadd.f32 0.0, %v2609
        %v2611 = vpop.f32.mrf.mxu0
        %v2612 = vadd.f32 0.0, %v2611
        %2613 = vdwg.mxu0
        %v2618 = vunpack.c.l.b16 %v2504
        %v2619 = vunpack.c.l.b16 %v2505
        %v2620 = vunpack.c.l.b16 %v2506
        %v2621 = vunpack.c.l.b16 %v2507
        %v2622 = vpack.c.b16 %v2619, %v2618
        %v2623 = vpack.c.b16 %v2621, %v2620
        %v2626 = vsel %vm490, %v2495, 0
        %v2628 = vsel %vm490, %v2496, 0
        %v2630 = vsel %vm490, %v2497, 0
        %v2632 = vsel %vm490, %v2498, 0
        %2634 = vmatpush.bf16.msra.mxu0 0
        %2635 = vmatpush.bf16.msra.mxu0 0
        %2636 = vmatpush.bf16.msra.mxu0 0
        %2637 = vmatpush.bf16.msra.mxu0 0
        %2638 = vmatpush.bf16.msra.mxu0 0
        %2639 = vmatpush.bf16.msra.mxu0 0
        %2640 = vmatpush.bf16.msra.mxu0 %v2623
        %2641 = vmatpush.bf16.msra.mxu0 %v2622
        %2642 = vmatmul.bf16.gmra.mxu0 %v2626
        %v2643 = vpop.f32.mrf.mxu0
        %v2644 = vadd.f32 %v2595, %v2643
        %v2645 = vpop.f32.mrf.mxu0
        %v2646 = vadd.f32 %v2597, %v2645
        %2647 = vmatmul.bf16.gmra.mxu0 %v2628
        %v2648 = vpop.f32.mrf.mxu0
        %v2649 = vadd.f32 %v2600, %v2648
        %v2650 = vpop.f32.mrf.mxu0
        %v2651 = vadd.f32 %v2602, %v2650
        %2652 = vmatmul.bf16.gmra.mxu0 %v2630
        %v2653 = vpop.f32.mrf.mxu0
        %v2654 = vadd.f32 %v2605, %v2653
        %v2655 = vpop.f32.mrf.mxu0
        %v2656 = vadd.f32 %v2607, %v2655
        %2657 = vmatmul.bf16.gmra.mxu0 %v2632
        %v2658 = vpop.f32.mrf.mxu0
        %v2659 = vadd.f32 %v2610, %v2658
        %v2660 = vpop.f32.mrf.mxu0
        %v2661 = vadd.f32 %v2612, %v2660
        %2662 = vdwg.mxu0
        %v2671 = vrot.slane %v2495, 1
        %v2672 = vrot.slane %v2499, 1
        %v2673 = vsel %vm589, %v2671, %v2672
        %v2674 = vrot.slane %v2496, 1
        %v2675 = vrot.slane %v2500, 1
        %v2676 = vsel %vm589, %v2674, %v2675
        %v2677 = vrot.slane %v2497, 1
        %v2678 = vrot.slane %v2501, 1
        %v2679 = vsel %vm589, %v2677, %v2678
        %v2680 = vrot.slane %v2498, 1
        %v2681 = vrot.slane %v2502, 1
        %v2682 = vsel %vm589, %v2680, %v2681
        %s2683 = scalar_lea.vmem [#allocation2], 368
        %v2684 = vld [vmem:[%s2683] sm:$0xf]
        %v2685 = vld [vmem:[%s2683 + $0x4] sm:$0xf]
        %v2686 = vld [vmem:[%s2683 + $0x8] sm:$0xf]
        %v2687 = vld [vmem:[%s2683 + $0xc] sm:$0xf]
        %v2692 = vunpack.c.l.b16 %v2684
        %v2693 = vunpack.c.l.b16 %v2685
        %v2694 = vunpack.c.l.b16 %v2686
        %v2695 = vunpack.c.l.b16 %v2687
        %v2696 = vpack.c.b16 %v2693, %v2692
        %v2697 = vpack.c.b16 %v2695, %v2694
        %v2701 = vsel %vm490, %v2673, 0
        %v2704 = vsel %vm490, %v2676, 0
        %v2707 = vsel %vm490, %v2679, 0
        %v2710 = vsel %vm490, %v2682, 0
        %2712 = vmatpush.bf16.msra.mxu0 0
        %2713 = vmatpush.bf16.msra.mxu0 0
        %2714 = vmatpush.bf16.msra.mxu0 0
        %2715 = vmatpush.bf16.msra.mxu0 0
        %2716 = vmatpush.bf16.msra.mxu0 0
        %2717 = vmatpush.bf16.msra.mxu0 0
        %2718 = vmatpush.bf16.msra.mxu0 %v2697
        %2719 = vmatpush.bf16.msra.mxu0 %v2696
        %2720 = vmatmul.bf16.gmra.mxu0 %v2701
        %v2721 = vpop.f32.mrf.mxu0
        %v2722 = vadd.f32 0.0, %v2721
        %v2723 = vpop.f32.mrf.mxu0
        %v2724 = vadd.f32 0.0, %v2723
        %2725 = vmatmul.bf16.gmra.mxu0 %v2704
        %v2726 = vpop.f32.mrf.mxu0
        %v2727 = vadd.f32 0.0, %v2726
        %v2728 = vpop.f32.mrf.mxu0
        %v2729 = vadd.f32 0.0, %v2728
        %2730 = vmatmul.bf16.gmra.mxu0 %v2707
        %v2731 = vpop.f32.mrf.mxu0
        %v2732 = vadd.f32 0.0, %v2731
        %v2733 = vpop.f32.mrf.mxu0
        %v2734 = vadd.f32 0.0, %v2733
        %2735 = vmatmul.bf16.gmra.mxu0 %v2710
        %v2736 = vpop.f32.mrf.mxu0
        %v2737 = vadd.f32 0.0, %v2736
        %v2738 = vpop.f32.mrf.mxu0
        %v2739 = vadd.f32 0.0, %v2738
        %2740 = vdwg.mxu0
        %v2741 = vadd.f32 %v2644, %v2722
        %v2742 = vadd.f32 %v2646, %v2724
        %v2743 = vadd.f32 %v2649, %v2727
        %v2744 = vadd.f32 %v2651, %v2729
        %v2745 = vadd.f32 %v2654, %v2732
        %v2746 = vadd.f32 %v2656, %v2734
        %v2747 = vadd.f32 %v2659, %v2737
        %v2748 = vadd.f32 %v2661, %v2739
        %v2749 = vrot.slane %v2509, 1
        %v2750 = vrot.slane %v2511, 2
        %v2751 = vor.u32 %v2749, %v2750
        %v2752 = vshrl.u32 %v2499, 16
        %v2754 = vrot.slane %v2752, 1
        %v2755 = vrot.slane %v2516, 2
        %v2756 = vor.u32 %v2754, %v2755
        %v2757 = vsel %vm668, %v2751, %v2756
        %v2758 = vrot.slane %v2521, 1
        %v2759 = vrot.slane %v2523, 2
        %v2760 = vor.u32 %v2758, %v2759
        %v2761 = vshrl.u32 %v2500, 16
        %v2763 = vrot.slane %v2761, 1
        %v2764 = vrot.slane %v2528, 2
        %v2765 = vor.u32 %v2763, %v2764
        %v2766 = vsel %vm668, %v2760, %v2765
        %v2767 = vrot.slane %v2533, 1
        %v2768 = vrot.slane %v2535, 2
        %v2769 = vor.u32 %v2767, %v2768
        %v2770 = vshrl.u32 %v2501, 16
        %v2772 = vrot.slane %v2770, 1
        %v2773 = vrot.slane %v2540, 2
        %v2774 = vor.u32 %v2772, %v2773
        %v2775 = vsel %vm668, %v2769, %v2774
        %v2776 = vrot.slane %v2545, 1
        %v2777 = vrot.slane %v2547, 2
        %v2778 = vor.u32 %v2776, %v2777
        %v2779 = vshrl.u32 %v2502, 16
        %v2781 = vrot.slane %v2779, 1
        %v2782 = vrot.slane %v2552, 2
        %v2783 = vor.u32 %v2781, %v2782
        %v2784 = vsel %vm668, %v2778, %v2783
        %s2785 = scalar_lea.vmem [#allocation2], 384
        %v2786 = vld [vmem:[%s2785] sm:$0xf]
        %v2787 = vld [vmem:[%s2785 + $0x4] sm:$0xf]
        %v2788 = vld [vmem:[%s2785 + $0x8] sm:$0xf]
        %v2789 = vld [vmem:[%s2785 + $0xc] sm:$0xf]
        %v2794 = vunpack.c.l.b16 %v2786
        %v2795 = vunpack.c.l.b16 %v2787
        %v2796 = vunpack.c.l.b16 %v2788
        %v2797 = vunpack.c.l.b16 %v2789
        %v2798 = vpack.c.b16 %v2795, %v2794
        %v2799 = vpack.c.b16 %v2797, %v2796
        %v2803 = vsel %vm490, %v2757, 0
        %v2806 = vsel %vm490, %v2766, 0
        %v2809 = vsel %vm490, %v2775, 0
        %v2812 = vsel %vm490, %v2784, 0
        %2814 = vmatpush.bf16.msra.mxu0 0
        %2815 = vmatpush.bf16.msra.mxu0 0
        %2816 = vmatpush.bf16.msra.mxu0 0
        %2817 = vmatpush.bf16.msra.mxu0 0
        %2818 = vmatpush.bf16.msra.mxu0 0
        %2819 = vmatpush.bf16.msra.mxu0 0
        %2820 = vmatpush.bf16.msra.mxu0 %v2799
        %2821 = vmatpush.bf16.msra.mxu0 %v2798
        %2822 = vmatmul.bf16.gmra.mxu0 %v2803
        %v2823 = vpop.f32.mrf.mxu0
        %v2824 = vadd.f32 0.0, %v2823
        %v2825 = vpop.f32.mrf.mxu0
        %v2826 = vadd.f32 0.0, %v2825
        %2827 = vmatmul.bf16.gmra.mxu0 %v2806
        %v2828 = vpop.f32.mrf.mxu0
        %v2829 = vadd.f32 0.0, %v2828
        %v2830 = vpop.f32.mrf.mxu0
        %v2831 = vadd.f32 0.0, %v2830
        %2832 = vmatmul.bf16.gmra.mxu0 %v2809
        %v2833 = vpop.f32.mrf.mxu0
        %v2834 = vadd.f32 0.0, %v2833
        %v2835 = vpop.f32.mrf.mxu0
        %v2836 = vadd.f32 0.0, %v2835
        %2837 = vmatmul.bf16.gmra.mxu0 %v2812
        %v2838 = vpop.f32.mrf.mxu0
        %v2839 = vadd.f32 0.0, %v2838
        %v2840 = vpop.f32.mrf.mxu0
        %v2841 = vadd.f32 0.0, %v2840
        %2842 = vdwg.mxu0
        %v2843 = vadd.f32 %v2741, %v2824
        %v2844 = vadd.f32 %v2742, %v2826
        %v2845 = vadd.f32 %v2743, %v2829
        %v2846 = vadd.f32 %v2744, %v2831
        %v2847 = vadd.f32 %v2745, %v2834
        %v2848 = vadd.f32 %v2746, %v2836
        %v2849 = vadd.f32 %v2747, %v2839
        %v2850 = vadd.f32 %v2748, %v2841
        %v2851 = vrot.slane %v2495, 2
        %v2852 = vrot.slane %v2499, 2
        %v2853 = vsel %vm771, %v2851, %v2852
        %v2854 = vrot.slane %v2496, 2
        %v2855 = vrot.slane %v2500, 2
        %v2856 = vsel %vm771, %v2854, %v2855
        %v2857 = vrot.slane %v2497, 2
        %v2858 = vrot.slane %v2501, 2
        %v2859 = vsel %vm771, %v2857, %v2858
        %v2860 = vrot.slane %v2498, 2
        %v2861 = vrot.slane %v2502, 2
        %v2862 = vsel %vm771, %v2860, %v2861
        %s2863 = scalar_lea.vmem [#allocation2], 400
        %v2864 = vld [vmem:[%s2863] sm:$0xf]
        %v2865 = vld [vmem:[%s2863 + $0x4] sm:$0xf]
        %v2866 = vld [vmem:[%s2863 + $0x8] sm:$0xf]
        %v2867 = vld [vmem:[%s2863 + $0xc] sm:$0xf]
        %v2872 = vunpack.c.l.b16 %v2864
        %v2873 = vunpack.c.l.b16 %v2865
        %v2874 = vunpack.c.l.b16 %v2866
        %v2875 = vunpack.c.l.b16 %v2867
        %v2876 = vpack.c.b16 %v2873, %v2872
        %v2877 = vpack.c.b16 %v2875, %v2874
        %v2881 = vsel %vm490, %v2853, 0
        %v2884 = vsel %vm490, %v2856, 0
        %v2887 = vsel %vm490, %v2859, 0
        %v2890 = vsel %vm490, %v2862, 0
        %2892 = vmatpush.bf16.msra.mxu0 0
        %2893 = vmatpush.bf16.msra.mxu0 0
        %2894 = vmatpush.bf16.msra.mxu0 0
        %2895 = vmatpush.bf16.msra.mxu0 0
        %2896 = vmatpush.bf16.msra.mxu0 0
        %2897 = vmatpush.bf16.msra.mxu0 0
        %2898 = vmatpush.bf16.msra.mxu0 %v2877
        %2899 = vmatpush.bf16.msra.mxu0 %v2876
        %2900 = vmatmul.bf16.gmra.mxu0 %v2881
        %v2901 = vpop.f32.mrf.mxu0
        %v2902 = vadd.f32 0.0, %v2901
        %v2903 = vpop.f32.mrf.mxu0
        %v2904 = vadd.f32 0.0, %v2903
        %2905 = vmatmul.bf16.gmra.mxu0 %v2884
        %v2906 = vpop.f32.mrf.mxu0
        %v2907 = vadd.f32 0.0, %v2906
        %v2908 = vpop.f32.mrf.mxu0
        %v2909 = vadd.f32 0.0, %v2908
        %2910 = vmatmul.bf16.gmra.mxu0 %v2887
        %v2911 = vpop.f32.mrf.mxu0
        %v2912 = vadd.f32 0.0, %v2911
        %v2913 = vpop.f32.mrf.mxu0
        %v2914 = vadd.f32 0.0, %v2913
        %2915 = vmatmul.bf16.gmra.mxu0 %v2890
        %v2916 = vpop.f32.mrf.mxu0
        %v2917 = vadd.f32 0.0, %v2916
        %v2918 = vpop.f32.mrf.mxu0
        %v2919 = vadd.f32 0.0, %v2918
        %2920 = vdwg.mxu0
        %v2921 = vadd.f32 %v2843, %v2902
        %v2922 = vadd.f32 %v2844, %v2904
        %v2923 = vadd.f32 %v2845, %v2907
        %v2924 = vadd.f32 %v2846, %v2909
        %v2925 = vadd.f32 %v2847, %v2912
        %v2926 = vadd.f32 %v2848, %v2914
        %v2927 = vadd.f32 %v2849, %v2917
        %v2928 = vadd.f32 %v2850, %v2919
        %v2929 = vrot.slane %v2509, 2
        %v2930 = vrot.slane %v2511, 3
        %v2931 = vor.u32 %v2929, %v2930
        %v2932 = vrot.slane %v2752, 2
        %v2933 = vrot.slane %v2516, 3
        %v2934 = vor.u32 %v2932, %v2933
        %v2935 = vsel %vm850, %v2931, %v2934
        %v2936 = vrot.slane %v2521, 2
        %v2937 = vrot.slane %v2523, 3
        %v2938 = vor.u32 %v2936, %v2937
        %v2939 = vrot.slane %v2761, 2
        %v2940 = vrot.slane %v2528, 3
        %v2941 = vor.u32 %v2939, %v2940
        %v2942 = vsel %vm850, %v2938, %v2941
        %v2943 = vrot.slane %v2533, 2
        %v2944 = vrot.slane %v2535, 3
        %v2945 = vor.u32 %v2943, %v2944
        %v2946 = vrot.slane %v2770, 2
        %v2947 = vrot.slane %v2540, 3
        %v2948 = vor.u32 %v2946, %v2947
        %v2949 = vsel %vm850, %v2945, %v2948
        %v2950 = vrot.slane %v2545, 2
        %v2951 = vrot.slane %v2547, 3
        %v2952 = vor.u32 %v2950, %v2951
        %v2953 = vrot.slane %v2779, 2
        %v2954 = vrot.slane %v2552, 3
        %v2955 = vor.u32 %v2953, %v2954
        %v2956 = vsel %vm850, %v2952, %v2955
        %s2957 = scalar_lea.vmem [#allocation2], 416
        %v2958 = vld [vmem:[%s2957] sm:$0xf]
        %v2959 = vld [vmem:[%s2957 + $0x4] sm:$0xf]
        %v2960 = vld [vmem:[%s2957 + $0x8] sm:$0xf]
        %v2961 = vld [vmem:[%s2957 + $0xc] sm:$0xf]
        %v2966 = vunpack.c.l.b16 %v2958
        %v2967 = vunpack.c.l.b16 %v2959
        %v2968 = vunpack.c.l.b16 %v2960
        %v2969 = vunpack.c.l.b16 %v2961
        %v2970 = vpack.c.b16 %v2967, %v2966
        %v2971 = vpack.c.b16 %v2969, %v2968
        %v2975 = vsel %vm490, %v2935, 0
        %v2978 = vsel %vm490, %v2942, 0
        %v2981 = vsel %vm490, %v2949, 0
        %v2984 = vsel %vm490, %v2956, 0
        %2986 = vmatpush.bf16.msra.mxu0 0
        %2987 = vmatpush.bf16.msra.mxu0 0
        %2988 = vmatpush.bf16.msra.mxu0 0
        %2989 = vmatpush.bf16.msra.mxu0 0
        %2990 = vmatpush.bf16.msra.mxu0 0
        %2991 = vmatpush.bf16.msra.mxu0 0
        %2992 = vmatpush.bf16.msra.mxu0 %v2971
        %2993 = vmatpush.bf16.msra.mxu0 %v2970
        %2994 = vmatmul.bf16.gmra.mxu0 %v2975
        %v2995 = vpop.f32.mrf.mxu0
        %v2996 = vadd.f32 0.0, %v2995
        %v2997 = vpop.f32.mrf.mxu0
        %v2998 = vadd.f32 0.0, %v2997
        %2999 = vmatmul.bf16.gmra.mxu0 %v2978
        %v3000 = vpop.f32.mrf.mxu0
        %v3001 = vadd.f32 0.0, %v3000
        %v3002 = vpop.f32.mrf.mxu0
        %v3003 = vadd.f32 0.0, %v3002
        %3004 = vmatmul.bf16.gmra.mxu0 %v2981
        %v3005 = vpop.f32.mrf.mxu0
        %v3006 = vadd.f32 0.0, %v3005
        %v3007 = vpop.f32.mrf.mxu0
        %v3008 = vadd.f32 0.0, %v3007
        %3009 = vmatmul.bf16.gmra.mxu0 %v2984
        %v3010 = vpop.f32.mrf.mxu0
        %v3011 = vadd.f32 0.0, %v3010
        %v3012 = vpop.f32.mrf.mxu0
        %v3013 = vadd.f32 0.0, %v3012
        %3014 = vdwg.mxu0
        %v3015 = vadd.f32 %v2921, %v2996
        %v3016 = vadd.f32 %v2922, %v2998
        %v3017 = vadd.f32 %v2923, %v3001
        %v3018 = vadd.f32 %v2924, %v3003
        %v3019 = vadd.f32 %v2925, %v3006
        %v3020 = vadd.f32 %v2926, %v3008
        %v3021 = vadd.f32 %v2927, %v3011
        %v3022 = vadd.f32 %v2928, %v3013
        %v3023 = vrot.slane %v2495, 3
        %v3024 = vrot.slane %v2499, 3
        %v3025 = vsel %vm945, %v3023, %v3024
        %v3026 = vrot.slane %v2496, 3
        %v3027 = vrot.slane %v2500, 3
        %v3028 = vsel %vm945, %v3026, %v3027
        %v3029 = vrot.slane %v2497, 3
        %v3030 = vrot.slane %v2501, 3
        %v3031 = vsel %vm945, %v3029, %v3030
        %v3032 = vrot.slane %v2498, 3
        %v3033 = vrot.slane %v2502, 3
        %v3034 = vsel %vm945, %v3032, %v3033
        %s3035 = scalar_lea.vmem [#allocation2], 432
        %v3036 = vld [vmem:[%s3035] sm:$0xf]
        %v3037 = vld [vmem:[%s3035 + $0x4] sm:$0xf]
        %v3038 = vld [vmem:[%s3035 + $0x8] sm:$0xf]
        %v3039 = vld [vmem:[%s3035 + $0xc] sm:$0xf]
        %v3044 = vunpack.c.l.b16 %v3036
        %v3045 = vunpack.c.l.b16 %v3037
        %v3046 = vunpack.c.l.b16 %v3038
        %v3047 = vunpack.c.l.b16 %v3039
        %v3048 = vpack.c.b16 %v3045, %v3044
        %v3049 = vpack.c.b16 %v3047, %v3046
        %v3053 = vsel %vm490, %v3025, 0
        %v3056 = vsel %vm490, %v3028, 0
        %v3059 = vsel %vm490, %v3031, 0
        %v3062 = vsel %vm490, %v3034, 0
        %3064 = vmatpush.bf16.msra.mxu0 0
        %3065 = vmatpush.bf16.msra.mxu0 0
        %3066 = vmatpush.bf16.msra.mxu0 0
        %3067 = vmatpush.bf16.msra.mxu0 0
        %3068 = vmatpush.bf16.msra.mxu0 0
        %3069 = vmatpush.bf16.msra.mxu0 0
        %3070 = vmatpush.bf16.msra.mxu0 %v3049
        %3071 = vmatpush.bf16.msra.mxu0 %v3048
        %3072 = vmatmul.bf16.gmra.mxu0 %v3053
        %v3073 = vpop.f32.mrf.mxu0
        %v3074 = vadd.f32 0.0, %v3073
        %v3075 = vpop.f32.mrf.mxu0
        %v3076 = vadd.f32 0.0, %v3075
        %3077 = vmatmul.bf16.gmra.mxu0 %v3056
        %v3078 = vpop.f32.mrf.mxu0
        %v3079 = vadd.f32 0.0, %v3078
        %v3080 = vpop.f32.mrf.mxu0
        %v3081 = vadd.f32 0.0, %v3080
        %3082 = vmatmul.bf16.gmra.mxu0 %v3059
        %v3083 = vpop.f32.mrf.mxu0
        %v3084 = vadd.f32 0.0, %v3083
        %v3085 = vpop.f32.mrf.mxu0
        %v3086 = vadd.f32 0.0, %v3085
        %3087 = vmatmul.bf16.gmra.mxu0 %v3062
        %v3088 = vpop.f32.mrf.mxu0
        %v3089 = vadd.f32 0.0, %v3088
        %v3090 = vpop.f32.mrf.mxu0
        %v3091 = vadd.f32 0.0, %v3090
        %3092 = vdwg.mxu0
        %v3093 = vadd.f32 %v3015, %v3074
        %v3094 = vadd.f32 %v3016, %v3076
        %v3095 = vadd.f32 %v3017, %v3079
        %v3096 = vadd.f32 %v3018, %v3081
        %v3097 = vadd.f32 %v3019, %v3084
        %v3098 = vadd.f32 %v3020, %v3086
        %v3099 = vadd.f32 %v3021, %v3089
        %v3100 = vadd.f32 %v3022, %v3091
        %v3101 = vperm.slane %v241, 4
        %v3102 = vadd.f32 %v3093, %v3101
        %v3103 = vadd.f32 %v3094, %v3101
        %v3104 = vadd.f32 %v3095, %v3101
        %v3105 = vadd.f32 %v3096, %v3101
        %v3106 = vadd.f32 %v3097, %v3101
        %v3107 = vadd.f32 %v3098, %v3101
        %v3108 = vadd.f32 %v3099, %v3101
        %v3109 = vadd.f32 %v3100, %v3101
        %v3110 = vmax.f32 %v3102, 0.0
        %v3111 = vmax.f32 %v3103, 0.0
        %v3112 = vmax.f32 %v3104, 0.0
        %v3113 = vmax.f32 %v3105, 0.0
        %v3114 = vmax.f32 %v3106, 0.0
        %v3115 = vmax.f32 %v3107, 0.0
        %v3116 = vmax.f32 %v3108, 0.0
        %v3117 = vmax.f32 %v3109, 0.0
        %v3118 = vunpack.c.l.bf16 %v1744
        %v3119 = vunpack.c.l.bf16 %v1745
        %v3120 = vunpack.c.l.bf16 %v1746
        %v3121 = vunpack.c.l.bf16 %v1747
        %v3122 = vunpack.c.l.bf16 %v1748
        %v3123 = vunpack.c.l.bf16 %v1749
        %v3124 = vunpack.c.l.bf16 %v1750
        %v3125 = vunpack.c.l.bf16 %v1751
        %v3126 = vadd.f32 %v3118, %v3110
        %v3127 = vadd.f32 %v3119, %v3111
        %v3128 = vadd.f32 %v3120, %v3112
        %v3129 = vadd.f32 %v3121, %v3113
        %v3130 = vadd.f32 %v3122, %v3114
        %v3131 = vadd.f32 %v3123, %v3115
        %v3132 = vadd.f32 %v3124, %v3116
        %v3133 = vadd.f32 %v3125, %v3117
        %v3134 = vpack.c.bf16 %v3126, %v3126
        %v3135 = vpack.c.bf16 %v3127, %v3127
        %v3136 = vpack.c.bf16 %v3128, %v3128
        %v3137 = vpack.c.bf16 %v3129, %v3129
        %v3138 = vpack.c.bf16 %v3130, %v3130
        %v3139 = vpack.c.bf16 %v3131, %v3131
        %v3140 = vpack.c.bf16 %v3132, %v3132
        %v3141 = vpack.c.bf16 %v3133, %v3133
        %v3146 = vunpack.c.l.b16 %v3134
        %v3147 = vunpack.c.l.b16 %v3136
        %v3148 = vunpack.c.l.b16 %v3138
        %v3149 = vunpack.c.l.b16 %v3140
        %v3150 = vpack.c.b16 %v3146, %v3146
        %v3151 = vpack.c.b16 %v3147, %v3147
        %v3152 = vpack.c.b16 %v3148, %v3148
        %v3153 = vpack.c.b16 %v3149, %v3149
        %v3155 = vshrl.u32 %v3150, 16
        %v3158 = vshrl.u32 %v3151, 16
        %v3161 = vshrl.u32 %v3152, 16
        %v3164 = vshrl.u32 %v3153, 16
        %3166 = vrot.lane.b32.xlu0 %v3155, 32
        %v3167 = vpop.permute.xlu0 %3166
        %3168 = vrot.lane.b32.xlu0 %v3158, 32
        %v3169 = vpop.permute.xlu0 %3168
        %3170 = vrot.lane.b32.xlu0 %v3161, 32
        %v3171 = vpop.permute.xlu0 %3170
        %3172 = vrot.lane.b32.xlu0 %v3164, 32
        %v3173 = vpop.permute.xlu0 %3172
        %v3174 = vrot.slane %v3150, 1
        %v3175 = vrot.slane %v3151, 1
        %v3176 = vrot.slane %v3152, 1
        %v3177 = vrot.slane %v3153, 1
        %3178 = vrot.lane.b32.xlu0 %v3174, 64
        %v3179 = vpop.permute.xlu0 %3178
        %3180 = vrot.lane.b32.xlu0 %v3175, 64
        %v3181 = vpop.permute.xlu0 %3180
        %3182 = vrot.lane.b32.xlu0 %v3176, 64
        %v3183 = vpop.permute.xlu0 %3182
        %3184 = vrot.lane.b32.xlu0 %v3177, 64
        %v3185 = vpop.permute.xlu0 %3184
        %v3186 = vrot.slane %v3155, 1
        %v3187 = vrot.slane %v3158, 1
        %v3188 = vrot.slane %v3161, 1
        %v3189 = vrot.slane %v3164, 1
        %3190 = vrot.lane.b32.xlu0 %v3186, 96
        %v3191 = vpop.permute.xlu0 %3190
        %3192 = vrot.lane.b32.xlu0 %v3187, 96
        %v3193 = vpop.permute.xlu0 %3192
        %3194 = vrot.lane.b32.xlu0 %v3188, 96
        %v3195 = vpop.permute.xlu0 %3194
        %3196 = vrot.lane.b32.xlu0 %v3189, 96
        %v3197 = vpop.permute.xlu0 %3196
        %v3198 = vrot.slane %v3150, 2
        %v3199 = vrot.slane %v3151, 2
        %v3200 = vrot.slane %v3152, 2
        %v3201 = vrot.slane %v3153, 2
        %v3202 = vrot.slane %v3155, 2
        %v3203 = vrot.slane %v3158, 2
        %v3204 = vrot.slane %v3161, 2
        %v3205 = vrot.slane %v3164, 2
        %3206 = vrot.lane.b32.xlu0 %v3202, 32
        %v3207 = vpop.permute.xlu0 %3206
        %3208 = vrot.lane.b32.xlu0 %v3203, 32
        %v3209 = vpop.permute.xlu0 %3208
        %3210 = vrot.lane.b32.xlu0 %v3204, 32
        %v3211 = vpop.permute.xlu0 %3210
        %3212 = vrot.lane.b32.xlu0 %v3205, 32
        %v3213 = vpop.permute.xlu0 %3212
        %v3214 = vrot.slane %v3150, 3
        %v3215 = vrot.slane %v3151, 3
        %v3216 = vrot.slane %v3152, 3
        %v3217 = vrot.slane %v3153, 3
        %3218 = vrot.lane.b32.xlu0 %v3214, 64
        %v3219 = vpop.permute.xlu0 %3218
        %3220 = vrot.lane.b32.xlu0 %v3215, 64
        %v3221 = vpop.permute.xlu0 %3220
        %3222 = vrot.lane.b32.xlu0 %v3216, 64
        %v3223 = vpop.permute.xlu0 %3222
        %3224 = vrot.lane.b32.xlu0 %v3217, 64
        %v3225 = vpop.permute.xlu0 %3224
        %v3226 = vrot.slane %v3155, 3
        %v3227 = vrot.slane %v3158, 3
        %v3228 = vrot.slane %v3161, 3
        %v3229 = vrot.slane %v3164, 3
        %3230 = vrot.lane.b32.xlu0 %v3226, 96
        %v3231 = vpop.permute.xlu0 %3230
        %3232 = vrot.lane.b32.xlu0 %v3227, 96
        %v3233 = vpop.permute.xlu0 %3232
        %3234 = vrot.lane.b32.xlu0 %v3228, 96
        %v3235 = vpop.permute.xlu0 %3234
        %3236 = vrot.lane.b32.xlu0 %v3229, 96
        %v3237 = vpop.permute.xlu0 %3236
        %v3242 = vunpack.c.l.b16 %v3135
        %v3243 = vunpack.c.l.b16 %v3137
        %v3244 = vunpack.c.l.b16 %v3139
        %v3245 = vunpack.c.l.b16 %v3141
        %v3246 = vpack.c.b16 %v3242, %v3242
        %v3247 = vpack.c.b16 %v3243, %v3243
        %v3248 = vpack.c.b16 %v3244, %v3244
        %v3249 = vpack.c.b16 %v3245, %v3245
        %v3251 = vshrl.u32 %v3246, 16
        %v3254 = vshrl.u32 %v3247, 16
        %v3257 = vshrl.u32 %v3248, 16
        %v3260 = vshrl.u32 %v3249, 16
        %3262 = vrot.lane.b32.xlu0 %v3251, 32
        %v3263 = vpop.permute.xlu0 %3262
        %3264 = vrot.lane.b32.xlu0 %v3254, 32
        %v3265 = vpop.permute.xlu0 %3264
        %3266 = vrot.lane.b32.xlu0 %v3257, 32
        %v3267 = vpop.permute.xlu0 %3266
        %3268 = vrot.lane.b32.xlu0 %v3260, 32
        %v3269 = vpop.permute.xlu0 %3268
        %v3270 = vrot.slane %v3246, 1
        %v3271 = vrot.slane %v3247, 1
        %v3272 = vrot.slane %v3248, 1
        %v3273 = vrot.slane %v3249, 1
        %3274 = vrot.lane.b32.xlu0 %v3270, 64
        %v3275 = vpop.permute.xlu0 %3274
        %3276 = vrot.lane.b32.xlu0 %v3271, 64
        %v3277 = vpop.permute.xlu0 %3276
        %3278 = vrot.lane.b32.xlu0 %v3272, 64
        %v3279 = vpop.permute.xlu0 %3278
        %3280 = vrot.lane.b32.xlu0 %v3273, 64
        %v3281 = vpop.permute.xlu0 %3280
        %v3282 = vrot.slane %v3251, 1
        %v3283 = vrot.slane %v3254, 1
        %v3284 = vrot.slane %v3257, 1
        %v3285 = vrot.slane %v3260, 1
        %3286 = vrot.lane.b32.xlu0 %v3282, 96
        %v3287 = vpop.permute.xlu0 %3286
        %3288 = vrot.lane.b32.xlu0 %v3283, 96
        %v3289 = vpop.permute.xlu0 %3288
        %3290 = vrot.lane.b32.xlu0 %v3284, 96
        %v3291 = vpop.permute.xlu0 %3290
        %3292 = vrot.lane.b32.xlu0 %v3285, 96
        %v3293 = vpop.permute.xlu0 %3292
        %v3294 = vrot.slane %v3246, 2
        %v3295 = vrot.slane %v3247, 2
        %v3296 = vrot.slane %v3248, 2
        %v3297 = vrot.slane %v3249, 2
        %v3298 = vrot.slane %v3251, 2
        %v3299 = vrot.slane %v3254, 2
        %v3300 = vrot.slane %v3257, 2
        %v3301 = vrot.slane %v3260, 2
        %3302 = vrot.lane.b32.xlu0 %v3298, 32
        %v3303 = vpop.permute.xlu0 %3302
        %3304 = vrot.lane.b32.xlu0 %v3299, 32
        %v3305 = vpop.permute.xlu0 %3304
        %3306 = vrot.lane.b32.xlu0 %v3300, 32
        %v3307 = vpop.permute.xlu0 %3306
        %3308 = vrot.lane.b32.xlu0 %v3301, 32
        %v3309 = vpop.permute.xlu0 %3308
        %v3310 = vrot.slane %v3246, 3
        %v3311 = vrot.slane %v3247, 3
        %v3312 = vrot.slane %v3248, 3
        %v3313 = vrot.slane %v3249, 3
        %3314 = vrot.lane.b32.xlu0 %v3310, 64
        %v3315 = vpop.permute.xlu0 %3314
        %3316 = vrot.lane.b32.xlu0 %v3311, 64
        %v3317 = vpop.permute.xlu0 %3316
        %3318 = vrot.lane.b32.xlu0 %v3312, 64
        %v3319 = vpop.permute.xlu0 %3318
        %3320 = vrot.lane.b32.xlu0 %v3313, 64
        %v3321 = vpop.permute.xlu0 %3320
        %v3322 = vrot.slane %v3251, 3
        %v3323 = vrot.slane %v3254, 3
        %v3324 = vrot.slane %v3257, 3
        %v3325 = vrot.slane %v3260, 3
        %3326 = vrot.lane.b32.xlu0 %v3322, 96
        %v3327 = vpop.permute.xlu0 %3326
        %3328 = vrot.lane.b32.xlu0 %v3323, 96
        %v3329 = vpop.permute.xlu0 %3328
        %3330 = vrot.lane.b32.xlu0 %v3324, 96
        %v3331 = vpop.permute.xlu0 %3330
        %3332 = vrot.lane.b32.xlu0 %v3325, 96
        %v3333 = vpop.permute.xlu0 %3332
        %v3336 = vsel %vm490, %v3134, %v3167
        %v3339 = vsel %vm490, %v3136, %v3169
        %v3342 = vsel %vm490, %v3138, %v3171
        %v3345 = vsel %vm490, %v3140, %v3173
        %vm3346 = vcmask 523264
        %v3348 = vsel %vm3346, %v3336, %v3179
        %v3350 = vsel %vm3346, %v3339, %v3181
        %v3352 = vsel %vm3346, %v3342, %v3183
        %v3354 = vsel %vm3346, %v3345, %v3185
        %vm3355 = vcmask 785408
        %v3357 = vsel %vm3355, %v3348, %v3191
        %v3359 = vsel %vm3355, %v3350, %v3193
        %v3361 = vsel %vm3355, %v3352, %v3195
        %v3363 = vsel %vm3355, %v3354, %v3197
        %v3366 = vsel %vm490, %v3198, %v3207
        %v3369 = vsel %vm490, %v3199, %v3209
        %v3372 = vsel %vm490, %v3200, %v3211
        %v3375 = vsel %vm490, %v3201, %v3213
        %v3377 = vsel %vm3346, %v3366, %v3219
        %v3379 = vsel %vm3346, %v3369, %v3221
        %v3381 = vsel %vm3346, %v3372, %v3223
        %v3383 = vsel %vm3346, %v3375, %v3225
        %v3385 = vsel %vm3355, %v3377, %v3231
        %v3387 = vsel %vm3355, %v3379, %v3233
        %v3389 = vsel %vm3355, %v3381, %v3235
        %v3391 = vsel %vm3355, %v3383, %v3237
        %v3394 = vsel %vm490, %v3135, %v3263
        %v3397 = vsel %vm490, %v3137, %v3265
        %v3400 = vsel %vm490, %v3139, %v3267
        %v3403 = vsel %vm490, %v3141, %v3269
        %v3405 = vsel %vm3346, %v3394, %v3275
        %v3407 = vsel %vm3346, %v3397, %v3277
        %v3409 = vsel %vm3346, %v3400, %v3279
        %v3411 = vsel %vm3346, %v3403, %v3281
        %v3413 = vsel %vm3355, %v3405, %v3287
        %v3415 = vsel %vm3355, %v3407, %v3289
        %v3417 = vsel %vm3355, %v3409, %v3291
        %v3419 = vsel %vm3355, %v3411, %v3293
        %v3422 = vsel %vm490, %v3294, %v3303
        %v3425 = vsel %vm490, %v3295, %v3305
        %v3428 = vsel %vm490, %v3296, %v3307
        %v3431 = vsel %vm490, %v3297, %v3309
        %v3433 = vsel %vm3346, %v3422, %v3315
        %v3435 = vsel %vm3346, %v3425, %v3317
        %v3437 = vsel %vm3346, %v3428, %v3319
        %v3439 = vsel %vm3346, %v3431, %v3321
        %v3441 = vsel %vm3355, %v3433, %v3327
        %v3443 = vsel %vm3355, %v3435, %v3329
        %v3445 = vsel %vm3355, %v3437, %v3331
        %v3447 = vsel %vm3355, %v3439, %v3333
        %v3448 = vld [vmem:[%s3] sm:$0xf]
        %v3449 = vld [vmem:[%s3 + $0x4] sm:$0xf]
        %v3450 = vld [vmem:[%s3 + $0x8] sm:$0xf]
        %v3451 = vld [vmem:[%s3 + $0xc] sm:$0xf]
        %v3452 = vld [vmem:[%s3 + $0x10] sm:$0xf]
        %v3453 = vld [vmem:[%s3 + $0x14] sm:$0xf]
        %v3454 = vld [vmem:[%s3 + $0x18] sm:$0xf]
        %v3455 = vld [vmem:[%s3 + $0x1c] sm:$0xf]
        %v3456 = vld [vmem:[%s3 + $0x20] sm:$0xf]
        %v3457 = vld [vmem:[%s3 + $0x24] sm:$0xf]
        %v3458 = vld [vmem:[%s3 + $0x28] sm:$0xf]
        %v3459 = vld [vmem:[%s3 + $0x2c] sm:$0xf]
        %v3460 = vld [vmem:[%s3 + $0x30] sm:$0xf]
        %v3461 = vld [vmem:[%s3 + $0x34] sm:$0xf]
        %v3462 = vld [vmem:[%s3 + $0x38] sm:$0xf]
        %v3463 = vld [vmem:[%s3 + $0x3c] sm:$0xf]
        %v3464 = vld [vmem:[%s3 + $0x40] sm:$0xf]
        %v3465 = vld [vmem:[%s3 + $0x44] sm:$0xf]
        %v3466 = vld [vmem:[%s3 + $0x48] sm:$0xf]
        %v3467 = vld [vmem:[%s3 + $0x4c] sm:$0xf]
        %v3468 = vld [vmem:[%s3 + $0x50] sm:$0xf]
        %v3469 = vld [vmem:[%s3 + $0x54] sm:$0xf]
        %v3470 = vld [vmem:[%s3 + $0x58] sm:$0xf]
        %v3471 = vld [vmem:[%s3 + $0x5c] sm:$0xf]
        %v3472 = vld [vmem:[%s3 + $0x60] sm:$0xf]
        %v3473 = vld [vmem:[%s3 + $0x64] sm:$0xf]
        %v3474 = vld [vmem:[%s3 + $0x68] sm:$0xf]
        %v3475 = vld [vmem:[%s3 + $0x6c] sm:$0xf]
        %v3476 = vld [vmem:[%s3 + $0x70] sm:$0xf]
        %v3477 = vld [vmem:[%s3 + $0x74] sm:$0xf]
        %v3478 = vld [vmem:[%s3 + $0x78] sm:$0xf]
        %v3479 = vld [vmem:[%s3 + $0x7c] sm:$0xf]
        %v3480 = vld [vmem:[%s3 + $0x80] sm:$0xf]
        %v3481 = vld [vmem:[%s3 + $0x84] sm:$0xf]
        %v3482 = vld [vmem:[%s3 + $0x88] sm:$0xf]
        %v3483 = vld [vmem:[%s3 + $0x8c] sm:$0xf]
        %v3484 = vld [vmem:[%s3 + $0x90] sm:$0xf]
        %v3485 = vld [vmem:[%s3 + $0x94] sm:$0xf]
        %v3486 = vld [vmem:[%s3 + $0x98] sm:$0xf]
        %v3487 = vld [vmem:[%s3 + $0x9c] sm:$0xf]
        %v3488 = vld [vmem:[%s3 + $0xa0] sm:$0xf]
        %v3489 = vld [vmem:[%s3 + $0xa4] sm:$0xf]
        %v3490 = vld [vmem:[%s3 + $0xa8] sm:$0xf]
        %v3491 = vld [vmem:[%s3 + $0xac] sm:$0xf]
        %v3492 = vld [vmem:[%s3 + $0xb0] sm:$0xf]
        %v3493 = vld [vmem:[%s3 + $0xb4] sm:$0xf]
        %v3494 = vld [vmem:[%s3 + $0xb8] sm:$0xf]
        %v3495 = vld [vmem:[%s3 + $0xbc] sm:$0xf]
        %v3496 = vld [vmem:[%s3 + $0xc0] sm:$0xf]
        %v3497 = vld [vmem:[%s3 + $0xc4] sm:$0xf]
        %v3498 = vld [vmem:[%s3 + $0xc8] sm:$0xf]
        %v3499 = vld [vmem:[%s3 + $0xcc] sm:$0xf]
        %v3500 = vld [vmem:[%s3 + $0xd0] sm:$0xf]
        %v3501 = vld [vmem:[%s3 + $0xd4] sm:$0xf]
        %v3502 = vld [vmem:[%s3 + $0xd8] sm:$0xf]
        %v3503 = vld [vmem:[%s3 + $0xdc] sm:$0xf]
        %v3504 = vld [vmem:[%s3 + $0xe0] sm:$0xf]
        %v3505 = vld [vmem:[%s3 + $0xe4] sm:$0xf]
        %v3506 = vld [vmem:[%s3 + $0xe8] sm:$0xf]
        %v3507 = vld [vmem:[%s3 + $0xec] sm:$0xf]
        %v3508 = vld [vmem:[%s3 + $0xf0] sm:$0xf]
        %v3509 = vld [vmem:[%s3 + $0xf4] sm:$0xf]
        %v3510 = vld [vmem:[%s3 + $0xf8] sm:$0xf]
        %v3511 = vld [vmem:[%s3 + $0xfc] sm:$0xf]
        %v3512 = vperm.slane %v241, 5
        %v3529 = vunpack.c.l.b16 %v3357
        %v3530 = vunpack.c.l.b16 %v3385
        %v3531 = vunpack.c.l.b16 %v3413
        %v3532 = vunpack.c.l.b16 %v3441
        %v3533 = vunpack.c.l.b16 %v3359
        %v3534 = vunpack.c.l.b16 %v3387
        %v3535 = vunpack.c.l.b16 %v3415
        %v3536 = vunpack.c.l.b16 %v3443
        %v3537 = vunpack.c.l.b16 %v3361
        %v3538 = vunpack.c.l.b16 %v3389
        %v3539 = vunpack.c.l.b16 %v3417
        %v3540 = vunpack.c.l.b16 %v3445
        %v3541 = vunpack.c.l.b16 %v3363
        %v3542 = vunpack.c.l.b16 %v3391
        %v3543 = vunpack.c.l.b16 %v3419
        %v3544 = vunpack.c.l.b16 %v3447
        %v3545 = vrot.slane %v3533, 7
        %vm3546 = vcmask 1041409
        %v3547 = vsel %vm3546, %v3545, %v3529
        %v3548 = vrot.slane %v3537, 6
        %vm3549 = vcmask 1042434
        %v3550 = vsel %vm3549, %v3548, %v3547
        %v3551 = vrot.slane %v3541, 5
        %vm3552 = vcmask 1043459
        %v3553 = vsel %vm3552, %v3551, %v3550
        %v3554 = vrot.slane %v3534, 7
        %v3555 = vsel %vm3546, %v3554, %v3530
        %v3556 = vrot.slane %v3538, 6
        %v3557 = vsel %vm3549, %v3556, %v3555
        %v3558 = vrot.slane %v3542, 5
        %v3559 = vsel %vm3552, %v3558, %v3557
        %v3560 = vrot.slane %v3535, 7
        %v3561 = vsel %vm3546, %v3560, %v3531
        %v3562 = vrot.slane %v3539, 6
        %v3563 = vsel %vm3549, %v3562, %v3561
        %v3564 = vrot.slane %v3543, 5
        %v3565 = vsel %vm3552, %v3564, %v3563
        %v3566 = vrot.slane %v3536, 7
        %v3567 = vsel %vm3546, %v3566, %v3532
        %v3568 = vrot.slane %v3540, 6
        %v3569 = vsel %vm3549, %v3568, %v3567
        %v3570 = vrot.slane %v3544, 5
        %v3571 = vsel %vm3552, %v3570, %v3569
        %v3572 = vpack.c.b16 %v3553, %v3553
        %v3573 = vpack.c.b16 %v3559, %v3559
        %v3574 = vpack.c.b16 %v3565, %v3565
        %v3575 = vpack.c.b16 %v3571, %v3571
        %v3644 = vunpack.c.l.b16 %v3448
        %v3645 = vunpack.c.l.b16 %v3449
        %v3646 = vunpack.c.l.b16 %v3450
        %v3647 = vunpack.c.l.b16 %v3451
        %v3648 = vunpack.c.l.b16 %v3452
        %v3649 = vunpack.c.l.b16 %v3453
        %v3650 = vunpack.c.l.b16 %v3454
        %v3651 = vunpack.c.l.b16 %v3455
        %v3652 = vunpack.c.l.b16 %v3456
        %v3653 = vunpack.c.l.b16 %v3457
        %v3654 = vunpack.c.l.b16 %v3458
        %v3655 = vunpack.c.l.b16 %v3459
        %v3656 = vunpack.c.l.b16 %v3460
        %v3657 = vunpack.c.l.b16 %v3461
        %v3658 = vunpack.c.l.b16 %v3462
        %v3659 = vunpack.c.l.b16 %v3463
        %v3660 = vunpack.c.l.b16 %v3464
        %v3661 = vunpack.c.l.b16 %v3465
        %v3662 = vunpack.c.l.b16 %v3466
        %v3663 = vunpack.c.l.b16 %v3467
        %v3664 = vunpack.c.l.b16 %v3468
        %v3665 = vunpack.c.l.b16 %v3469
        %v3666 = vunpack.c.l.b16 %v3470
        %v3667 = vunpack.c.l.b16 %v3471
        %v3668 = vunpack.c.l.b16 %v3472
        %v3669 = vunpack.c.l.b16 %v3473
        %v3670 = vunpack.c.l.b16 %v3474
        %v3671 = vunpack.c.l.b16 %v3475
        %v3672 = vunpack.c.l.b16 %v3476
        %v3673 = vunpack.c.l.b16 %v3477
        %v3674 = vunpack.c.l.b16 %v3478
        %v3675 = vunpack.c.l.b16 %v3479
        %v3676 = vunpack.c.l.b16 %v3480
        %v3677 = vunpack.c.l.b16 %v3481
        %v3678 = vunpack.c.l.b16 %v3482
        %v3679 = vunpack.c.l.b16 %v3483
        %v3680 = vunpack.c.l.b16 %v3484
        %v3681 = vunpack.c.l.b16 %v3485
        %v3682 = vunpack.c.l.b16 %v3486
        %v3683 = vunpack.c.l.b16 %v3487
        %v3684 = vunpack.c.l.b16 %v3488
        %v3685 = vunpack.c.l.b16 %v3489
        %v3686 = vunpack.c.l.b16 %v3490
        %v3687 = vunpack.c.l.b16 %v3491
        %v3688 = vunpack.c.l.b16 %v3492
        %v3689 = vunpack.c.l.b16 %v3493
        %v3690 = vunpack.c.l.b16 %v3494
        %v3691 = vunpack.c.l.b16 %v3495
        %v3692 = vunpack.c.l.b16 %v3496
        %v3693 = vunpack.c.l.b16 %v3497
        %v3694 = vunpack.c.l.b16 %v3498
        %v3695 = vunpack.c.l.b16 %v3499
        %v3696 = vunpack.c.l.b16 %v3500
        %v3697 = vunpack.c.l.b16 %v3501
        %v3698 = vunpack.c.l.b16 %v3502
        %v3699 = vunpack.c.l.b16 %v3503
        %v3700 = vunpack.c.l.b16 %v3504
        %v3701 = vunpack.c.l.b16 %v3505
        %v3702 = vunpack.c.l.b16 %v3506
        %v3703 = vunpack.c.l.b16 %v3507
        %v3704 = vunpack.c.l.b16 %v3508
        %v3705 = vunpack.c.l.b16 %v3509
        %v3706 = vunpack.c.l.b16 %v3510
        %v3707 = vunpack.c.l.b16 %v3511
        %v3708 = vpack.c.b16 %v3645, %v3644
        %v3709 = vpack.c.b16 %v3647, %v3646
        %v3710 = vpack.c.b16 %v3649, %v3648
        %v3711 = vpack.c.b16 %v3651, %v3650
        %v3712 = vpack.c.b16 %v3653, %v3652
        %v3713 = vpack.c.b16 %v3655, %v3654
        %v3714 = vpack.c.b16 %v3657, %v3656
        %v3715 = vpack.c.b16 %v3659, %v3658
        %v3716 = vpack.c.b16 %v3661, %v3660
        %v3717 = vpack.c.b16 %v3663, %v3662
        %v3718 = vpack.c.b16 %v3665, %v3664
        %v3719 = vpack.c.b16 %v3667, %v3666
        %v3720 = vpack.c.b16 %v3669, %v3668
        %v3721 = vpack.c.b16 %v3671, %v3670
        %v3722 = vpack.c.b16 %v3673, %v3672
        %v3723 = vpack.c.b16 %v3675, %v3674
        %v3724 = vpack.c.b16 %v3677, %v3676
        %v3725 = vpack.c.b16 %v3679, %v3678
        %v3726 = vpack.c.b16 %v3681, %v3680
        %v3727 = vpack.c.b16 %v3683, %v3682
        %v3728 = vpack.c.b16 %v3685, %v3684
        %v3729 = vpack.c.b16 %v3687, %v3686
        %v3730 = vpack.c.b16 %v3689, %v3688
        %v3731 = vpack.c.b16 %v3691, %v3690
        %v3732 = vpack.c.b16 %v3693, %v3692
        %v3733 = vpack.c.b16 %v3695, %v3694
        %v3734 = vpack.c.b16 %v3697, %v3696
        %v3735 = vpack.c.b16 %v3699, %v3698
        %v3736 = vpack.c.b16 %v3701, %v3700
        %v3737 = vpack.c.b16 %v3703, %v3702
        %v3738 = vpack.c.b16 %v3705, %v3704
        %v3739 = vpack.c.b16 %v3707, %v3706
        %3772 = vmatpush.bf16.msra.mxu0 %v3715
        %3773 = vmatpush.bf16.msra.mxu0 %v3714
        %3774 = vmatpush.bf16.msra.mxu0 %v3713
        %3775 = vmatpush.bf16.msra.mxu0 %v3712
        %3776 = vmatpush.bf16.msra.mxu0 %v3711
        %3777 = vmatpush.bf16.msra.mxu0 %v3710
        %3778 = vmatpush.bf16.msra.mxu0 %v3709
        %3779 = vmatpush.bf16.msra.mxu0 %v3708
        %3780 = vmatmul.bf16.gmra.mxu0 %v3572
        %v3781 = vpop.f32.mrf.mxu0
        %v3782 = vadd.f32 %v3512, %v3781
        %v3783 = vpop.f32.mrf.mxu0
        %3784 = vdwg.mxu0
        %3785 = vmatpush.bf16.msra.mxu0 %v3723
        %3786 = vmatpush.bf16.msra.mxu0 %v3722
        %3787 = vmatpush.bf16.msra.mxu0 %v3721
        %3788 = vmatpush.bf16.msra.mxu0 %v3720
        %3789 = vmatpush.bf16.msra.mxu0 %v3719
        %3790 = vmatpush.bf16.msra.mxu0 %v3718
        %3791 = vmatpush.bf16.msra.mxu0 %v3717
        %3792 = vmatpush.bf16.msra.mxu0 %v3716
        %3793 = vmatmul.bf16.gmra.mxu0 %v3573
        %v3794 = vpop.f32.mrf.mxu0
        %v3795 = vadd.f32 %v3782, %v3794
        %v3796 = vpop.f32.mrf.mxu0
        %3797 = vdwg.mxu0
        %3798 = vmatpush.bf16.msra.mxu0 %v3731
        %3799 = vmatpush.bf16.msra.mxu0 %v3730
        %3800 = vmatpush.bf16.msra.mxu0 %v3729
        %3801 = vmatpush.bf16.msra.mxu0 %v3728
        %3802 = vmatpush.bf16.msra.mxu0 %v3727
        %3803 = vmatpush.bf16.msra.mxu0 %v3726
        %3804 = vmatpush.bf16.msra.mxu0 %v3725
        %3805 = vmatpush.bf16.msra.mxu0 %v3724
        %3806 = vmatmul.bf16.gmra.mxu0 %v3574
        %v3807 = vpop.f32.mrf.mxu0
        %v3808 = vadd.f32 %v3795, %v3807
        %v3809 = vpop.f32.mrf.mxu0
        %3810 = vdwg.mxu0
        %3811 = vmatpush.bf16.msra.mxu0 %v3739
        %3812 = vmatpush.bf16.msra.mxu0 %v3738
        %3813 = vmatpush.bf16.msra.mxu0 %v3737
        %3814 = vmatpush.bf16.msra.mxu0 %v3736
        %3815 = vmatpush.bf16.msra.mxu0 %v3735
        %3816 = vmatpush.bf16.msra.mxu0 %v3734
        %3817 = vmatpush.bf16.msra.mxu0 %v3733
        %3818 = vmatpush.bf16.msra.mxu0 %v3732
        %3819 = vmatmul.bf16.gmra.mxu0 %v3575
        %v3820 = vpop.f32.mrf.mxu0
        %v3821 = vadd.f32 %v3808, %v3820
        %v3822 = vpop.f32.mrf.mxu0
        %3823 = vdwg.mxu0
        %vm3824 = vcmask 60416
        %3825 = vst.msk [vmem:[%s234] sm:$0xf] %vm3824, %v3821
        %s3826 = sand.u32 %s138, 1
        %s3827 = scalar_lea.sflag [#allocation4], %s3826
        %s3828 = sand.u32 %s138, 1
        %s3829 = smul.addr %s3828, 4
        %s3830 = scalar_lea.vmem [#allocation5], %s3829
        // Predicated region
        $region45: #{tpu_custom_call.1} parent=39 // pred_check
          %p3831 = pneg %p148
        $region46: #{tpu_custom_call.1} parent=39 // pred_check_branch
          %3833 = sbr.rel (%p3831) target = $region48
        $region47: #{tpu_custom_call.1} parent=39 // pred_region
          %3835 = vsyncadd %s3827, 0
          %s3836 = smul.addr %s20, 4
          %s3837 = scalar_lea.hbm %s5, %s3836
          %s3839 = sshll.u32 %s3830, 4
          %s3840 = int_to_ptr.vmem [resolvable:$true] %s3839
          %s3841 = sshll.u32 %s3837, 4
          %s3842 = int_to_ptr.hbm [resolvable:$true] %s3841
          %3844 = dma.vmem_to_hbm [thread:$0]  %s3840, 64, %s3842, %s3827
        $region48: #{tpu_custom_call.1} parent=39 // pred_fallthru
          _
      $region40: #{tpu_custom_call.1} parent=5 // pred_fallthru
        _
      %p3845 = scmp.le.s32.totalorder 2, %s15
      // Predicated region
      $region49: #{tpu_custom_call.1} parent=5 // pred_check
        %p3846 = pneg %p3845
      $region50: #{tpu_custom_call.1} parent=5 // pred_check_branch
        %3848 = sbr.rel (%p3846) target = $region52
      $region51: #{tpu_custom_call.1} parent=5 // pred_region
        %s3849 = ssub.s32 %s15, 2
        // Predicated region
        $region53: #{tpu_custom_call.1} parent=51 // pred_check
          %p3850 = pneg %p154
        $region54: #{tpu_custom_call.1} parent=51 // pred_check_branch
          %3852 = sbr.rel (%p3850) target = $region56
        $region55: #{tpu_custom_call.1} parent=51 // pred_region
          %s3853 = sand.u32 %s139, 1
          %s3854 = scalar_lea.sflag [#allocation4], %s3853
          %s3855 = sand.u32 %s139, 1
          %s3856 = smul.addr %s3855, 4
          %s3857 = scalar_lea.vmem [#allocation5], %s3856
          %3859 = dma.done %s3854, 64
        $region56: #{tpu_custom_call.1} parent=51 // pred_fallthru
          _
      $region52: #{tpu_custom_call.1} parent=5 // pred_fallthru
        _
    $region6: #{tpu_custom_call.1} parent=1 // loop_footer
      %s19 = sadd.s32 1, %s15
    $region7: #{tpu_custom_call.1} parent=1 // loop_footer_branch
      %14 = sbr.rel target = $region3
    $region8: #{tpu_custom_call.1} parent=1 // loop_exit
      _
    %3860 = vsyncpa [#allocation3], 1
    %s3861 = scalar_lea.sflag [#allocation3], 1
    %3862 = vsyncpa %s3861, 1
    %3863 = vsyncpa [#allocation4], 1
    %s3864 = scalar_lea.sflag [#allocation4], 1
    %3865 = vsyncpa %s3864, 1

</llo_original>
